<compile_context>
chip_gen: v7x
topology: tpu7x:2x2x1
jax: 0.10.0
libtpu: 0.0.40
codegen_flags: <defaults>
</compile_context>

<pallas_src>
import jax
import jax.numpy as jnp
from jax import lax
from jax.experimental import pallas as pl
from jax.experimental.pallas import tpu as pltpu

# ---------------- small synthetic configuration ----------------
NODE_DIM = 16
EDGE_DIM = 8
HIDDEN_DIM = 64
NUM_HEADS = 8                        # hard-coded to 8 inside the pooling module
HEAD_DIM = HIDDEN_DIM // NUM_HEADS
NUM_SEEDS = 8                        # granularity='atom' -> unchanged
OUTPUT_DIM = 1
N_NODES = 16
N_EDGES = 32
BATCH_SIZE = 2
EDGE_IN_DIM = 2 * NODE_DIM + EDGE_DIM   # cat([x[src], x[dst], edge_attr])

# ---------------- packed-weight table layouts (static) ----------------
def _layout(entries):
    offs, cur = {}, 0
    for name, r, c in entries:
        offs[name] = (cur, r, c)
        cur += -(-r // 8) * 8            # round rows up to a sublane multiple
    return offs, cur


# 64-lane table: all [*, <=64] weights stacked on sublanes.
W64_ENTRIES = [
    ("e_w2",  2 * HIDDEN_DIM, HIDDEN_DIM),
    ("e_w3",  HIDDEN_DIM, HIDDEN_DIM),
    ("wo",    HIDDEN_DIM, HIDDEN_DIM),
    ("f_w1",  NUM_SEEDS * HIDDEN_DIM, HIDDEN_DIM),
    ("f_w2",  HIDDEN_DIM, HIDDEN_DIM),
    ("o_w1",  HIDDEN_DIM, HIDDEN_DIM),
    ("o_w2",  HIDDEN_DIM, HIDDEN_DIM // 2),
    ("o_w3",  HIDDEN_DIM // 2, OUTPUT_DIM),
    ("q_h",   NUM_HEADS * NUM_SEEDS, HEAD_DIM),   # precomputed seeds@Wq, scaled
]
W64_OFF, W64_ROWS = _layout(W64_ENTRIES)

# 128-lane table: wide weights + all biases (lane padded to 128).
W128_ENTRIES = [
    ("w1_attr", EDGE_DIM, 2 * HIDDEN_DIM),
    ("w_kv",    HIDDEN_DIM, 2 * HIDDEN_DIM),
    ("biases",  16, 2 * HIDDEN_DIM),
]
W128_OFF, W128_ROWS = _layout(W128_ENTRIES)

_BIAS_ORDER = ("e_b1", "e_b2", "e_b3", "bo", "f_b1", "f_b2", "o_b1", "o_b2", "o_b3")
(_B_E1, _B_E2, _B_E3, _B_BO, _B_F1, _B_F2, _B_O1, _B_O2, _B_O3) = range(len(_BIAS_ORDER))


# =====================================================================
# Single fused kernel
# =====================================================================
def esa3d_fused_kernel(x_ref, eattr_ref, idx_ref, w1_sd_ref, w64_ref, w128_ref,
                       out_ref):
    f32 = jnp.float32
    H, S, NH, HD = HIDDEN_DIM, NUM_SEEDS, NUM_HEADS, HEAD_DIM
    E, N, B = N_EDGES, N_NODES, BATCH_SIZE

    def w64(name):
        s, r, c = W64_OFF[name]
        return w64_ref[s:s + r, :c]

    def w128(name):
        s, r, c = W128_OFF[name]
        return w128_ref[s:s + r, :c]

    # ---- biases (one [16, 128] load, row slices of the value) ----
    bt = w128("biases")
    e_b1 = bt[_B_E1:_B_E1 + 1, :2 * H]
    e_b2 = bt[_B_E2:_B_E2 + 1, :H]
    e_b3 = bt[_B_E3:_B_E3 + 1, :H]
    bo   = bt[_B_BO:_B_BO + 1, :H]
    f_b1 = bt[_B_F1:_B_F1 + 1, :H]
    f_b2 = bt[_B_F2:_B_F2 + 1, :H]
    o_b1 = bt[_B_O1:_B_O1 + 1, :H]
    o_b2 = bt[_B_O2:_B_O2 + 1, :H // 2]
    o_b3 = bt[_B_O3:_B_O3 + 1, :OUTPUT_DIM]

    # ---- indices (row layout): src, dst, edge_batch ----
    idx = idx_ref[...]                                   # [3, E] int32
    src_row = idx[0:1, :]
    dst_row = idx[1:2, :]
    ebatch_row = idx[2:3, :]

    # ---- EnhancedEdgeEmbedding: fused gather + first linear ----
    # one-hot (transposed) for [x_src ; x_dst]: oh_t[m, e] = (m == src[e]) | (m == dst[e]+N)
    node_iota = lax.broadcasted_iota(jnp.int32, (2 * N, E), 0)
    oh_t = jnp.logical_or(node_iota == src_row,
                          node_iota == dst_row + N).astype(f32)      # [2N, E]

    # project node features once: [N, node_dim] @ [node_dim, 4H] (lane-dense 256)
    node_proj = jnp.dot(x_ref[...], w1_sd_ref[...], preferred_element_type=f32)
    node_stack = jnp.concatenate([node_proj[:, :2 * H],               # x @ W_src
                                  node_proj[:, 2 * H:]], axis=0)      # x @ W_dst  -> [2N, 2H]

    h = (jnp.dot(oh_t.T, node_stack, preferred_element_type=f32)      # gather+sum  [E, 2H]
         + jnp.dot(eattr_ref[...], w128("w1_attr"), preferred_element_type=f32)
         + e_b1)
    h = jax.nn.silu(h)
    h = jax.nn.silu(jnp.dot(h, w64("e_w2"), preferred_element_type=f32) + e_b2)
    ef = jnp.dot(h, w64("e_w3"), preferred_element_type=f32) + e_b3   # [E, H]

    # TODO(synk): EnhancedESA3DEncoder / OptimizedESA3DBlock is not defined in the
    # reference source, so the encoder is an identity pass-through (block_ids and
    # the coord_mlp / edge_coords path are dead and therefore omitted).

    # ---- MultiGranularityGlobalPooling (all graphs + all heads at once) ----
    # lane-dense k|v projection: [E, H] @ [H, 2H]
    kv2 = jnp.dot(ef, w128("w_kv"), preferred_element_type=f32)       # [E, 2H]
    kv2_t = kv2.T                                                     # [2H, E]
    kh_t = kv2_t[:H].reshape(NH, HD, E)                               # [NH, HD, E]
    vh_t = kv2_t[H:].reshape(NH, HD, E)                               # [NH, HD, E]

    qh = w64("q_h").reshape(NH, S, HD)            # precomputed seeds@Wq, pre-scaled
    scores = jnp.einsum("nsd,nde->nse", qh, kh_t,
                        preferred_element_type=f32)                   # [NH, S, E]

    # per-graph additive mask from edge_batch: 0 if edge belongs to graph b else -1e30
    b_iota = lax.broadcasted_iota(jnp.int32, (B, E), 0)
    maskadd = jnp.where(b_iota == ebatch_row,
                        jnp.float32(0.0), jnp.float32(-1e30))         # [B, E]
    # NOTE: assumes every graph owns >= 1 edge (PyTorch loop skips empty graphs).

    masked = (scores[:, None, :, :] + maskadd[None, :, None, :])      # [NH, B, S, E]
    masked = masked.reshape(NH, B * S, E)                             # sublane-only reshape

    m = jnp.max(masked, axis=-1, keepdims=True)
    pexp = jnp.exp(masked - m)
    denom = jnp.sum(pexp, axis=-1, keepdims=True)
    probs = pexp * pl.reciprocal(denom, approx=True)                  # EUP slot

    attended = jnp.einsum("nre,nde->nrd", probs, vh_t,
                          preferred_element_type=f32)                 # [NH, B*S, HD]

    # out_proj decomposed per head (batched matmul + head sum)
    wo_h = w64("wo").reshape(NH, HD, H)
    tmp = jnp.einsum("nrd,ndo->nro", attended, wo_h,
                     preferred_element_type=f32)                      # [NH, B*S, H]
    repr_rows = jnp.sum(tmp, axis=0) + bo                             # [B*S, H], rows (b, s)

    # final_mlp: Linear(S*H, H) as a sum of per-seed [B,H]x[H,H] products
    # (sublane-only split [B*S,H] -> [B,S,H]; no permutation machinery)
    repr_bsh = repr_rows.reshape(B, S, H)
    f1_off = W64_OFF["f_w1"][0]
    h1 = f_b1
    for s in range(S):
        h1 = h1 + jnp.dot(repr_bsh[:, s, :],
                          w64_ref[f1_off + s * H: f1_off + (s + 1) * H, :H],
                          preferred_element_type=f32)
    h1 = jax.nn.silu(h1)                                              # [B, H]
    graph_repr = jnp.dot(h1, w64("f_w2"), preferred_element_type=f32) + f_b2

    # ---- output_mlp (Dropout == identity in eval) ----
    z = jax.nn.silu(jnp.dot(graph_repr, w64("o_w1"), preferred_element_type=f32) + o_b1)
    z = jax.nn.silu(jnp.dot(z, w64("o_w2"), preferred_element_type=f32) + o_b2)
    out_ref[...] = jnp.dot(z, w64("o_w3"), preferred_element_type=f32) + o_b3


# =====================================================================
# Parameters (deterministic synthetic init; shapes from the module __init__)
# =====================================================================
def _linear(key, fan_in, fan_out):
    kw, kb = jax.random.split(key)
    w = jax.random.normal(kw, (fan_in, fan_out), jnp.float32) * 0.05
    b = jax.random.normal(kb, (1, fan_out), jnp.float32) * 0.05
    return w, b


def _place(table, off_map, name, arr):
    s, r, c = off_map[name]
    assert arr.shape == (r, c), (name, arr.shape, (r, c))
    return table.at[s:s + r, :c].set(arr)


def pack_params(raw):
    """Repack torch-layout params into the fused-kernel operand layout."""
    H, NH, HD, S = HIDDEN_DIM, NUM_HEADS, HEAD_DIM, NUM_SEEDS

    # edge_mlp layer-1 weight split so the [x_src|x_dst|edge_attr] concat never
    # materialises: enf @ W1 == x_src@W_src + x_dst@W_dst + edge_attr@W_attr
    w_src = raw["e_w1"][:NODE_DIM]                       # [node_dim, 2H]
    w_dst = raw["e_w1"][NODE_DIM:2 * NODE_DIM]
    w1_sd = jnp.concatenate([w_src, w_dst], axis=1)      # [node_dim, 4H]
    w1_attr = raw["e_w1"][2 * NODE_DIM:]                 # [edge_dim, 2H]

    # k|v fused on the lane axis for one lane-dense projection matmul
    w_kv = jnp.concatenate([raw["wk"], raw["wv"]], axis=1)            # [H, 2H]

    # q = seeds @ Wq is parameter-only -> precompute head-major, fold in 1/sqrt(HD)
    q2 = raw["seeds"] @ raw["wq"]                                     # [S, H]
    q_h = jnp.transpose(q2.reshape(S, NH, HD), (1, 0, 2)) * (HD ** -0.5)
    q_h_flat = q_h.reshape(NH * S, HD)                                # [NH*S, HD]

    biases = jnp.zeros((16, 2 * H), jnp.float32)
    for i, name in enumerate(_BIAS_ORDER):
        b = raw[name]
        biases = biases.at[i, :b.shape[1]].set(b[0])

    w64_tbl = jnp.zeros((W64_ROWS, HIDDEN_DIM), jnp.float32)
    for name, arr in (("e_w2", raw["e_w2"]), ("e_w3", raw["e_w3"]),
                      ("wo", raw["wo"]), ("f_w1", raw["f_w1"]),
                      ("f_w2", raw["f_w2"]), ("o_w1", raw["o_w1"]),
                      ("o_w2", raw["o_w2"]), ("o_w3", raw["o_w3"]),
                      ("q_h", q_h_flat)):
        w64_tbl = _place(w64_tbl, W64_OFF, name, arr)

    w128_tbl = jnp.zeros((W128_ROWS, 2 * HIDDEN_DIM), jnp.float32)
    for name, arr in (("w1_attr", w1_attr), ("w_kv", w_kv), ("biases", biases)):
        w128_tbl = _place(w128_tbl, W128_OFF, name, arr)

    return {"w1_sd": w1_sd, "w64": w64_tbl, "w128": w128_tbl}


def init_params(key):
    H, S = HIDDEN_DIM, NUM_SEEDS
    ks = jax.random.split(key, 16)
    raw = {}
    # EnhancedEdgeEmbedding (granularity='atom'); coord_mlp params are dead
    # (identity encoder + pooling ignores edge_coords) and therefore omitted.
    raw["e_w1"], raw["e_b1"] = _linear(ks[0], EDGE_IN_DIM, 2 * H)
    raw["e_w2"], raw["e_b2"] = _linear(ks[1], 2 * H, H)
    raw["e_w3"], raw["e_b3"] = _linear(ks[2], H, H)
    # MultiGranularityGlobalPooling (its LayerNorm exists in __init__ but is unused)
    raw["seeds"] = jax.random.normal(ks[5], (S, H), jnp.float32)
    raw["wq"] = jax.random.normal(ks[6], (H, H), jnp.float32) * 0.05
    raw["wk"] = jax.random.normal(ks[7], (H, H), jnp.float32) * 0.05
    raw["wv"] = jax.random.normal(ks[8], (H, H), jnp.float32) * 0.05
    raw["wo"], raw["bo"] = _linear(ks[9], H, H)
    raw["f_w1"], raw["f_b1"] = _linear(ks[10], S * H, H)
    raw["f_w2"], raw["f_b2"] = _linear(ks[11], H, H)
    # output_mlp
    raw["o_w1"], raw["o_b1"] = _linear(ks[12], H, H)
    raw["o_w2"], raw["o_b2"] = _linear(ks[13], H, H // 2)
    raw["o_w3"], raw["o_b3"] = _linear(ks[14], H // 2, OUTPUT_DIM)
    return pack_params(raw)


# =====================================================================
# Full forward pass: a single fused pallas_call (no grid, whole-array VMEM)
# =====================================================================
@jax.jit
def enhanced_esa3d_forward(p, x, pos, edge_index, edge_attr, block_ids, batch):
    # TODO(synk): pos / block_ids feed only the (missing) encoder blocks and the
    # dead coord_mlp path; they are accepted for interface fidelity but unused.
    del pos, block_ids
    src = edge_index[0].astype(jnp.int32)
    dst = edge_index[1].astype(jnp.int32)
    edge_batch = batch.astype(jnp.int32)[src]    # mirrors data.batch[edge_index[0]]
    idx = jnp.stack([src, dst, edge_batch], axis=0)                   # [3, E] int32

    vmem_spec = pl.BlockSpec(memory_space=pltpu.MemorySpace.VMEM)
    out = pl.pallas_call(
        esa3d_fused_kernel,
        out_shape=jax.ShapeDtypeStruct((BATCH_SIZE, OUTPUT_DIM), jnp.float32),
        in_specs=[vmem_spec] * 6,
        out_specs=vmem_spec,
    )(x, edge_attr, idx, p["w1_sd"], p["w64"], p["w128"])
    return out                                                        # [B, output_dim]


# =====================================================================
if __name__ == "__main__":
    key = jax.random.PRNGKey(0)
    k_x, k_attr, k_pos, k_params = jax.random.split(key, 4)

    # synthetic PyG-style "data"
    x = jax.random.normal(k_x, (N_NODES, NODE_DIM), jnp.float32)
    pos = jax.random.normal(k_pos, (N_NODES, 3), jnp.float32)
    edge_attr = jax.random.normal(k_attr, (N_EDGES, EDGE_DIM), jnp.float32)
    src = jnp.arange(N_EDGES, dtype=jnp.int32) % N_NODES
    dst = (jnp.arange(N_EDGES, dtype=jnp.int32) * 7 + 3) % N_NODES
    edge_index = jnp.stack([src, dst], axis=0)                        # [2, E]
    block_ids = jnp.arange(N_NODES, dtype=jnp.int32) // 4             # [N]
    batch = (jnp.arange(N_NODES, dtype=jnp.int32) >= (N_NODES // 2)).astype(jnp.int32)

    params = init_params(k_params)

    out = enhanced_esa3d_forward(params, x, pos, edge_index, edge_attr,
                                 block_ids, batch)
    jax.block_until_ready(out)
    assert out.shape == (BATCH_SIZE, OUTPUT_DIM)
    assert bool(jnp.all(jnp.isfinite(out)))
    print("KERNEL_OK")
</pallas_src>

<mosaic_0001>
module attributes {stable_mosaic.version = 11 : i64} {
  func.func @esa3d_fused_kernel(%arg0: memref<16x16xf32, #tpu.memory_space<vmem>>, %arg1: memref<32x8xf32, #tpu.memory_space<vmem>>, %arg2: memref<3x32xi32, #tpu.memory_space<vmem>>, %arg3: memref<16x256xf32, #tpu.memory_space<vmem>>, %arg4: memref<1056x64xf32, #tpu.memory_space<vmem>>, %arg5: memref<88x128xf32, #tpu.memory_space<vmem>>, %arg6: memref<2x1xf32, #tpu.memory_space<vmem>>) attributes {dimension_semantics = [], scalar_prefetch = 0 : i64, scratch_operands = 0 : i64, tpu.core_type = #tpu.core_type<tc>} {
    %c72 = arith.constant 72 : index
    %c0 = arith.constant 0 : index
    %0 = vector.load %arg5[%c72, %c0] : memref<88x128xf32, #tpu.memory_space<vmem>>, vector<16x128xf32>
    %1 = vector.extract_strided_slice %0 {offsets = [0, 0], sizes = [1, 128], strides = [1, 1]} : vector<16x128xf32> to vector<1x128xf32>
    %2 = vector.extract_strided_slice %0 {offsets = [1, 0], sizes = [1, 64], strides = [1, 1]} : vector<16x128xf32> to vector<1x64xf32>
    %3 = vector.extract_strided_slice %0 {offsets = [2, 0], sizes = [1, 64], strides = [1, 1]} : vector<16x128xf32> to vector<1x64xf32>
    %4 = vector.extract_strided_slice %0 {offsets = [3, 0], sizes = [1, 64], strides = [1, 1]} : vector<16x128xf32> to vector<1x64xf32>
    %5 = vector.extract_strided_slice %0 {offsets = [4, 0], sizes = [1, 64], strides = [1, 1]} : vector<16x128xf32> to vector<1x64xf32>
    %6 = vector.extract_strided_slice %0 {offsets = [5, 0], sizes = [1, 64], strides = [1, 1]} : vector<16x128xf32> to vector<1x64xf32>
    %7 = vector.extract_strided_slice %0 {offsets = [6, 0], sizes = [1, 64], strides = [1, 1]} : vector<16x128xf32> to vector<1x64xf32>
    %8 = vector.extract_strided_slice %0 {offsets = [7, 0], sizes = [1, 32], strides = [1, 1]} : vector<16x128xf32> to vector<1x32xf32>
    %9 = vector.extract_strided_slice %0 {offsets = [8, 0], sizes = [1, 1], strides = [1, 1]} : vector<16x128xf32> to vector<1x1xf32>
    %c0_0 = arith.constant 0 : index
    %c0_1 = arith.constant 0 : index
    %10 = vector.load %arg2[%c0_0, %c0_1] : memref<3x32xi32, #tpu.memory_space<vmem>>, vector<3x32xi32>
    %11 = vector.extract_strided_slice %10 {offsets = [0, 0], sizes = [1, 32], strides = [1, 1]} : vector<3x32xi32> to vector<1x32xi32>
    %12 = vector.extract_strided_slice %10 {offsets = [1, 0], sizes = [1, 32], strides = [1, 1]} : vector<3x32xi32> to vector<1x32xi32>
    %13 = vector.extract_strided_slice %10 {offsets = [2, 0], sizes = [1, 32], strides = [1, 1]} : vector<3x32xi32> to vector<1x32xi32>
    %14 = tpu.iota {dimensions = array<i32: 0>} : vector<32x32xi32>
    %15 = vector.broadcast %11 : vector<1x32xi32> to vector<32x32xi32>
    %16 = arith.cmpi eq, %14, %15 : vector<32x32xi32>
    %c16_i32 = arith.constant 16 : i32
    %17 = vector.broadcast %c16_i32 : i32 to vector<1x32xi32>
    %18 = arith.addi %12, %17 : vector<1x32xi32>
    %19 = vector.broadcast %18 : vector<1x32xi32> to vector<32x32xi32>
    %20 = arith.cmpi eq, %14, %19 : vector<32x32xi32>
    %21 = arith.ori %16, %20 : vector<32x32xi1>
    %22 = arith.extui %21 : vector<32x32xi1> to vector<32x32xi32>
    %23 = arith.sitofp %22 : vector<32x32xi32> to vector<32x32xf32>
    %c0_2 = arith.constant 0 : index
    %c0_3 = arith.constant 0 : index
    %24 = vector.load %arg0[%c0_2, %c0_3] : memref<16x16xf32, #tpu.memory_space<vmem>>, vector<16x16xf32>
    %c0_4 = arith.constant 0 : index
    %c0_5 = arith.constant 0 : index
    %25 = vector.load %arg3[%c0_4, %c0_5] : memref<16x256xf32, #tpu.memory_space<vmem>>, vector<16x256xf32>
    %cst = arith.constant dense<0.000000e+00> : vector<16x256xf32>
    %26 = tpu.matmul %24, %25, %cst {dimension_numbers = #tpu.dot_dimension_numbers<[1], [0], [0], [1], [0, 0, 1, 1], [], []>} : vector<16x16xf32>, vector<16x256xf32>, vector<16x256xf32> -> vector<16x256xf32>
    %27 = vector.extract_strided_slice %26 {offsets = [0, 0], sizes = [16, 128], strides = [1, 1]} : vector<16x256xf32> to vector<16x128xf32>
    %28 = vector.extract_strided_slice %26 {offsets = [0, 128], sizes = [16, 128], strides = [1, 1]} : vector<16x256xf32> to vector<16x128xf32>
    %29 = tpu.concatenate %27, %28 in 0 : vector<16x128xf32>, vector<16x128xf32> -> vector<32x128xf32>
    %30 = tpu.transpose %23, [1, 0] : vector<32x32xf32> -> vector<32x32xf32>
    %cst_6 = arith.constant dense<0.000000e+00> : vector<32x128xf32>
    %31 = tpu.matmul %30, %29, %cst_6 {dimension_numbers = #tpu.dot_dimension_numbers<[1], [0], [0], [1], [0, 0, 1, 1], [], []>} : vector<32x32xf32>, vector<32x128xf32>, vector<32x128xf32> -> vector<32x128xf32>
    %c0_7 = arith.constant 0 : index
    %c0_8 = arith.constant 0 : index
    %32 = vector.load %arg1[%c0_7, %c0_8] : memref<32x8xf32, #tpu.memory_space<vmem>>, vector<32x8xf32>
    %c0_9 = arith.constant 0 : index
    %c0_10 = arith.constant 0 : index
    %33 = vector.load %arg5[%c0_9, %c0_10] : memref<88x128xf32, #tpu.memory_space<vmem>>, vector<8x128xf32>
    %cst_11 = arith.constant dense<0.000000e+00> : vector<32x128xf32>
    %34 = tpu.matmul %32, %33, %cst_11 {dimension_numbers = #tpu.dot_dimension_numbers<[1], [0], [0], [1], [0, 0, 1, 1], [], []>} : vector<32x8xf32>, vector<8x128xf32>, vector<32x128xf32> -> vector<32x128xf32>
    %35 = arith.addf %31, %34 : vector<32x128xf32>
    %36 = vector.broadcast %1 : vector<1x128xf32> to vector<32x128xf32>
    %37 = arith.addf %35, %36 : vector<32x128xf32>
    %38 = arith.negf %37 : vector<32x128xf32>
    %39 = math.exp %38 : vector<32x128xf32>
    %cst_12 = arith.constant 1.000000e+00 : f32
    %40 = vector.broadcast %cst_12 : f32 to vector<32x128xf32>
    %41 = arith.addf %40, %39 : vector<32x128xf32>
    %42 = arith.divf %40, %41 : vector<32x128xf32>
    %43 = arith.mulf %37, %42 : vector<32x128xf32>
    %c0_13 = arith.constant 0 : index
    %c0_14 = arith.constant 0 : index
    %44 = vector.load %arg4[%c0_13, %c0_14] : memref<1056x64xf32, #tpu.memory_space<vmem>>, vector<128x64xf32>
    %cst_15 = arith.constant dense<0.000000e+00> : vector<32x64xf32>
    %45 = tpu.matmul %43, %44, %cst_15 {dimension_numbers = #tpu.dot_dimension_numbers<[1], [0], [0], [1], [0, 0, 1, 1], [], []>} : vector<32x128xf32>, vector<128x64xf32>, vector<32x64xf32> -> vector<32x64xf32>
    %46 = vector.broadcast %2 : vector<1x64xf32> to vector<32x64xf32>
    %47 = arith.addf %45, %46 : vector<32x64xf32>
    %48 = arith.negf %47 : vector<32x64xf32>
    %49 = math.exp %48 : vector<32x64xf32>
    %cst_16 = arith.constant 1.000000e+00 : f32
    %50 = vector.broadcast %cst_16 : f32 to vector<32x64xf32>
    %51 = arith.addf %50, %49 : vector<32x64xf32>
    %52 = arith.divf %50, %51 : vector<32x64xf32>
    %53 = arith.mulf %47, %52 : vector<32x64xf32>
    %c128 = arith.constant 128 : index
    %c0_17 = arith.constant 0 : index
    %54 = vector.load %arg4[%c128, %c0_17] : memref<1056x64xf32, #tpu.memory_space<vmem>>, vector<64x64xf32>
    %cst_18 = arith.constant dense<0.000000e+00> : vector<32x64xf32>
    %55 = tpu.matmul %53, %54, %cst_18 {dimension_numbers = #tpu.dot_dimension_numbers<[1], [0], [0], [1], [0, 0, 1, 1], [], []>} : vector<32x64xf32>, vector<64x64xf32>, vector<32x64xf32> -> vector<32x64xf32>
    %56 = vector.broadcast %3 : vector<1x64xf32> to vector<32x64xf32>
    %57 = arith.addf %55, %56 : vector<32x64xf32>
    %c8 = arith.constant 8 : index
    %c0_19 = arith.constant 0 : index
    %58 = vector.load %arg5[%c8, %c0_19] : memref<88x128xf32, #tpu.memory_space<vmem>>, vector<64x128xf32>
    %cst_20 = arith.constant dense<0.000000e+00> : vector<32x128xf32>
    %59 = tpu.matmul %57, %58, %cst_20 {dimension_numbers = #tpu.dot_dimension_numbers<[1], [0], [0], [1], [0, 0, 1, 1], [], []>} : vector<32x64xf32>, vector<64x128xf32>, vector<32x128xf32> -> vector<32x128xf32>
    %60 = tpu.transpose %59, [1, 0] : vector<32x128xf32> -> vector<128x32xf32>
    %61 = vector.extract_strided_slice %60 {offsets = [0, 0], sizes = [64, 32], strides = [1, 1]} : vector<128x32xf32> to vector<64x32xf32>
    %62 = vector.shape_cast %61 : vector<64x32xf32> to vector<8x8x32xf32>
    %63 = vector.extract_strided_slice %60 {offsets = [64, 0], sizes = [64, 32], strides = [1, 1]} : vector<128x32xf32> to vector<64x32xf32>
    %64 = vector.shape_cast %63 : vector<64x32xf32> to vector<8x8x32xf32>
    %c992 = arith.constant 992 : index
    %c0_21 = arith.constant 0 : index
    %65 = vector.load %arg4[%c992, %c0_21] : memref<1056x64xf32, #tpu.memory_space<vmem>>, vector<64x8xf32>
    %66 = vector.shape_cast %65 : vector<64x8xf32> to vector<8x8x8xf32>
    "tpu.trace_start"() <{level = 10 : i32, message = "nsd,nde->nse"}> : () -> ()
    %cst_22 = arith.constant dense<0.000000e+00> : vector<8x8x32xf32>
    %67 = tpu.matmul %66, %62, %cst_22 {dimension_numbers = #tpu.dot_dimension_numbers<[2], [1], [1], [2], [0, 0, 0, 1, 1, 2], [0], [0]>} : vector<8x8x8xf32>, vector<8x8x32xf32>, vector<8x8x32xf32> -> vector<8x8x32xf32>
    "tpu.trace_stop"() : () -> ()
    %68 = tpu.iota {dimensions = array<i32: 0>} : vector<2x32xi32>
    %69 = vector.broadcast %13 : vector<1x32xi32> to vector<2x32xi32>
    %70 = arith.cmpi eq, %68, %69 : vector<2x32xi32>
    %cst_23 = arith.constant 0.000000e+00 : f32
    %cst_24 = arith.constant -1.000000e+30 : f32
    %71 = vector.broadcast %cst_23 : f32 to vector<2x32xf32>
    %72 = vector.broadcast %cst_24 : f32 to vector<2x32xf32>
    %73 = arith.select %70, %71, %72 : vector<2x32xi1>, vector<2x32xf32>
    %74 = vector.shape_cast %67 : vector<8x8x32xf32> to vector<8x1x8x32xf32>
    %75 = vector.shape_cast %73 : vector<2x32xf32> to vector<1x2x1x32xf32>
    %76 = vector.broadcast %74 : vector<8x1x8x32xf32> to vector<8x2x8x32xf32>
    %77 = vector.broadcast %75 : vector<1x2x1x32xf32> to vector<8x2x8x32xf32>
    %78 = arith.addf %76, %77 : vector<8x2x8x32xf32>
    %79 = vector.shape_cast %78 : vector<8x2x8x32xf32> to vector<8x16x32xf32>
    %cst_25 = arith.constant dense<0xFF800000> : vector<8x16xf32>
    %80 = vector.multi_reduction <maximumf>, %79, %cst_25 [2] : vector<8x16x32xf32> to vector<8x16xf32>
    %81 = vector.shape_cast %80 : vector<8x16xf32> to vector<8x16x1xf32>
    %82 = vector.broadcast %81 : vector<8x16x1xf32> to vector<8x16x32xf32>
    %83 = arith.subf %79, %82 : vector<8x16x32xf32>
    %84 = math.exp %83 : vector<8x16x32xf32>
    %cst_26 = arith.constant dense<0.000000e+00> : vector<8x16xf32>
    %85 = vector.multi_reduction <add>, %84, %cst_26 [2] : vector<8x16x32xf32> to vector<8x16xf32>
    %86 = vector.shape_cast %85 : vector<8x16xf32> to vector<8x16x1xf32>
    %87 = tpu.reciprocal %86 {approx = true} : vector<8x16x1xf32> -> vector<8x16x1xf32>
    %88 = vector.broadcast %87 : vector<8x16x1xf32> to vector<8x16x32xf32>
    %89 = arith.mulf %84, %88 : vector<8x16x32xf32>
    "tpu.trace_start"() <{level = 10 : i32, message = "nre,nde->nrd"}> : () -> ()
    %cst_27 = arith.constant dense<0.000000e+00> : vector<8x16x8xf32>
    %90 = tpu.matmul %89, %64, %cst_27 {dimension_numbers = #tpu.dot_dimension_numbers<[2], [2], [1], [1], [0, 0, 0, 1, 1, 1], [0], [0]>} : vector<8x16x32xf32>, vector<8x8x32xf32>, vector<8x16x8xf32> -> vector<8x16x8xf32>
    "tpu.trace_stop"() : () -> ()
    %c192 = arith.constant 192 : index
    %c0_28 = arith.constant 0 : index
    %91 = vector.load %arg4[%c192, %c0_28] : memref<1056x64xf32, #tpu.memory_space<vmem>>, vector<64x64xf32>
    %92 = vector.shape_cast %91 : vector<64x64xf32> to vector<8x8x64xf32>
    "tpu.trace_start"() <{level = 10 : i32, message = "nrd,ndo->nro"}> : () -> ()
    %cst_29 = arith.constant dense<0.000000e+00> : vector<8x16x64xf32>
    %93 = tpu.matmul %90, %92, %cst_29 {dimension_numbers = #tpu.dot_dimension_numbers<[2], [1], [1], [2], [0, 0, 0, 1, 1, 2], [0], [0]>} : vector<8x16x8xf32>, vector<8x8x64xf32>, vector<8x16x64xf32> -> vector<8x16x64xf32>
    "tpu.trace_stop"() : () -> ()
    %cst_30 = arith.constant dense<0.000000e+00> : vector<16x64xf32>
    %94 = vector.multi_reduction <add>, %93, %cst_30 [0] : vector<8x16x64xf32> to vector<16x64xf32>
    %95 = vector.broadcast %4 : vector<1x64xf32> to vector<16x64xf32>
    %96 = arith.addf %94, %95 : vector<16x64xf32>
    %97 = vector.shape_cast %96 : vector<16x64xf32> to vector<2x8x64xf32>
    %98 = vector.extract_strided_slice %97 {offsets = [0, 0, 0], sizes = [2, 1, 64], strides = [1, 1, 1]} : vector<2x8x64xf32> to vector<2x1x64xf32>
    %99 = vector.shape_cast %98 : vector<2x1x64xf32> to vector<2x64xf32>
    %c256 = arith.constant 256 : index
    %c0_31 = arith.constant 0 : index
    %100 = vector.load %arg4[%c256, %c0_31] : memref<1056x64xf32, #tpu.memory_space<vmem>>, vector<64x64xf32>
    %cst_32 = arith.constant dense<0.000000e+00> : vector<2x64xf32>
    %101 = tpu.matmul %99, %100, %cst_32 {dimension_numbers = #tpu.dot_dimension_numbers<[1], [0], [0], [1], [0, 0, 1, 1], [], []>} : vector<2x64xf32>, vector<64x64xf32>, vector<2x64xf32> -> vector<2x64xf32>
    %102 = vector.broadcast %5 : vector<1x64xf32> to vector<2x64xf32>
    %103 = arith.addf %102, %101 : vector<2x64xf32>
    %104 = vector.extract_strided_slice %97 {offsets = [0, 1, 0], sizes = [2, 1, 64], strides = [1, 1, 1]} : vector<2x8x64xf32> to vector<2x1x64xf32>
    %105 = vector.shape_cast %104 : vector<2x1x64xf32> to vector<2x64xf32>
    %c320 = arith.constant 320 : index
    %c0_33 = arith.constant 0 : index
    %106 = vector.load %arg4[%c320, %c0_33] : memref<1056x64xf32, #tpu.memory_space<vmem>>, vector<64x64xf32>
    %cst_34 = arith.constant dense<0.000000e+00> : vector<2x64xf32>
    %107 = tpu.matmul %105, %106, %cst_34 {dimension_numbers = #tpu.dot_dimension_numbers<[1], [0], [0], [1], [0, 0, 1, 1], [], []>} : vector<2x64xf32>, vector<64x64xf32>, vector<2x64xf32> -> vector<2x64xf32>
    %108 = arith.addf %103, %107 : vector<2x64xf32>
    %109 = vector.extract_strided_slice %97 {offsets = [0, 2, 0], sizes = [2, 1, 64], strides = [1, 1, 1]} : vector<2x8x64xf32> to vector<2x1x64xf32>
    %110 = vector.shape_cast %109 : vector<2x1x64xf32> to vector<2x64xf32>
    %c384 = arith.constant 384 : index
    %c0_35 = arith.constant 0 : index
    %111 = vector.load %arg4[%c384, %c0_35] : memref<1056x64xf32, #tpu.memory_space<vmem>>, vector<64x64xf32>
    %cst_36 = arith.constant dense<0.000000e+00> : vector<2x64xf32>
    %112 = tpu.matmul %110, %111, %cst_36 {dimension_numbers = #tpu.dot_dimension_numbers<[1], [0], [0], [1], [0, 0, 1, 1], [], []>} : vector<2x64xf32>, vector<64x64xf32>, vector<2x64xf32> -> vector<2x64xf32>
    %113 = arith.addf %108, %112 : vector<2x64xf32>
    %114 = vector.extract_strided_slice %97 {offsets = [0, 3, 0], sizes = [2, 1, 64], strides = [1, 1, 1]} : vector<2x8x64xf32> to vector<2x1x64xf32>
    %115 = vector.shape_cast %114 : vector<2x1x64xf32> to vector<2x64xf32>
    %c448 = arith.constant 448 : index
    %c0_37 = arith.constant 0 : index
    %116 = vector.load %arg4[%c448, %c0_37] : memref<1056x64xf32, #tpu.memory_space<vmem>>, vector<64x64xf32>
    %cst_38 = arith.constant dense<0.000000e+00> : vector<2x64xf32>
    %117 = tpu.matmul %115, %116, %cst_38 {dimension_numbers = #tpu.dot_dimension_numbers<[1], [0], [0], [1], [0, 0, 1, 1], [], []>} : vector<2x64xf32>, vector<64x64xf32>, vector<2x64xf32> -> vector<2x64xf32>
    %118 = arith.addf %113, %117 : vector<2x64xf32>
    %119 = vector.extract_strided_slice %97 {offsets = [0, 4, 0], sizes = [2, 1, 64], strides = [1, 1, 1]} : vector<2x8x64xf32> to vector<2x1x64xf32>
    %120 = vector.shape_cast %119 : vector<2x1x64xf32> to vector<2x64xf32>
    %c512 = arith.constant 512 : index
    %c0_39 = arith.constant 0 : index
    %121 = vector.load %arg4[%c512, %c0_39] : memref<1056x64xf32, #tpu.memory_space<vmem>>, vector<64x64xf32>
    %cst_40 = arith.constant dense<0.000000e+00> : vector<2x64xf32>
    %122 = tpu.matmul %120, %121, %cst_40 {dimension_numbers = #tpu.dot_dimension_numbers<[1], [0], [0], [1], [0, 0, 1, 1], [], []>} : vector<2x64xf32>, vector<64x64xf32>, vector<2x64xf32> -> vector<2x64xf32>
    %123 = arith.addf %118, %122 : vector<2x64xf32>
    %124 = vector.extract_strided_slice %97 {offsets = [0, 5, 0], sizes = [2, 1, 64], strides = [1, 1, 1]} : vector<2x8x64xf32> to vector<2x1x64xf32>
    %125 = vector.shape_cast %124 : vector<2x1x64xf32> to vector<2x64xf32>
    %c576 = arith.constant 576 : index
    %c0_41 = arith.constant 0 : index
    %126 = vector.load %arg4[%c576, %c0_41] : memref<1056x64xf32, #tpu.memory_space<vmem>>, vector<64x64xf32>
    %cst_42 = arith.constant dense<0.000000e+00> : vector<2x64xf32>
    %127 = tpu.matmul %125, %126, %cst_42 {dimension_numbers = #tpu.dot_dimension_numbers<[1], [0], [0], [1], [0, 0, 1, 1], [], []>} : vector<2x64xf32>, vector<64x64xf32>, vector<2x64xf32> -> vector<2x64xf32>
    %128 = arith.addf %123, %127 : vector<2x64xf32>
    %129 = vector.extract_strided_slice %97 {offsets = [0, 6, 0], sizes = [2, 1, 64], strides = [1, 1, 1]} : vector<2x8x64xf32> to vector<2x1x64xf32>
    %130 = vector.shape_cast %129 : vector<2x1x64xf32> to vector<2x64xf32>
    %c640 = arith.constant 640 : index
    %c0_43 = arith.constant 0 : index
    %131 = vector.load %arg4[%c640, %c0_43] : memref<1056x64xf32, #tpu.memory_space<vmem>>, vector<64x64xf32>
    %cst_44 = arith.constant dense<0.000000e+00> : vector<2x64xf32>
    %132 = tpu.matmul %130, %131, %cst_44 {dimension_numbers = #tpu.dot_dimension_numbers<[1], [0], [0], [1], [0, 0, 1, 1], [], []>} : vector<2x64xf32>, vector<64x64xf32>, vector<2x64xf32> -> vector<2x64xf32>
    %133 = arith.addf %128, %132 : vector<2x64xf32>
    %134 = vector.extract_strided_slice %97 {offsets = [0, 7, 0], sizes = [2, 1, 64], strides = [1, 1, 1]} : vector<2x8x64xf32> to vector<2x1x64xf32>
    %135 = vector.shape_cast %134 : vector<2x1x64xf32> to vector<2x64xf32>
    %c704 = arith.constant 704 : index
    %c0_45 = arith.constant 0 : index
    %136 = vector.load %arg4[%c704, %c0_45] : memref<1056x64xf32, #tpu.memory_space<vmem>>, vector<64x64xf32>
    %cst_46 = arith.constant dense<0.000000e+00> : vector<2x64xf32>
    %137 = tpu.matmul %135, %136, %cst_46 {dimension_numbers = #tpu.dot_dimension_numbers<[1], [0], [0], [1], [0, 0, 1, 1], [], []>} : vector<2x64xf32>, vector<64x64xf32>, vector<2x64xf32> -> vector<2x64xf32>
    %138 = arith.addf %133, %137 : vector<2x64xf32>
    %139 = arith.negf %138 : vector<2x64xf32>
    %140 = math.exp %139 : vector<2x64xf32>
    %cst_47 = arith.constant 1.000000e+00 : f32
    %141 = vector.broadcast %cst_47 : f32 to vector<2x64xf32>
    %142 = arith.addf %141, %140 : vector<2x64xf32>
    %143 = arith.divf %141, %142 : vector<2x64xf32>
    %144 = arith.mulf %138, %143 : vector<2x64xf32>
    %c768 = arith.constant 768 : index
    %c0_48 = arith.constant 0 : index
    %145 = vector.load %arg4[%c768, %c0_48] : memref<1056x64xf32, #tpu.memory_space<vmem>>, vector<64x64xf32>
    %cst_49 = arith.constant dense<0.000000e+00> : vector<2x64xf32>
    %146 = tpu.matmul %144, %145, %cst_49 {dimension_numbers = #tpu.dot_dimension_numbers<[1], [0], [0], [1], [0, 0, 1, 1], [], []>} : vector<2x64xf32>, vector<64x64xf32>, vector<2x64xf32> -> vector<2x64xf32>
    %147 = vector.broadcast %6 : vector<1x64xf32> to vector<2x64xf32>
    %148 = arith.addf %146, %147 : vector<2x64xf32>
    %c832 = arith.constant 832 : index
    %c0_50 = arith.constant 0 : index
    %149 = vector.load %arg4[%c832, %c0_50] : memref<1056x64xf32, #tpu.memory_space<vmem>>, vector<64x64xf32>
    %cst_51 = arith.constant dense<0.000000e+00> : vector<2x64xf32>
    %150 = tpu.matmul %148, %149, %cst_51 {dimension_numbers = #tpu.dot_dimension_numbers<[1], [0], [0], [1], [0, 0, 1, 1], [], []>} : vector<2x64xf32>, vector<64x64xf32>, vector<2x64xf32> -> vector<2x64xf32>
    %151 = vector.broadcast %7 : vector<1x64xf32> to vector<2x64xf32>
    %152 = arith.addf %150, %151 : vector<2x64xf32>
    %153 = arith.negf %152 : vector<2x64xf32>
    %154 = math.exp %153 : vector<2x64xf32>
    %cst_52 = arith.constant 1.000000e+00 : f32
    %155 = vector.broadcast %cst_52 : f32 to vector<2x64xf32>
    %156 = arith.addf %155, %154 : vector<2x64xf32>
    %157 = arith.divf %155, %156 : vector<2x64xf32>
    %158 = arith.mulf %152, %157 : vector<2x64xf32>
    %c896 = arith.constant 896 : index
    %c0_53 = arith.constant 0 : index
    %159 = vector.load %arg4[%c896, %c0_53] : memref<1056x64xf32, #tpu.memory_space<vmem>>, vector<64x32xf32>
    %cst_54 = arith.constant dense<0.000000e+00> : vector<2x32xf32>
    %160 = tpu.matmul %158, %159, %cst_54 {dimension_numbers = #tpu.dot_dimension_numbers<[1], [0], [0], [1], [0, 0, 1, 1], [], []>} : vector<2x64xf32>, vector<64x32xf32>, vector<2x32xf32> -> vector<2x32xf32>
    %161 = vector.broadcast %8 : vector<1x32xf32> to vector<2x32xf32>
    %162 = arith.addf %160, %161 : vector<2x32xf32>
    %163 = arith.negf %162 : vector<2x32xf32>
    %164 = math.exp %163 : vector<2x32xf32>
    %cst_55 = arith.constant 1.000000e+00 : f32
    %165 = vector.broadcast %cst_55 : f32 to vector<2x32xf32>
    %166 = arith.addf %165, %164 : vector<2x32xf32>
    %167 = arith.divf %165, %166 : vector<2x32xf32>
    %168 = arith.mulf %162, %167 : vector<2x32xf32>
    %c960 = arith.constant 960 : index
    %c0_56 = arith.constant 0 : index
    %169 = vector.load %arg4[%c960, %c0_56] : memref<1056x64xf32, #tpu.memory_space<vmem>>, vector<32x1xf32>
    %cst_57 = arith.constant dense<0.000000e+00> : vector<2x1xf32>
    %170 = tpu.matmul %168, %169, %cst_57 {dimension_numbers = #tpu.dot_dimension_numbers<[1], [0], [0], [1], [0, 0, 1, 1], [], []>} : vector<2x32xf32>, vector<32x1xf32>, vector<2x1xf32> -> vector<2x1xf32>
    %171 = vector.broadcast %9 : vector<1x1xf32> to vector<2x1xf32>
    %172 = arith.addf %170, %171 : vector<2x1xf32>
    %c0_58 = arith.constant 0 : index
    %c0_59 = arith.constant 0 : index
    %173 = vector.load %arg6[%c0_58, %c0_59] : memref<2x1xf32, #tpu.memory_space<vmem>>, vector<2x1xf32>
    tpu.vector_store %arg6[%c0_58, %c0_59], %172 {strides = array<i32>} : memref<2x1xf32, #tpu.memory_space<vmem>>, vector<2x1xf32>,
    return
  }
}

</mosaic_0001>

<llo_original>
// kernel: enhanced_esa3d_forward.1
$region0: #{enhanced_esa3d_forward.1}
  #allocation0 [shape = 'u32[]', space=smem, size = 0x4, offset = 0x4, fixed_abs, tag = 'smem constant byte address 0x4 - core index']
  #allocation1 [shape = 'u32[144,128]{1,0:T(1,128)}', space=vmem, size = 0x12000, scoped, tag = 'internal scratch']
  %s0 = inlined_call_operand.vmem [shape: f32[16,16], index: 0, kind: input, shape index: {}]
  %s1 = inlined_call_operand.vmem [shape: f32[32,8], index: 1, kind: input, shape index: {}]
  %s2 = inlined_call_operand.vmem [shape: s32[3,32], index: 2, kind: input, shape index: {}]
  %s3 = inlined_call_operand.vmem [shape: f32[16,256], index: 3, kind: input, shape index: {}]
  %s4 = inlined_call_operand.vmem [shape: f32[1056,64], index: 4, kind: input, shape index: {}]
  %s5 = inlined_call_operand.vmem [shape: f32[88,128], index: 5, kind: input, shape index: {}]
  %s6 = inlined_call_operand.vmem [shape: f32[2,1], index: 6, kind: output, shape index: {}]
  %s7 = sld [smem:[#allocation0]]
  $region34: #{enhanced_esa3d_forward.1} parent=0
    _
  %s9 = ssub.s32 1, %s7
  %s10 = scalar_select 0, %s9, %s7
  // Predicated region
  $region2: #{enhanced_esa3d_forward.1} parent=0 // pred_check
    _
  $region3: #{enhanced_esa3d_forward.1} parent=0 // pred_check_branch
    %12 = sbr.rel (0) target = $region5
  $region4: #{enhanced_esa3d_forward.1} parent=0 // pred_region
    _
  $region5: #{enhanced_esa3d_forward.1} parent=0 // pred_fallthru
    _
  // Predicated region
  $region6: #{enhanced_esa3d_forward.1} parent=0 // pred_check
    _
  $region7: #{enhanced_esa3d_forward.1} parent=0 // pred_check_branch
    %14 = sbr.rel (0) target = $region9
  $region8: #{enhanced_esa3d_forward.1} parent=0 // pred_region
    _
  $region9: #{enhanced_esa3d_forward.1} parent=0 // pred_fallthru
    _
  // Predicated region
  $region10: #{enhanced_esa3d_forward.1} parent=0 // pred_check
    _
  $region11: #{enhanced_esa3d_forward.1} parent=0 // pred_check_branch
    %16 = sbr.rel (0) target = $region13
  $region12: #{enhanced_esa3d_forward.1} parent=0 // pred_region
    _
  $region13: #{enhanced_esa3d_forward.1} parent=0 // pred_fallthru
    _
  // Predicated region
  $region14: #{enhanced_esa3d_forward.1} parent=0 // pred_check
    _
  $region15: #{enhanced_esa3d_forward.1} parent=0 // pred_check_branch
    %18 = sbr.rel (0) target = $region17
  $region16: #{enhanced_esa3d_forward.1} parent=0 // pred_region
    _
  $region17: #{enhanced_esa3d_forward.1} parent=0 // pred_fallthru
    _
  // Predicated region
  $region18: #{enhanced_esa3d_forward.1} parent=0 // pred_check
    _
  $region19: #{enhanced_esa3d_forward.1} parent=0 // pred_check_branch
    %20 = sbr.rel (0) target = $region21
  $region20: #{enhanced_esa3d_forward.1} parent=0 // pred_region
    _
  $region21: #{enhanced_esa3d_forward.1} parent=0 // pred_fallthru
    _
  // Predicated region
  $region22: #{enhanced_esa3d_forward.1} parent=0 // pred_check
    _
  $region23: #{enhanced_esa3d_forward.1} parent=0 // pred_check_branch
    %22 = sbr.rel (0) target = $region25
  $region24: #{enhanced_esa3d_forward.1} parent=0 // pred_region
    _
  $region25: #{enhanced_esa3d_forward.1} parent=0 // pred_fallthru
    _
  %v23 = vld [vmem:[%s5 + $0x48] sm:$0xff]
  %v24 = vld [vmem:[%s5 + $0x50] sm:$0xff]
  %v25 = vld [vmem:[%s2] sm:$0x7]
  %v26 = vlaneseq
  %v27 = vshrl.u32 %v26, 7
  %v28 = vadd.s32 %v27, 8
  %v29 = vadd.s32 %v27, 16
  %v30 = vadd.s32 %v27, 24
  %v31 = vlaneseq
  %v32 = vshrl.u32 %v31, 7
  %v33 = vsub.s32 0, %v32
  %v34 = vrot.slane %v25, %v33
  %vm35 = vcmp.eq.s32.totalorder %v27, %v34
  %vm36 = vcmp.eq.s32.totalorder %v28, %v34
  %vm37 = vcmp.eq.s32.totalorder %v29, %v34
  %vm38 = vcmp.eq.s32.totalorder %v30, %v34
  %v39 = vadd.s32 %v25, 16
  %v40 = vlaneseq
  %v41 = vshrl.u32 %v40, 7
  %v42 = vsub.s32 1, %v41
  %v43 = vrot.slane %v39, %v42
  %vm44 = vcmp.eq.s32.totalorder %v27, %v43
  %vm45 = vcmp.eq.s32.totalorder %v28, %v43
  %vm46 = vcmp.eq.s32.totalorder %v29, %v43
  %vm47 = vcmp.eq.s32.totalorder %v30, %v43
  %vm48 = vmor %vm35, %vm44
  %vm49 = vmor %vm36, %vm45
  %vm50 = vmor %vm37, %vm46
  %vm51 = vmor %vm38, %vm47
  %v52 = vsel %vm48, 1, 0
  %v53 = vsel %vm49, 1, 0
  %v54 = vsel %vm50, 1, 0
  %v55 = vsel %vm51, 1, 0
  %v56 = vcvt.s32.f32 %v52
  %v57 = vcvt.s32.f32 %v53
  %v58 = vcvt.s32.f32 %v54
  %v59 = vcvt.s32.f32 %v55
  %v60 = vld [vmem:[%s0] sm:$0xff]
  %v61 = vld [vmem:[%s0 + $0x8] sm:$0xff]
  %v62 = vld [vmem:[%s3] sm:$0xff]
  %v63 = vld [vmem:[%s3 + $0x8] sm:$0xff]
  %v64 = vld [vmem:[%s3 + $0x10] sm:$0xff]
  %v65 = vld [vmem:[%s3 + $0x18] sm:$0xff]
  %vm66 = vcmask 130048
  %v68 = vsel %vm66, %v60, 0
  %v71 = vsel %vm66, %v61, 0
  %73 = vmatprep.subr.mxu0 %v63
  %74 = vmatpush1.msra.mxu0 %v62
  %75 = vmatprep.subr.mxu0 %v65
  %76 = vmatpush1.msra.mxu0 %v64
  %77 = vmatprep.subr.mxu0 0.0
  %78 = vmatpush1.msra.mxu0 0.0
  %79 = vmatprep.subr.mxu0 0.0
  %80 = vmatpush1.msra.mxu0 0.0
  %81 = vmatprep.subr.mxu0 0.0
  %82 = vmatpush1.msra.mxu0 0.0
  %83 = vmatprep.subr.mxu0 0.0
  %84 = vmatpush1.msra.mxu0 0.0
  %85 = vmatprep.subr.mxu0 0.0
  %86 = vmatpush1.msra.mxu0 0.0
  %87 = vmatprep.subr.mxu0 0.0
  %88 = vmatpush1.msra.mxu0 0.0
  %89 = vmatprep.subr.mxu0 0.0
  %90 = vmatpush1.msra.mxu0 0.0
  %91 = vmatprep.subr.mxu0 0.0
  %92 = vmatpush1.msra.mxu0 0.0
  %93 = vmatprep.subr.mxu0 0.0
  %94 = vmatpush1.msra.mxu0 0.0
  %95 = vmatprep.subr.mxu0 0.0
  %96 = vmatpush1.msra.mxu0 0.0
  %97 = vmatprep.subr.mxu0 0.0
  %98 = vmatpush1.msra.mxu0 0.0
  %99 = vmatprep.subr.mxu0 0.0
  %100 = vmatpush1.msra.mxu0 0.0
  %101 = vmatprep.subr.mxu0 0.0
  %102 = vmatpush1.msra.mxu0 0.0
  %103 = vmatprep.subr.mxu0 0.0
  %104 = vmatpush1.msra.mxu0 0.0
  %105 = vmatprep.subr.mxu0 0.0
  %106 = vmatpush1.msra.mxu0 0.0
  %107 = vmatprep.subr.mxu0 0.0
  %108 = vmatpush1.msra.mxu0 0.0
  %109 = vmatprep.subr.mxu0 0.0
  %110 = vmatpush1.msra.mxu0 0.0
  %111 = vmatprep.subr.mxu0 0.0
  %112 = vmatpush1.msra.mxu0 0.0
  %113 = vmatprep.subr.mxu0 0.0
  %114 = vmatpush1.msra.mxu0 0.0
  %115 = vmatprep.subr.mxu0 0.0
  %116 = vmatpush1.msra.mxu0 0.0
  %117 = vmatprep.subr.mxu0 0.0
  %118 = vmatpush1.msra.mxu0 0.0
  %119 = vmatprep.subr.mxu0 0.0
  %120 = vmatpush1.msra.mxu0 0.0
  %121 = vmatprep.subr.mxu0 0.0
  %122 = vmatpush1.msra.mxu0 0.0
  %123 = vmatprep.subr.mxu0 0.0
  %124 = vmatpush1.msra.mxu0 0.0
  %125 = vmatprep.subr.mxu0 0.0
  %126 = vmatpush1.msra.mxu0 0.0
  %127 = vmatprep.subr.mxu0 0.0
  %128 = vmatpush1.msra.mxu0 0.0
  %129 = vmatprep.subr.mxu0 0.0
  %130 = vmatpush1.msra.mxu0 0.0
  %131 = vmatprep.subr.mxu0 0.0
  %132 = vmatpush1.msra.mxu0 0.0
  %133 = vmatprep.subr.mxu0 0.0
  %134 = vmatpush1.msra.mxu0 0.0
  %135 = vmatprep.subr.mxu0 0.0
  %136 = vmatpush1.msra.mxu0 0.0
  %137 = vmatprep.mubr.f32.mxu0 0.0
  %138 = vmatmul.mubr.f32.gmra.mrb[0].mxu0 %v68
  %v139 = vpop.f32.mrb[0].mxu0
  %v140 = vadd.f32 0.0, %v139
  %v141 = vpop.f32.mrb[0].mxu0
  %v142 = vadd.f32 0.0, %v141
  %143 = vmatprep.mubr.f32.mxu0 0.0
  %144 = vmatmul.mubr.f32.gmra.mrb[0].mxu0 %v71
  %v145 = vpop.f32.mrb[0].mxu0
  %v146 = vadd.f32 0.0, %v145
  %v147 = vpop.f32.mrb[0].mxu0
  %v148 = vadd.f32 0.0, %v147
  %149 = vdwg.mxu0
  %150 = vxpose.xlu0.b32.start [1/16] %v56, 128
  %151 = vxpose.xlu0.b32.cont [2/16] %v57, 128
  %152 = vxpose.xlu0.b32.cont [3/16] %v58, 128
  %153 = vxpose.xlu0.b32.cont [4/16] %v59, 128
  %154 = vxpose.xlu0.b32.cont [5/16] 0.0, 128
  %155 = vxpose.xlu0.b32.cont [6/16] 0.0, 128
  %156 = vxpose.xlu0.b32.cont [7/16] 0.0, 128
  %157 = vxpose.xlu0.b32.cont [8/16] 0.0, 128
  %158 = vxpose.xlu0.b32.cont [9/16] 0.0, 128
  %159 = vxpose.xlu0.b32.cont [10/16] 0.0, 128
  %160 = vxpose.xlu0.b32.cont [11/16] 0.0, 128
  %161 = vxpose.xlu0.b32.cont [12/16] 0.0, 128
  %162 = vxpose.xlu0.b32.cont [13/16] 0.0, 128
  %163 = vxpose.xlu0.b32.cont [14/16] 0.0, 128
  %164 = vxpose.xlu0.b32.cont [15/16] 0.0, 128
  %165 = vxpose.xlu0.b32.end [16/16] 0.0, 128
  %v166 = vpop.trf.xlu0
  %v167 = vpop.trf.xlu0
  %v168 = vpop.trf.xlu0
  %v169 = vpop.trf.xlu0
  %v170 = vpop.trf.xlu0
  %v171 = vpop.trf.xlu0
  %v172 = vpop.trf.xlu0
  %v173 = vpop.trf.xlu0
  %v174 = vpop.trf.xlu0
  %v175 = vpop.trf.xlu0
  %v176 = vpop.trf.xlu0
  %v177 = vpop.trf.xlu0
  %v178 = vpop.trf.xlu0
  %v179 = vpop.trf.xlu0
  %v180 = vpop.trf.xlu0
  %v181 = vpop.trf.xlu0
  %v182 = vld [vmem:[%s1] sm:$0xff]
  %v183 = vld [vmem:[%s1 + $0x8] sm:$0xff]
  %v184 = vld [vmem:[%s1 + $0x10] sm:$0xff]
  %v185 = vld [vmem:[%s1 + $0x18] sm:$0xff]
  %v186 = vld [vmem:[%s5] sm:$0xff]
  %vm187 = vcmask 64512
  %v189 = vsel %vm187, %v182, 0
  %v192 = vsel %vm187, %v183, 0
  %v195 = vsel %vm187, %v184, 0
  %v198 = vsel %vm187, %v185, 0
  %200 = vmatprep.subr.mxu0 0.0
  %201 = vmatpush1.msra.mxu0 %v186
  %202 = vmatprep.subr.mxu0 0.0
  %203 = vmatpush1.msra.mxu0 0.0
  %204 = vmatprep.subr.mxu0 0.0
  %205 = vmatpush1.msra.mxu0 0.0
  %206 = vmatprep.subr.mxu0 0.0
  %207 = vmatpush1.msra.mxu0 0.0
  %208 = vmatprep.subr.mxu0 0.0
  %209 = vmatpush1.msra.mxu0 0.0
  %210 = vmatprep.subr.mxu0 0.0
  %211 = vmatpush1.msra.mxu0 0.0
  %212 = vmatprep.subr.mxu0 0.0
  %213 = vmatpush1.msra.mxu0 0.0
  %214 = vmatprep.subr.mxu0 0.0
  %215 = vmatpush1.msra.mxu0 0.0
  %216 = vmatprep.subr.mxu0 0.0
  %217 = vmatpush1.msra.mxu0 0.0
  %218 = vmatprep.subr.mxu0 0.0
  %219 = vmatpush1.msra.mxu0 0.0
  %220 = vmatprep.subr.mxu0 0.0
  %221 = vmatpush1.msra.mxu0 0.0
  %222 = vmatprep.subr.mxu0 0.0
  %223 = vmatpush1.msra.mxu0 0.0
  %224 = vmatprep.subr.mxu0 0.0
  %225 = vmatpush1.msra.mxu0 0.0
  %226 = vmatprep.subr.mxu0 0.0
  %227 = vmatpush1.msra.mxu0 0.0
  %228 = vmatprep.subr.mxu0 0.0
  %229 = vmatpush1.msra.mxu0 0.0
  %230 = vmatprep.subr.mxu0 0.0
  %231 = vmatpush1.msra.mxu0 0.0
  %232 = vmatprep.subr.mxu0 0.0
  %233 = vmatpush1.msra.mxu0 0.0
  %234 = vmatprep.subr.mxu0 0.0
  %235 = vmatpush1.msra.mxu0 0.0
  %236 = vmatprep.subr.mxu0 0.0
  %237 = vmatpush1.msra.mxu0 0.0
  %238 = vmatprep.subr.mxu0 0.0
  %239 = vmatpush1.msra.mxu0 0.0
  %240 = vmatprep.subr.mxu0 0.0
  %241 = vmatpush1.msra.mxu0 0.0
  %242 = vmatprep.subr.mxu0 0.0
  %243 = vmatpush1.msra.mxu0 0.0
  %244 = vmatprep.subr.mxu0 0.0
  %245 = vmatpush1.msra.mxu0 0.0
  %246 = vmatprep.subr.mxu0 0.0
  %247 = vmatpush1.msra.mxu0 0.0
  %248 = vmatprep.subr.mxu0 0.0
  %249 = vmatpush1.msra.mxu0 0.0
  %250 = vmatprep.subr.mxu0 0.0
  %251 = vmatpush1.msra.mxu0 0.0
  %252 = vmatprep.subr.mxu0 0.0
  %253 = vmatpush1.msra.mxu0 0.0
  %254 = vmatprep.subr.mxu0 0.0
  %255 = vmatpush1.msra.mxu0 0.0
  %256 = vmatprep.subr.mxu0 0.0
  %257 = vmatpush1.msra.mxu0 0.0
  %258 = vmatprep.subr.mxu0 0.0
  %259 = vmatpush1.msra.mxu0 0.0
  %260 = vmatprep.subr.mxu0 0.0
  %261 = vmatpush1.msra.mxu0 0.0
  %262 = vmatprep.subr.mxu0 0.0
  %263 = vmatpush1.msra.mxu0 0.0
  %264 = vmatprep.mubr.f32.mxu0 0.0
  %265 = vmatmul.mubr.f32.gmra.mrb[0].mxu0 %v189
  %v266 = vpop.f32.mrb[0].mxu0
  %v267 = vadd.f32 0.0, %v266
  %v268 = vpop.f32.mrb[0].mxu0
  %269 = vmatprep.mubr.f32.mxu0 0.0
  %270 = vmatmul.mubr.f32.gmra.mrb[0].mxu0 %v192
  %v271 = vpop.f32.mrb[0].mxu0
  %v272 = vadd.f32 0.0, %v271
  %v273 = vpop.f32.mrb[0].mxu0
  %274 = vmatprep.mubr.f32.mxu0 0.0
  %275 = vmatmul.mubr.f32.gmra.mrb[0].mxu0 %v195
  %v276 = vpop.f32.mrb[0].mxu0
  %v277 = vadd.f32 0.0, %v276
  %v278 = vpop.f32.mrb[0].mxu0
  %279 = vmatprep.mubr.f32.mxu0 0.0
  %280 = vmatmul.mubr.f32.gmra.mrb[0].mxu0 %v198
  %v281 = vpop.f32.mrb[0].mxu0
  %v282 = vadd.f32 0.0, %v281
  %v283 = vpop.f32.mrb[0].mxu0
  %284 = vdwg.mxu0
  %vm285 = vcmask 261120
  %v287 = vsel %vm285, %v166, 0
  %v290 = vsel %vm285, %v167, 0
  %v293 = vsel %vm285, %v168, 0
  %v296 = vsel %vm285, %v169, 0
  %298 = vmatprep.subr.mxu0 0.0
  %299 = vmatpush1.msra.mxu0 %v140
  %300 = vmatprep.subr.mxu0 0.0
  %301 = vmatpush1.msra.mxu0 %v146
  %302 = vmatprep.subr.mxu0 0.0
  %303 = vmatpush1.msra.mxu0 %v142
  %304 = vmatprep.subr.mxu0 0.0
  %305 = vmatpush1.msra.mxu0 %v148
  %306 = vmatprep.subr.mxu0 0.0
  %307 = vmatpush1.msra.mxu0 0.0
  %308 = vmatprep.subr.mxu0 0.0
  %309 = vmatpush1.msra.mxu0 0.0
  %310 = vmatprep.subr.mxu0 0.0
  %311 = vmatpush1.msra.mxu0 0.0
  %312 = vmatprep.subr.mxu0 0.0
  %313 = vmatpush1.msra.mxu0 0.0
  %314 = vmatprep.subr.mxu0 0.0
  %315 = vmatpush1.msra.mxu0 0.0
  %316 = vmatprep.subr.mxu0 0.0
  %317 = vmatpush1.msra.mxu0 0.0
  %318 = vmatprep.subr.mxu0 0.0
  %319 = vmatpush1.msra.mxu0 0.0
  %320 = vmatprep.subr.mxu0 0.0
  %321 = vmatpush1.msra.mxu0 0.0
  %322 = vmatprep.subr.mxu0 0.0
  %323 = vmatpush1.msra.mxu0 0.0
  %324 = vmatprep.subr.mxu0 0.0
  %325 = vmatpush1.msra.mxu0 0.0
  %326 = vmatprep.subr.mxu0 0.0
  %327 = vmatpush1.msra.mxu0 0.0
  %328 = vmatprep.subr.mxu0 0.0
  %329 = vmatpush1.msra.mxu0 0.0
  %330 = vmatprep.subr.mxu0 0.0
  %331 = vmatpush1.msra.mxu0 0.0
  %332 = vmatprep.subr.mxu0 0.0
  %333 = vmatpush1.msra.mxu0 0.0
  %334 = vmatprep.subr.mxu0 0.0
  %335 = vmatpush1.msra.mxu0 0.0
  %336 = vmatprep.subr.mxu0 0.0
  %337 = vmatpush1.msra.mxu0 0.0
  %338 = vmatprep.subr.mxu0 0.0
  %339 = vmatpush1.msra.mxu0 0.0
  %340 = vmatprep.subr.mxu0 0.0
  %341 = vmatpush1.msra.mxu0 0.0
  %342 = vmatprep.subr.mxu0 0.0
  %343 = vmatpush1.msra.mxu0 0.0
  %344 = vmatprep.subr.mxu0 0.0
  %345 = vmatpush1.msra.mxu0 0.0
  %346 = vmatprep.subr.mxu0 0.0
  %347 = vmatpush1.msra.mxu0 0.0
  %348 = vmatprep.subr.mxu0 0.0
  %349 = vmatpush1.msra.mxu0 0.0
  %350 = vmatprep.subr.mxu0 0.0
  %351 = vmatpush1.msra.mxu0 0.0
  %352 = vmatprep.subr.mxu0 0.0
  %353 = vmatpush1.msra.mxu0 0.0
  %354 = vmatprep.subr.mxu0 0.0
  %355 = vmatpush1.msra.mxu0 0.0
  %356 = vmatprep.subr.mxu0 0.0
  %357 = vmatpush1.msra.mxu0 0.0
  %358 = vmatprep.subr.mxu0 0.0
  %359 = vmatpush1.msra.mxu0 0.0
  %360 = vmatprep.subr.mxu0 0.0
  %361 = vmatpush1.msra.mxu0 0.0
  %362 = vmatprep.mubr.f32.mxu0 0.0
  %363 = vmatmul.mubr.f32.gmra.mrb[0].mxu0 %v287
  %v364 = vpop.f32.mrb[0].mxu0
  %v365 = vadd.f32 %v267, %v364
  %v366 = vpop.f32.mrb[0].mxu0
  %367 = vmatprep.mubr.f32.mxu0 0.0
  %368 = vmatmul.mubr.f32.gmra.mrb[0].mxu0 %v290
  %v369 = vpop.f32.mrb[0].mxu0
  %v370 = vadd.f32 %v272, %v369
  %v371 = vpop.f32.mrb[0].mxu0
  %372 = vmatprep.mubr.f32.mxu0 0.0
  %373 = vmatmul.mubr.f32.gmra.mrb[0].mxu0 %v293
  %v374 = vpop.f32.mrb[0].mxu0
  %v375 = vadd.f32 %v277, %v374
  %v376 = vpop.f32.mrb[0].mxu0
  %377 = vmatprep.mubr.f32.mxu0 0.0
  %378 = vmatmul.mubr.f32.gmra.mrb[0].mxu0 %v296
  %v379 = vpop.f32.mrb[0].mxu0
  %v380 = vadd.f32 %v282, %v379
  %v381 = vpop.f32.mrb[0].mxu0
  %382 = vdwg.mxu0
  %v383 = vlaneseq
  %v384 = vshrl.u32 %v383, 7
  %v385 = vsub.s32 0, %v384
  %v386 = vrot.slane %v23, %v385
  %v387 = vadd.f32 %v365, %v386
  %v388 = vadd.f32 %v370, %v386
  %v389 = vadd.f32 %v375, %v386
  %v390 = vadd.f32 %v380, %v386
  %v391 = vxor.u32 %v387, 2147483648
  %v392 = vxor.u32 %v388, 2147483648
  %v393 = vxor.u32 %v389, 2147483648
  %v394 = vxor.u32 %v390, 2147483648
  %v395 = vmul.f32 %v391, 1.442695
  %v396 = vpow.pop %v395
  %v397 = vmul.f32 %v392, 1.442695
  %v398 = vpow.pop %v397
  %v399 = vmul.f32 %v393, 1.442695
  %v400 = vpow.pop %v399
  %v401 = vmul.f32 %v394, 1.442695
  %v402 = vpow.pop %v401
  %v403 = vadd.f32 %v396, 1.0
  %v404 = vadd.f32 %v398, 1.0
  %v405 = vadd.f32 %v400, 1.0
  %v406 = vadd.f32 %v402, 1.0
  %v407 = vrcp.pop %v403
  %v408 = vmul.f32 1.0, %v407
  %v409 = vrcp.pop %v404
  %v410 = vmul.f32 1.0, %v409
  %v411 = vrcp.pop %v405
  %v412 = vmul.f32 1.0, %v411
  %v413 = vrcp.pop %v406
  %v414 = vmul.f32 1.0, %v413
  %v415 = vmul.f32 %v387, %v408
  %v416 = vmul.f32 %v388, %v410
  %v417 = vmul.f32 %v389, %v412
  %v418 = vmul.f32 %v390, %v414
  %v419 = vld [vmem:[%s4] sm:$0xff]
  %v420 = vld [vmem:[%s4 + $0x8] sm:$0xff]
  %v421 = vld [vmem:[%s4 + $0x10] sm:$0xff]
  %v422 = vld [vmem:[%s4 + $0x18] sm:$0xff]
  %v423 = vld [vmem:[%s4 + $0x20] sm:$0xff]
  %v424 = vld [vmem:[%s4 + $0x28] sm:$0xff]
  %v425 = vld [vmem:[%s4 + $0x30] sm:$0xff]
  %v426 = vld [vmem:[%s4 + $0x38] sm:$0xff]
  %v427 = vld [vmem:[%s4 + $0x40] sm:$0xff]
  %v428 = vld [vmem:[%s4 + $0x48] sm:$0xff]
  %v429 = vld [vmem:[%s4 + $0x50] sm:$0xff]
  %v430 = vld [vmem:[%s4 + $0x58] sm:$0xff]
  %v431 = vld [vmem:[%s4 + $0x60] sm:$0xff]
  %v432 = vld [vmem:[%s4 + $0x68] sm:$0xff]
  %v433 = vld [vmem:[%s4 + $0x70] sm:$0xff]
  %v434 = vld [vmem:[%s4 + $0x78] sm:$0xff]
  %v435 = vlaneseq
  %v436 = vshrl.u32 %v435, 7
  %v437 = vsub.s32 1, %v436
  %v438 = vrot.slane %v23, %v437
  %439 = vmatprep.subr.mxu0 0.0
  %440 = vmatpush1.msra.mxu0 %v419
  %441 = vmatprep.subr.mxu0 0.0
  %442 = vmatpush1.msra.mxu0 %v420
  %443 = vmatprep.subr.mxu0 0.0
  %444 = vmatpush1.msra.mxu0 %v421
  %445 = vmatprep.subr.mxu0 0.0
  %446 = vmatpush1.msra.mxu0 %v422
  %447 = vmatprep.subr.mxu0 0.0
  %448 = vmatpush1.msra.mxu0 %v423
  %449 = vmatprep.subr.mxu0 0.0
  %450 = vmatpush1.msra.mxu0 %v424
  %451 = vmatprep.subr.mxu0 0.0
  %452 = vmatpush1.msra.mxu0 %v425
  %453 = vmatprep.subr.mxu0 0.0
  %454 = vmatpush1.msra.mxu0 %v426
  %455 = vmatprep.subr.mxu0 0.0
  %456 = vmatpush1.msra.mxu0 %v427
  %457 = vmatprep.subr.mxu0 0.0
  %458 = vmatpush1.msra.mxu0 %v428
  %459 = vmatprep.subr.mxu0 0.0
  %460 = vmatpush1.msra.mxu0 %v429
  %461 = vmatprep.subr.mxu0 0.0
  %462 = vmatpush1.msra.mxu0 %v430
  %463 = vmatprep.subr.mxu0 0.0
  %464 = vmatpush1.msra.mxu0 %v431
  %465 = vmatprep.subr.mxu0 0.0
  %466 = vmatpush1.msra.mxu0 %v432
  %467 = vmatprep.subr.mxu0 0.0
  %468 = vmatpush1.msra.mxu0 %v433
  %469 = vmatprep.subr.mxu0 0.0
  %470 = vmatpush1.msra.mxu0 %v434
  %471 = vmatprep.subr.mxu0 0.0
  %472 = vmatpush1.msra.mxu0 0.0
  %473 = vmatprep.subr.mxu0 0.0
  %474 = vmatpush1.msra.mxu0 0.0
  %475 = vmatprep.subr.mxu0 0.0
  %476 = vmatpush1.msra.mxu0 0.0
  %477 = vmatprep.subr.mxu0 0.0
  %478 = vmatpush1.msra.mxu0 0.0
  %479 = vmatprep.subr.mxu0 0.0
  %480 = vmatpush1.msra.mxu0 0.0
  %481 = vmatprep.subr.mxu0 0.0
  %482 = vmatpush1.msra.mxu0 0.0
  %483 = vmatprep.subr.mxu0 0.0
  %484 = vmatpush1.msra.mxu0 0.0
  %485 = vmatprep.subr.mxu0 0.0
  %486 = vmatpush1.msra.mxu0 0.0
  %487 = vmatprep.subr.mxu0 0.0
  %488 = vmatpush1.msra.mxu0 0.0
  %489 = vmatprep.subr.mxu0 0.0
  %490 = vmatpush1.msra.mxu0 0.0
  %491 = vmatprep.subr.mxu0 0.0
  %492 = vmatpush1.msra.mxu0 0.0
  %493 = vmatprep.subr.mxu0 0.0
  %494 = vmatpush1.msra.mxu0 0.0
  %495 = vmatprep.subr.mxu0 0.0
  %496 = vmatpush1.msra.mxu0 0.0
  %497 = vmatprep.subr.mxu0 0.0
  %498 = vmatpush1.msra.mxu0 0.0
  %499 = vmatprep.subr.mxu0 0.0
  %500 = vmatpush1.msra.mxu0 0.0
  %501 = vmatprep.subr.mxu0 0.0
  %502 = vmatpush1.msra.mxu0 0.0
  %503 = vmatprep.mubr.f32.mxu0 0.0
  %504 = vmatmul.mubr.f32.gmra.mrb[0].mxu0 %v415
  %v505 = vpop.f32.mrb[0].mxu0
  %v506 = vadd.f32 %v438, %v505
  %v507 = vpop.f32.mrb[0].mxu0
  %508 = vmatprep.mubr.f32.mxu0 0.0
  %509 = vmatmul.mubr.f32.gmra.mrb[0].mxu0 %v416
  %v510 = vpop.f32.mrb[0].mxu0
  %v511 = vadd.f32 %v438, %v510
  %v512 = vpop.f32.mrb[0].mxu0
  %513 = vmatprep.mubr.f32.mxu0 0.0
  %514 = vmatmul.mubr.f32.gmra.mrb[0].mxu0 %v417
  %v515 = vpop.f32.mrb[0].mxu0
  %v516 = vadd.f32 %v438, %v515
  %v517 = vpop.f32.mrb[0].mxu0
  %518 = vmatprep.mubr.f32.mxu0 0.0
  %519 = vmatmul.mubr.f32.gmra.mrb[0].mxu0 %v418
  %v520 = vpop.f32.mrb[0].mxu0
  %v521 = vadd.f32 %v438, %v520
  %v522 = vpop.f32.mrb[0].mxu0
  %523 = vdwg.mxu0
  %v524 = vxor.u32 %v506, 2147483648
  %v525 = vxor.u32 %v511, 2147483648
  %v526 = vxor.u32 %v516, 2147483648
  %v527 = vxor.u32 %v521, 2147483648
  %v528 = vmul.f32 %v524, 1.442695
  %v529 = vpow.pop %v528
  %v530 = vmul.f32 %v525, 1.442695
  %v531 = vpow.pop %v530
  %v532 = vmul.f32 %v526, 1.442695
  %v533 = vpow.pop %v532
  %v534 = vmul.f32 %v527, 1.442695
  %v535 = vpow.pop %v534
  %v536 = vadd.f32 %v529, 1.0
  %v537 = vadd.f32 %v531, 1.0
  %v538 = vadd.f32 %v533, 1.0
  %v539 = vadd.f32 %v535, 1.0
  %v540 = vrcp.pop %v536
  %v541 = vmul.f32 1.0, %v540
  %v542 = vrcp.pop %v537
  %v543 = vmul.f32 1.0, %v542
  %v544 = vrcp.pop %v538
  %v545 = vmul.f32 1.0, %v544
  %v546 = vrcp.pop %v539
  %v547 = vmul.f32 1.0, %v546
  %v548 = vmul.f32 %v506, %v541
  %v549 = vmul.f32 %v511, %v543
  %v550 = vmul.f32 %v516, %v545
  %v551 = vmul.f32 %v521, %v547
  %v552 = vld [vmem:[%s4 + $0x80] sm:$0xff]
  %v553 = vld [vmem:[%s4 + $0x88] sm:$0xff]
  %v554 = vld [vmem:[%s4 + $0x90] sm:$0xff]
  %v555 = vld [vmem:[%s4 + $0x98] sm:$0xff]
  %v556 = vld [vmem:[%s4 + $0xa0] sm:$0xff]
  %v557 = vld [vmem:[%s4 + $0xa8] sm:$0xff]
  %v558 = vld [vmem:[%s4 + $0xb0] sm:$0xff]
  %v559 = vld [vmem:[%s4 + $0xb8] sm:$0xff]
  %v560 = vlaneseq
  %v561 = vshrl.u32 %v560, 7
  %v562 = vsub.s32 2, %v561
  %v563 = vrot.slane %v23, %v562
  %vm564 = vcmask 523264
  %v566 = vsel %vm564, %v548, 0
  %v569 = vsel %vm564, %v549, 0
  %v572 = vsel %vm564, %v550, 0
  %v575 = vsel %vm564, %v551, 0
  %577 = vmatprep.subr.mxu0 0.0
  %578 = vmatpush1.msra.mxu0 %v552
  %579 = vmatprep.subr.mxu0 0.0
  %580 = vmatpush1.msra.mxu0 %v553
  %581 = vmatprep.subr.mxu0 0.0
  %582 = vmatpush1.msra.mxu0 %v554
  %583 = vmatprep.subr.mxu0 0.0
  %584 = vmatpush1.msra.mxu0 %v555
  %585 = vmatprep.subr.mxu0 0.0
  %586 = vmatpush1.msra.mxu0 %v556
  %587 = vmatprep.subr.mxu0 0.0
  %588 = vmatpush1.msra.mxu0 %v557
  %589 = vmatprep.subr.mxu0 0.0
  %590 = vmatpush1.msra.mxu0 %v558
  %591 = vmatprep.subr.mxu0 0.0
  %592 = vmatpush1.msra.mxu0 %v559
  %593 = vmatprep.subr.mxu0 0.0
  %594 = vmatpush1.msra.mxu0 0.0
  %595 = vmatprep.subr.mxu0 0.0
  %596 = vmatpush1.msra.mxu0 0.0
  %597 = vmatprep.subr.mxu0 0.0
  %598 = vmatpush1.msra.mxu0 0.0
  %599 = vmatprep.subr.mxu0 0.0
  %600 = vmatpush1.msra.mxu0 0.0
  %601 = vmatprep.subr.mxu0 0.0
  %602 = vmatpush1.msra.mxu0 0.0
  %603 = vmatprep.subr.mxu0 0.0
  %604 = vmatpush1.msra.mxu0 0.0
  %605 = vmatprep.subr.mxu0 0.0
  %606 = vmatpush1.msra.mxu0 0.0
  %607 = vmatprep.subr.mxu0 0.0
  %608 = vmatpush1.msra.mxu0 0.0
  %609 = vmatprep.subr.mxu0 0.0
  %610 = vmatpush1.msra.mxu0 0.0
  %611 = vmatprep.subr.mxu0 0.0
  %612 = vmatpush1.msra.mxu0 0.0
  %613 = vmatprep.subr.mxu0 0.0
  %614 = vmatpush1.msra.mxu0 0.0
  %615 = vmatprep.subr.mxu0 0.0
  %616 = vmatpush1.msra.mxu0 0.0
  %617 = vmatprep.subr.mxu0 0.0
  %618 = vmatpush1.msra.mxu0 0.0
  %619 = vmatprep.subr.mxu0 0.0
  %620 = vmatpush1.msra.mxu0 0.0
  %621 = vmatprep.subr.mxu0 0.0
  %622 = vmatpush1.msra.mxu0 0.0
  %623 = vmatprep.subr.mxu0 0.0
  %624 = vmatpush1.msra.mxu0 0.0
  %625 = vmatprep.subr.mxu0 0.0
  %626 = vmatpush1.msra.mxu0 0.0
  %627 = vmatprep.subr.mxu0 0.0
  %628 = vmatpush1.msra.mxu0 0.0
  %629 = vmatprep.subr.mxu0 0.0
  %630 = vmatpush1.msra.mxu0 0.0
  %631 = vmatprep.subr.mxu0 0.0
  %632 = vmatpush1.msra.mxu0 0.0
  %633 = vmatprep.subr.mxu0 0.0
  %634 = vmatpush1.msra.mxu0 0.0
  %635 = vmatprep.subr.mxu0 0.0
  %636 = vmatpush1.msra.mxu0 0.0
  %637 = vmatprep.subr.mxu0 0.0
  %638 = vmatpush1.msra.mxu0 0.0
  %639 = vmatprep.subr.mxu0 0.0
  %640 = vmatpush1.msra.mxu0 0.0
  %641 = vmatprep.mubr.f32.mxu0 0.0
  %642 = vmatmul.mubr.f32.gmra.mrb[0].mxu0 %v566
  %v643 = vpop.f32.mrb[0].mxu0
  %v644 = vadd.f32 %v563, %v643
  %v645 = vpop.f32.mrb[0].mxu0
  %646 = vmatprep.mubr.f32.mxu0 0.0
  %647 = vmatmul.mubr.f32.gmra.mrb[0].mxu0 %v569
  %v648 = vpop.f32.mrb[0].mxu0
  %v649 = vadd.f32 %v563, %v648
  %v650 = vpop.f32.mrb[0].mxu0
  %651 = vmatprep.mubr.f32.mxu0 0.0
  %652 = vmatmul.mubr.f32.gmra.mrb[0].mxu0 %v572
  %v653 = vpop.f32.mrb[0].mxu0
  %v654 = vadd.f32 %v563, %v653
  %v655 = vpop.f32.mrb[0].mxu0
  %656 = vmatprep.mubr.f32.mxu0 0.0
  %657 = vmatmul.mubr.f32.gmra.mrb[0].mxu0 %v575
  %v658 = vpop.f32.mrb[0].mxu0
  %v659 = vadd.f32 %v563, %v658
  %v660 = vpop.f32.mrb[0].mxu0
  %661 = vdwg.mxu0
  %v662 = vld [vmem:[%s5 + $0x8] sm:$0xff]
  %v663 = vld [vmem:[%s5 + $0x10] sm:$0xff]
  %v664 = vld [vmem:[%s5 + $0x18] sm:$0xff]
  %v665 = vld [vmem:[%s5 + $0x20] sm:$0xff]
  %v666 = vld [vmem:[%s5 + $0x28] sm:$0xff]
  %v667 = vld [vmem:[%s5 + $0x30] sm:$0xff]
  %v668 = vld [vmem:[%s5 + $0x38] sm:$0xff]
  %v669 = vld [vmem:[%s5 + $0x40] sm:$0xff]
  %v671 = vsel %vm564, %v644, 0
  %v674 = vsel %vm564, %v649, 0
  %v677 = vsel %vm564, %v654, 0
  %v680 = vsel %vm564, %v659, 0
  %682 = vmatprep.subr.mxu0 0.0
  %683 = vmatpush1.msra.mxu0 %v662
  %684 = vmatprep.subr.mxu0 0.0
  %685 = vmatpush1.msra.mxu0 %v663
  %686 = vmatprep.subr.mxu0 0.0
  %687 = vmatpush1.msra.mxu0 %v664
  %688 = vmatprep.subr.mxu0 0.0
  %689 = vmatpush1.msra.mxu0 %v665
  %690 = vmatprep.subr.mxu0 0.0
  %691 = vmatpush1.msra.mxu0 %v666
  %692 = vmatprep.subr.mxu0 0.0
  %693 = vmatpush1.msra.mxu0 %v667
  %694 = vmatprep.subr.mxu0 0.0
  %695 = vmatpush1.msra.mxu0 %v668
  %696 = vmatprep.subr.mxu0 0.0
  %697 = vmatpush1.msra.mxu0 %v669
  %698 = vmatprep.subr.mxu0 0.0
  %699 = vmatpush1.msra.mxu0 0.0
  %700 = vmatprep.subr.mxu0 0.0
  %701 = vmatpush1.msra.mxu0 0.0
  %702 = vmatprep.subr.mxu0 0.0
  %703 = vmatpush1.msra.mxu0 0.0
  %704 = vmatprep.subr.mxu0 0.0
  %705 = vmatpush1.msra.mxu0 0.0
  %706 = vmatprep.subr.mxu0 0.0
  %707 = vmatpush1.msra.mxu0 0.0
  %708 = vmatprep.subr.mxu0 0.0
  %709 = vmatpush1.msra.mxu0 0.0
  %710 = vmatprep.subr.mxu0 0.0
  %711 = vmatpush1.msra.mxu0 0.0
  %712 = vmatprep.subr.mxu0 0.0
  %713 = vmatpush1.msra.mxu0 0.0
  %714 = vmatprep.subr.mxu0 0.0
  %715 = vmatpush1.msra.mxu0 0.0
  %716 = vmatprep.subr.mxu0 0.0
  %717 = vmatpush1.msra.mxu0 0.0
  %718 = vmatprep.subr.mxu0 0.0
  %719 = vmatpush1.msra.mxu0 0.0
  %720 = vmatprep.subr.mxu0 0.0
  %721 = vmatpush1.msra.mxu0 0.0
  %722 = vmatprep.subr.mxu0 0.0
  %723 = vmatpush1.msra.mxu0 0.0
  %724 = vmatprep.subr.mxu0 0.0
  %725 = vmatpush1.msra.mxu0 0.0
  %726 = vmatprep.subr.mxu0 0.0
  %727 = vmatpush1.msra.mxu0 0.0
  %728 = vmatprep.subr.mxu0 0.0
  %729 = vmatpush1.msra.mxu0 0.0
  %730 = vmatprep.subr.mxu0 0.0
  %731 = vmatpush1.msra.mxu0 0.0
  %732 = vmatprep.subr.mxu0 0.0
  %733 = vmatpush1.msra.mxu0 0.0
  %734 = vmatprep.subr.mxu0 0.0
  %735 = vmatpush1.msra.mxu0 0.0
  %736 = vmatprep.subr.mxu0 0.0
  %737 = vmatpush1.msra.mxu0 0.0
  %738 = vmatprep.subr.mxu0 0.0
  %739 = vmatpush1.msra.mxu0 0.0
  %740 = vmatprep.subr.mxu0 0.0
  %741 = vmatpush1.msra.mxu0 0.0
  %742 = vmatprep.subr.mxu0 0.0
  %743 = vmatpush1.msra.mxu0 0.0
  %744 = vmatprep.subr.mxu0 0.0
  %745 = vmatpush1.msra.mxu0 0.0
  %746 = vmatprep.mubr.f32.mxu0 0.0
  %747 = vmatmul.mubr.f32.gmra.mrb[0].mxu0 %v671
  %v748 = vpop.f32.mrb[0].mxu0
  %v749 = vadd.f32 0.0, %v748
  %v750 = vpop.f32.mrb[0].mxu0
  %751 = vmatprep.mubr.f32.mxu0 0.0
  %752 = vmatmul.mubr.f32.gmra.mrb[0].mxu0 %v674
  %v753 = vpop.f32.mrb[0].mxu0
  %v754 = vadd.f32 0.0, %v753
  %v755 = vpop.f32.mrb[0].mxu0
  %756 = vmatprep.mubr.f32.mxu0 0.0
  %757 = vmatmul.mubr.f32.gmra.mrb[0].mxu0 %v677
  %v758 = vpop.f32.mrb[0].mxu0
  %v759 = vadd.f32 0.0, %v758
  %v760 = vpop.f32.mrb[0].mxu0
  %761 = vmatprep.mubr.f32.mxu0 0.0
  %762 = vmatmul.mubr.f32.gmra.mrb[0].mxu0 %v680
  %v763 = vpop.f32.mrb[0].mxu0
  %v764 = vadd.f32 0.0, %v763
  %v765 = vpop.f32.mrb[0].mxu0
  %766 = vdwg.mxu0
  %767 = vxpose.xlu0.b32.start [1/16] %v749, 128
  %768 = vxpose.xlu0.b32.cont [2/16] %v754, 128
  %769 = vxpose.xlu0.b32.cont [3/16] %v759, 128
  %770 = vxpose.xlu0.b32.cont [4/16] %v764, 128
  %771 = vxpose.xlu0.b32.cont [5/16] 0.0, 128
  %772 = vxpose.xlu0.b32.cont [6/16] 0.0, 128
  %773 = vxpose.xlu0.b32.cont [7/16] 0.0, 128
  %774 = vxpose.xlu0.b32.cont [8/16] 0.0, 128
  %775 = vxpose.xlu0.b32.cont [9/16] 0.0, 128
  %776 = vxpose.xlu0.b32.cont [10/16] 0.0, 128
  %777 = vxpose.xlu0.b32.cont [11/16] 0.0, 128
  %778 = vxpose.xlu0.b32.cont [12/16] 0.0, 128
  %779 = vxpose.xlu0.b32.cont [13/16] 0.0, 128
  %780 = vxpose.xlu0.b32.cont [14/16] 0.0, 128
  %781 = vxpose.xlu0.b32.cont [15/16] 0.0, 128
  %782 = vxpose.xlu0.b32.end [16/16] 0.0, 128
  %v783 = vpop.trf.xlu0
  %v784 = vpop.trf.xlu0
  %v785 = vpop.trf.xlu0
  %v786 = vpop.trf.xlu0
  %v787 = vpop.trf.xlu0
  %v788 = vpop.trf.xlu0
  %v789 = vpop.trf.xlu0
  %v790 = vpop.trf.xlu0
  %v791 = vpop.trf.xlu0
  %v792 = vpop.trf.xlu0
  %v793 = vpop.trf.xlu0
  %v794 = vpop.trf.xlu0
  %v795 = vpop.trf.xlu0
  %v796 = vpop.trf.xlu0
  %v797 = vpop.trf.xlu0
  %v798 = vpop.trf.xlu0
  %v799 = vld [vmem:[%s4 + $0x3e0] sm:$0xff]
  %v800 = vld [vmem:[%s4 + $0x3e8] sm:$0xff]
  %v801 = vld [vmem:[%s4 + $0x3f0] sm:$0xff]
  %v802 = vld [vmem:[%s4 + $0x3f8] sm:$0xff]
  %v803 = vld [vmem:[%s4 + $0x400] sm:$0xff]
  %v804 = vld [vmem:[%s4 + $0x408] sm:$0xff]
  %v805 = vld [vmem:[%s4 + $0x410] sm:$0xff]
  %v806 = vld [vmem:[%s4 + $0x418] sm:$0xff]
  %v808 = vsel %vm187, %v799, 0
  %810 = vmatprep.subr.mxu0 0.0
  %811 = vmatpush1.msra.mxu0 %v783
  %812 = vmatprep.subr.mxu0 0.0
  %813 = vmatpush1.msra.mxu0 0.0
  %814 = vmatprep.subr.mxu0 0.0
  %815 = vmatpush1.msra.mxu0 0.0
  %816 = vmatprep.subr.mxu0 0.0
  %817 = vmatpush1.msra.mxu0 0.0
  %818 = vmatprep.subr.mxu0 0.0
  %819 = vmatpush1.msra.mxu0 0.0
  %820 = vmatprep.subr.mxu0 0.0
  %821 = vmatpush1.msra.mxu0 0.0
  %822 = vmatprep.subr.mxu0 0.0
  %823 = vmatpush1.msra.mxu0 0.0
  %824 = vmatprep.subr.mxu0 0.0
  %825 = vmatpush1.msra.mxu0 0.0
  %826 = vmatprep.subr.mxu0 0.0
  %827 = vmatpush1.msra.mxu0 0.0
  %828 = vmatprep.subr.mxu0 0.0
  %829 = vmatpush1.msra.mxu0 0.0
  %830 = vmatprep.subr.mxu0 0.0
  %831 = vmatpush1.msra.mxu0 0.0
  %832 = vmatprep.subr.mxu0 0.0
  %833 = vmatpush1.msra.mxu0 0.0
  %834 = vmatprep.subr.mxu0 0.0
  %835 = vmatpush1.msra.mxu0 0.0
  %836 = vmatprep.subr.mxu0 0.0
  %837 = vmatpush1.msra.mxu0 0.0
  %838 = vmatprep.subr.mxu0 0.0
  %839 = vmatpush1.msra.mxu0 0.0
  %840 = vmatprep.subr.mxu0 0.0
  %841 = vmatpush1.msra.mxu0 0.0
  %842 = vmatprep.subr.mxu0 0.0
  %843 = vmatpush1.msra.mxu0 0.0
  %844 = vmatprep.subr.mxu0 0.0
  %845 = vmatpush1.msra.mxu0 0.0
  %846 = vmatprep.subr.mxu0 0.0
  %847 = vmatpush1.msra.mxu0 0.0
  %848 = vmatprep.subr.mxu0 0.0
  %849 = vmatpush1.msra.mxu0 0.0
  %850 = vmatprep.subr.mxu0 0.0
  %851 = vmatpush1.msra.mxu0 0.0
  %852 = vmatprep.subr.mxu0 0.0
  %853 = vmatpush1.msra.mxu0 0.0
  %854 = vmatprep.subr.mxu0 0.0
  %855 = vmatpush1.msra.mxu0 0.0
  %856 = vmatprep.subr.mxu0 0.0
  %857 = vmatpush1.msra.mxu0 0.0
  %858 = vmatprep.subr.mxu0 0.0
  %859 = vmatpush1.msra.mxu0 0.0
  %860 = vmatprep.subr.mxu0 0.0
  %861 = vmatpush1.msra.mxu0 0.0
  %862 = vmatprep.subr.mxu0 0.0
  %863 = vmatpush1.msra.mxu0 0.0
  %864 = vmatprep.subr.mxu0 0.0
  %865 = vmatpush1.msra.mxu0 0.0
  %866 = vmatprep.subr.mxu0 0.0
  %867 = vmatpush1.msra.mxu0 0.0
  %868 = vmatprep.subr.mxu0 0.0
  %869 = vmatpush1.msra.mxu0 0.0
  %870 = vmatprep.subr.mxu0 0.0
  %871 = vmatpush1.msra.mxu0 0.0
  %872 = vmatprep.subr.mxu0 0.0
  %873 = vmatpush1.msra.mxu0 0.0
  %874 = vmatprep.mubr.f32.mxu0 0.0
  %875 = vmatmul.mubr.f32.gmra.mrb[0].mxu0 %v808
  %v876 = vpop.f32.mrb[0].mxu0
  %v877 = vadd.f32 0.0, %v876
  %v878 = vpop.f32.mrb[0].mxu0
  %879 = vdwg.mxu0
  %v881 = vsel %vm187, %v800, 0
  %883 = vmatprep.subr.mxu0 0.0
  %884 = vmatpush1.msra.mxu0 %v784
  %885 = vmatprep.subr.mxu0 0.0
  %886 = vmatpush1.msra.mxu0 0.0
  %887 = vmatprep.subr.mxu0 0.0
  %888 = vmatpush1.msra.mxu0 0.0
  %889 = vmatprep.subr.mxu0 0.0
  %890 = vmatpush1.msra.mxu0 0.0
  %891 = vmatprep.subr.mxu0 0.0
  %892 = vmatpush1.msra.mxu0 0.0
  %893 = vmatprep.subr.mxu0 0.0
  %894 = vmatpush1.msra.mxu0 0.0
  %895 = vmatprep.subr.mxu0 0.0
  %896 = vmatpush1.msra.mxu0 0.0
  %897 = vmatprep.subr.mxu0 0.0
  %898 = vmatpush1.msra.mxu0 0.0
  %899 = vmatprep.subr.mxu0 0.0
  %900 = vmatpush1.msra.mxu0 0.0
  %901 = vmatprep.subr.mxu0 0.0
  %902 = vmatpush1.msra.mxu0 0.0
  %903 = vmatprep.subr.mxu0 0.0
  %904 = vmatpush1.msra.mxu0 0.0
  %905 = vmatprep.subr.mxu0 0.0
  %906 = vmatpush1.msra.mxu0 0.0
  %907 = vmatprep.subr.mxu0 0.0
  %908 = vmatpush1.msra.mxu0 0.0
  %909 = vmatprep.subr.mxu0 0.0
  %910 = vmatpush1.msra.mxu0 0.0
  %911 = vmatprep.subr.mxu0 0.0
  %912 = vmatpush1.msra.mxu0 0.0
  %913 = vmatprep.subr.mxu0 0.0
  %914 = vmatpush1.msra.mxu0 0.0
  %915 = vmatprep.subr.mxu0 0.0
  %916 = vmatpush1.msra.mxu0 0.0
  %917 = vmatprep.subr.mxu0 0.0
  %918 = vmatpush1.msra.mxu0 0.0
  %919 = vmatprep.subr.mxu0 0.0
  %920 = vmatpush1.msra.mxu0 0.0
  %921 = vmatprep.subr.mxu0 0.0
  %922 = vmatpush1.msra.mxu0 0.0
  %923 = vmatprep.subr.mxu0 0.0
  %924 = vmatpush1.msra.mxu0 0.0
  %925 = vmatprep.subr.mxu0 0.0
  %926 = vmatpush1.msra.mxu0 0.0
  %927 = vmatprep.subr.mxu0 0.0
  %928 = vmatpush1.msra.mxu0 0.0
  %929 = vmatprep.subr.mxu0 0.0
  %930 = vmatpush1.msra.mxu0 0.0
  %931 = vmatprep.subr.mxu0 0.0
  %932 = vmatpush1.msra.mxu0 0.0
  %933 = vmatprep.subr.mxu0 0.0
  %934 = vmatpush1.msra.mxu0 0.0
  %935 = vmatprep.subr.mxu0 0.0
  %936 = vmatpush1.msra.mxu0 0.0
  %937 = vmatprep.subr.mxu0 0.0
  %938 = vmatpush1.msra.mxu0 0.0
  %939 = vmatprep.subr.mxu0 0.0
  %940 = vmatpush1.msra.mxu0 0.0
  %941 = vmatprep.subr.mxu0 0.0
  %942 = vmatpush1.msra.mxu0 0.0
  %943 = vmatprep.subr.mxu0 0.0
  %944 = vmatpush1.msra.mxu0 0.0
  %945 = vmatprep.subr.mxu0 0.0
  %946 = vmatpush1.msra.mxu0 0.0
  %947 = vmatprep.mubr.f32.mxu0 0.0
  %948 = vmatmul.mubr.f32.gmra.mrb[0].mxu0 %v881
  %v949 = vpop.f32.mrb[0].mxu0
  %v950 = vadd.f32 0.0, %v949
  %v951 = vpop.f32.mrb[0].mxu0
  %952 = vdwg.mxu0
  %v954 = vsel %vm187, %v801, 0
  %956 = vmatprep.subr.mxu0 0.0
  %957 = vmatpush1.msra.mxu0 %v785
  %958 = vmatprep.subr.mxu0 0.0
  %959 = vmatpush1.msra.mxu0 0.0
  %960 = vmatprep.subr.mxu0 0.0
  %961 = vmatpush1.msra.mxu0 0.0
  %962 = vmatprep.subr.mxu0 0.0
  %963 = vmatpush1.msra.mxu0 0.0
  %964 = vmatprep.subr.mxu0 0.0
  %965 = vmatpush1.msra.mxu0 0.0
  %966 = vmatprep.subr.mxu0 0.0
  %967 = vmatpush1.msra.mxu0 0.0
  %968 = vmatprep.subr.mxu0 0.0
  %969 = vmatpush1.msra.mxu0 0.0
  %970 = vmatprep.subr.mxu0 0.0
  %971 = vmatpush1.msra.mxu0 0.0
  %972 = vmatprep.subr.mxu0 0.0
  %973 = vmatpush1.msra.mxu0 0.0
  %974 = vmatprep.subr.mxu0 0.0
  %975 = vmatpush1.msra.mxu0 0.0
  %976 = vmatprep.subr.mxu0 0.0
  %977 = vmatpush1.msra.mxu0 0.0
  %978 = vmatprep.subr.mxu0 0.0
  %979 = vmatpush1.msra.mxu0 0.0
  %980 = vmatprep.subr.mxu0 0.0
  %981 = vmatpush1.msra.mxu0 0.0
  %982 = vmatprep.subr.mxu0 0.0
  %983 = vmatpush1.msra.mxu0 0.0
  %984 = vmatprep.subr.mxu0 0.0
  %985 = vmatpush1.msra.mxu0 0.0
  %986 = vmatprep.subr.mxu0 0.0
  %987 = vmatpush1.msra.mxu0 0.0
  %988 = vmatprep.subr.mxu0 0.0
  %989 = vmatpush1.msra.mxu0 0.0
  %990 = vmatprep.subr.mxu0 0.0
  %991 = vmatpush1.msra.mxu0 0.0
  %992 = vmatprep.subr.mxu0 0.0
  %993 = vmatpush1.msra.mxu0 0.0
  %994 = vmatprep.subr.mxu0 0.0
  %995 = vmatpush1.msra.mxu0 0.0
  %996 = vmatprep.subr.mxu0 0.0
  %997 = vmatpush1.msra.mxu0 0.0
  %998 = vmatprep.subr.mxu0 0.0
  %999 = vmatpush1.msra.mxu0 0.0
  %1000 = vmatprep.subr.mxu0 0.0
  %1001 = vmatpush1.msra.mxu0 0.0
  %1002 = vmatprep.subr.mxu0 0.0
  %1003 = vmatpush1.msra.mxu0 0.0
  %1004 = vmatprep.subr.mxu0 0.0
  %1005 = vmatpush1.msra.mxu0 0.0
  %1006 = vmatprep.subr.mxu0 0.0
  %1007 = vmatpush1.msra.mxu0 0.0
  %1008 = vmatprep.subr.mxu0 0.0
  %1009 = vmatpush1.msra.mxu0 0.0
  %1010 = vmatprep.subr.mxu0 0.0
  %1011 = vmatpush1.msra.mxu0 0.0
  %1012 = vmatprep.subr.mxu0 0.0
  %1013 = vmatpush1.msra.mxu0 0.0
  %1014 = vmatprep.subr.mxu0 0.0
  %1015 = vmatpush1.msra.mxu0 0.0
  %1016 = vmatprep.subr.mxu0 0.0
  %1017 = vmatpush1.msra.mxu0 0.0
  %1018 = vmatprep.subr.mxu0 0.0
  %1019 = vmatpush1.msra.mxu0 0.0
  %1020 = vmatprep.mubr.f32.mxu0 0.0
  %1021 = vmatmul.mubr.f32.gmra.mrb[0].mxu0 %v954
  %v1022 = vpop.f32.mrb[0].mxu0
  %v1023 = vadd.f32 0.0, %v1022
  %v1024 = vpop.f32.mrb[0].mxu0
  %1025 = vdwg.mxu0
  %v1027 = vsel %vm187, %v802, 0
  %1029 = vmatprep.subr.mxu0 0.0
  %1030 = vmatpush1.msra.mxu0 %v786
  %1031 = vmatprep.subr.mxu0 0.0
  %1032 = vmatpush1.msra.mxu0 0.0
  %1033 = vmatprep.subr.mxu0 0.0
  %1034 = vmatpush1.msra.mxu0 0.0
  %1035 = vmatprep.subr.mxu0 0.0
  %1036 = vmatpush1.msra.mxu0 0.0
  %1037 = vmatprep.subr.mxu0 0.0
  %1038 = vmatpush1.msra.mxu0 0.0
  %1039 = vmatprep.subr.mxu0 0.0
  %1040 = vmatpush1.msra.mxu0 0.0
  %1041 = vmatprep.subr.mxu0 0.0
  %1042 = vmatpush1.msra.mxu0 0.0
  %1043 = vmatprep.subr.mxu0 0.0
  %1044 = vmatpush1.msra.mxu0 0.0
  %1045 = vmatprep.subr.mxu0 0.0
  %1046 = vmatpush1.msra.mxu0 0.0
  %1047 = vmatprep.subr.mxu0 0.0
  %1048 = vmatpush1.msra.mxu0 0.0
  %1049 = vmatprep.subr.mxu0 0.0
  %1050 = vmatpush1.msra.mxu0 0.0
  %1051 = vmatprep.subr.mxu0 0.0
  %1052 = vmatpush1.msra.mxu0 0.0
  %1053 = vmatprep.subr.mxu0 0.0
  %1054 = vmatpush1.msra.mxu0 0.0
  %1055 = vmatprep.subr.mxu0 0.0
  %1056 = vmatpush1.msra.mxu0 0.0
  %1057 = vmatprep.subr.mxu0 0.0
  %1058 = vmatpush1.msra.mxu0 0.0
  %1059 = vmatprep.subr.mxu0 0.0
  %1060 = vmatpush1.msra.mxu0 0.0
  %1061 = vmatprep.subr.mxu0 0.0
  %1062 = vmatpush1.msra.mxu0 0.0
  %1063 = vmatprep.subr.mxu0 0.0
  %1064 = vmatpush1.msra.mxu0 0.0
  %1065 = vmatprep.subr.mxu0 0.0
  %1066 = vmatpush1.msra.mxu0 0.0
  %1067 = vmatprep.subr.mxu0 0.0
  %1068 = vmatpush1.msra.mxu0 0.0
  %1069 = vmatprep.subr.mxu0 0.0
  %1070 = vmatpush1.msra.mxu0 0.0
  %1071 = vmatprep.subr.mxu0 0.0
  %1072 = vmatpush1.msra.mxu0 0.0
  %1073 = vmatprep.subr.mxu0 0.0
  %1074 = vmatpush1.msra.mxu0 0.0
  %1075 = vmatprep.subr.mxu0 0.0
  %1076 = vmatpush1.msra.mxu0 0.0
  %1077 = vmatprep.subr.mxu0 0.0
  %1078 = vmatpush1.msra.mxu0 0.0
  %1079 = vmatprep.subr.mxu0 0.0
  %1080 = vmatpush1.msra.mxu0 0.0
  %1081 = vmatprep.subr.mxu0 0.0
  %1082 = vmatpush1.msra.mxu0 0.0
  %1083 = vmatprep.subr.mxu0 0.0
  %1084 = vmatpush1.msra.mxu0 0.0
  %1085 = vmatprep.subr.mxu0 0.0
  %1086 = vmatpush1.msra.mxu0 0.0
  %1087 = vmatprep.subr.mxu0 0.0
  %1088 = vmatpush1.msra.mxu0 0.0
  %1089 = vmatprep.subr.mxu0 0.0
  %1090 = vmatpush1.msra.mxu0 0.0
  %1091 = vmatprep.subr.mxu0 0.0
  %1092 = vmatpush1.msra.mxu0 0.0
  %1093 = vmatprep.mubr.f32.mxu0 0.0
  %1094 = vmatmul.mubr.f32.gmra.mrb[0].mxu0 %v1027
  %v1095 = vpop.f32.mrb[0].mxu0
  %v1096 = vadd.f32 0.0, %v1095
  %v1097 = vpop.f32.mrb[0].mxu0
  %1098 = vdwg.mxu0
  %v1100 = vsel %vm187, %v803, 0
  %1102 = vmatprep.subr.mxu0 0.0
  %1103 = vmatpush1.msra.mxu0 %v787
  %1104 = vmatprep.subr.mxu0 0.0
  %1105 = vmatpush1.msra.mxu0 0.0
  %1106 = vmatprep.subr.mxu0 0.0
  %1107 = vmatpush1.msra.mxu0 0.0
  %1108 = vmatprep.subr.mxu0 0.0
  %1109 = vmatpush1.msra.mxu0 0.0
  %1110 = vmatprep.subr.mxu0 0.0
  %1111 = vmatpush1.msra.mxu0 0.0
  %1112 = vmatprep.subr.mxu0 0.0
  %1113 = vmatpush1.msra.mxu0 0.0
  %1114 = vmatprep.subr.mxu0 0.0
  %1115 = vmatpush1.msra.mxu0 0.0
  %1116 = vmatprep.subr.mxu0 0.0
  %1117 = vmatpush1.msra.mxu0 0.0
  %1118 = vmatprep.subr.mxu0 0.0
  %1119 = vmatpush1.msra.mxu0 0.0
  %1120 = vmatprep.subr.mxu0 0.0
  %1121 = vmatpush1.msra.mxu0 0.0
  %1122 = vmatprep.subr.mxu0 0.0
  %1123 = vmatpush1.msra.mxu0 0.0
  %1124 = vmatprep.subr.mxu0 0.0
  %1125 = vmatpush1.msra.mxu0 0.0
  %1126 = vmatprep.subr.mxu0 0.0
  %1127 = vmatpush1.msra.mxu0 0.0
  %1128 = vmatprep.subr.mxu0 0.0
  %1129 = vmatpush1.msra.mxu0 0.0
  %1130 = vmatprep.subr.mxu0 0.0
  %1131 = vmatpush1.msra.mxu0 0.0
  %1132 = vmatprep.subr.mxu0 0.0
  %1133 = vmatpush1.msra.mxu0 0.0
  %1134 = vmatprep.subr.mxu0 0.0
  %1135 = vmatpush1.msra.mxu0 0.0
  %1136 = vmatprep.subr.mxu0 0.0
  %1137 = vmatpush1.msra.mxu0 0.0
  %1138 = vmatprep.subr.mxu0 0.0
  %1139 = vmatpush1.msra.mxu0 0.0
  %1140 = vmatprep.subr.mxu0 0.0
  %1141 = vmatpush1.msra.mxu0 0.0
  %1142 = vmatprep.subr.mxu0 0.0
  %1143 = vmatpush1.msra.mxu0 0.0
  %1144 = vmatprep.subr.mxu0 0.0
  %1145 = vmatpush1.msra.mxu0 0.0
  %1146 = vmatprep.subr.mxu0 0.0
  %1147 = vmatpush1.msra.mxu0 0.0
  %1148 = vmatprep.subr.mxu0 0.0
  %1149 = vmatpush1.msra.mxu0 0.0
  %1150 = vmatprep.subr.mxu0 0.0
  %1151 = vmatpush1.msra.mxu0 0.0
  %1152 = vmatprep.subr.mxu0 0.0
  %1153 = vmatpush1.msra.mxu0 0.0
  %1154 = vmatprep.subr.mxu0 0.0
  %1155 = vmatpush1.msra.mxu0 0.0
  %1156 = vmatprep.subr.mxu0 0.0
  %1157 = vmatpush1.msra.mxu0 0.0
  %1158 = vmatprep.subr.mxu0 0.0
  %1159 = vmatpush1.msra.mxu0 0.0
  %1160 = vmatprep.subr.mxu0 0.0
  %1161 = vmatpush1.msra.mxu0 0.0
  %1162 = vmatprep.subr.mxu0 0.0
  %1163 = vmatpush1.msra.mxu0 0.0
  %1164 = vmatprep.subr.mxu0 0.0
  %1165 = vmatpush1.msra.mxu0 0.0
  %1166 = vmatprep.mubr.f32.mxu0 0.0
  %1167 = vmatmul.mubr.f32.gmra.mrb[0].mxu0 %v1100
  %v1168 = vpop.f32.mrb[0].mxu0
  %v1169 = vadd.f32 0.0, %v1168
  %v1170 = vpop.f32.mrb[0].mxu0
  %1171 = vdwg.mxu0
  %v1173 = vsel %vm187, %v804, 0
  %1175 = vmatprep.subr.mxu0 0.0
  %1176 = vmatpush1.msra.mxu0 %v788
  %1177 = vmatprep.subr.mxu0 0.0
  %1178 = vmatpush1.msra.mxu0 0.0
  %1179 = vmatprep.subr.mxu0 0.0
  %1180 = vmatpush1.msra.mxu0 0.0
  %1181 = vmatprep.subr.mxu0 0.0
  %1182 = vmatpush1.msra.mxu0 0.0
  %1183 = vmatprep.subr.mxu0 0.0
  %1184 = vmatpush1.msra.mxu0 0.0
  %1185 = vmatprep.subr.mxu0 0.0
  %1186 = vmatpush1.msra.mxu0 0.0
  %1187 = vmatprep.subr.mxu0 0.0
  %1188 = vmatpush1.msra.mxu0 0.0
  %1189 = vmatprep.subr.mxu0 0.0
  %1190 = vmatpush1.msra.mxu0 0.0
  %1191 = vmatprep.subr.mxu0 0.0
  %1192 = vmatpush1.msra.mxu0 0.0
  %1193 = vmatprep.subr.mxu0 0.0
  %1194 = vmatpush1.msra.mxu0 0.0
  %1195 = vmatprep.subr.mxu0 0.0
  %1196 = vmatpush1.msra.mxu0 0.0
  %1197 = vmatprep.subr.mxu0 0.0
  %1198 = vmatpush1.msra.mxu0 0.0
  %1199 = vmatprep.subr.mxu0 0.0
  %1200 = vmatpush1.msra.mxu0 0.0
  %1201 = vmatprep.subr.mxu0 0.0
  %1202 = vmatpush1.msra.mxu0 0.0
  %1203 = vmatprep.subr.mxu0 0.0
  %1204 = vmatpush1.msra.mxu0 0.0
  %1205 = vmatprep.subr.mxu0 0.0
  %1206 = vmatpush1.msra.mxu0 0.0
  %1207 = vmatprep.subr.mxu0 0.0
  %1208 = vmatpush1.msra.mxu0 0.0
  %1209 = vmatprep.subr.mxu0 0.0
  %1210 = vmatpush1.msra.mxu0 0.0
  %1211 = vmatprep.subr.mxu0 0.0
  %1212 = vmatpush1.msra.mxu0 0.0
  %1213 = vmatprep.subr.mxu0 0.0
  %1214 = vmatpush1.msra.mxu0 0.0
  %1215 = vmatprep.subr.mxu0 0.0
  %1216 = vmatpush1.msra.mxu0 0.0
  %1217 = vmatprep.subr.mxu0 0.0
  %1218 = vmatpush1.msra.mxu0 0.0
  %1219 = vmatprep.subr.mxu0 0.0
  %1220 = vmatpush1.msra.mxu0 0.0
  %1221 = vmatprep.subr.mxu0 0.0
  %1222 = vmatpush1.msra.mxu0 0.0
  %1223 = vmatprep.subr.mxu0 0.0
  %1224 = vmatpush1.msra.mxu0 0.0
  %1225 = vmatprep.subr.mxu0 0.0
  %1226 = vmatpush1.msra.mxu0 0.0
  %1227 = vmatprep.subr.mxu0 0.0
  %1228 = vmatpush1.msra.mxu0 0.0
  %1229 = vmatprep.subr.mxu0 0.0
  %1230 = vmatpush1.msra.mxu0 0.0
  %1231 = vmatprep.subr.mxu0 0.0
  %1232 = vmatpush1.msra.mxu0 0.0
  %1233 = vmatprep.subr.mxu0 0.0
  %1234 = vmatpush1.msra.mxu0 0.0
  %1235 = vmatprep.subr.mxu0 0.0
  %1236 = vmatpush1.msra.mxu0 0.0
  %1237 = vmatprep.subr.mxu0 0.0
  %1238 = vmatpush1.msra.mxu0 0.0
  %1239 = vmatprep.mubr.f32.mxu0 0.0
  %1240 = vmatmul.mubr.f32.gmra.mrb[0].mxu0 %v1173
  %v1241 = vpop.f32.mrb[0].mxu0
  %v1242 = vadd.f32 0.0, %v1241
  %v1243 = vpop.f32.mrb[0].mxu0
  %1244 = vdwg.mxu0
  %v1246 = vsel %vm187, %v805, 0
  %1248 = vmatprep.subr.mxu0 0.0
  %1249 = vmatpush1.msra.mxu0 %v789
  %1250 = vmatprep.subr.mxu0 0.0
  %1251 = vmatpush1.msra.mxu0 0.0
  %1252 = vmatprep.subr.mxu0 0.0
  %1253 = vmatpush1.msra.mxu0 0.0
  %1254 = vmatprep.subr.mxu0 0.0
  %1255 = vmatpush1.msra.mxu0 0.0
  %1256 = vmatprep.subr.mxu0 0.0
  %1257 = vmatpush1.msra.mxu0 0.0
  %1258 = vmatprep.subr.mxu0 0.0
  %1259 = vmatpush1.msra.mxu0 0.0
  %1260 = vmatprep.subr.mxu0 0.0
  %1261 = vmatpush1.msra.mxu0 0.0
  %1262 = vmatprep.subr.mxu0 0.0
  %1263 = vmatpush1.msra.mxu0 0.0
  %1264 = vmatprep.subr.mxu0 0.0
  %1265 = vmatpush1.msra.mxu0 0.0
  %1266 = vmatprep.subr.mxu0 0.0
  %1267 = vmatpush1.msra.mxu0 0.0
  %1268 = vmatprep.subr.mxu0 0.0
  %1269 = vmatpush1.msra.mxu0 0.0
  %1270 = vmatprep.subr.mxu0 0.0
  %1271 = vmatpush1.msra.mxu0 0.0
  %1272 = vmatprep.subr.mxu0 0.0
  %1273 = vmatpush1.msra.mxu0 0.0
  %1274 = vmatprep.subr.mxu0 0.0
  %1275 = vmatpush1.msra.mxu0 0.0
  %1276 = vmatprep.subr.mxu0 0.0
  %1277 = vmatpush1.msra.mxu0 0.0
  %1278 = vmatprep.subr.mxu0 0.0
  %1279 = vmatpush1.msra.mxu0 0.0
  %1280 = vmatprep.subr.mxu0 0.0
  %1281 = vmatpush1.msra.mxu0 0.0
  %1282 = vmatprep.subr.mxu0 0.0
  %1283 = vmatpush1.msra.mxu0 0.0
  %1284 = vmatprep.subr.mxu0 0.0
  %1285 = vmatpush1.msra.mxu0 0.0
  %1286 = vmatprep.subr.mxu0 0.0
  %1287 = vmatpush1.msra.mxu0 0.0
  %1288 = vmatprep.subr.mxu0 0.0
  %1289 = vmatpush1.msra.mxu0 0.0
  %1290 = vmatprep.subr.mxu0 0.0
  %1291 = vmatpush1.msra.mxu0 0.0
  %1292 = vmatprep.subr.mxu0 0.0
  %1293 = vmatpush1.msra.mxu0 0.0
  %1294 = vmatprep.subr.mxu0 0.0
  %1295 = vmatpush1.msra.mxu0 0.0
  %1296 = vmatprep.subr.mxu0 0.0
  %1297 = vmatpush1.msra.mxu0 0.0
  %1298 = vmatprep.subr.mxu0 0.0
  %1299 = vmatpush1.msra.mxu0 0.0
  %1300 = vmatprep.subr.mxu0 0.0
  %1301 = vmatpush1.msra.mxu0 0.0
  %1302 = vmatprep.subr.mxu0 0.0
  %1303 = vmatpush1.msra.mxu0 0.0
  %1304 = vmatprep.subr.mxu0 0.0
  %1305 = vmatpush1.msra.mxu0 0.0
  %1306 = vmatprep.subr.mxu0 0.0
  %1307 = vmatpush1.msra.mxu0 0.0
  %1308 = vmatprep.subr.mxu0 0.0
  %1309 = vmatpush1.msra.mxu0 0.0
  %1310 = vmatprep.subr.mxu0 0.0
  %1311 = vmatpush1.msra.mxu0 0.0
  %1312 = vmatprep.mubr.f32.mxu0 0.0
  %1313 = vmatmul.mubr.f32.gmra.mrb[0].mxu0 %v1246
  %v1314 = vpop.f32.mrb[0].mxu0
  %v1315 = vadd.f32 0.0, %v1314
  %v1316 = vpop.f32.mrb[0].mxu0
  %1317 = vdwg.mxu0
  %v1319 = vsel %vm187, %v806, 0
  %1321 = vmatprep.subr.mxu0 0.0
  %1322 = vmatpush1.msra.mxu0 %v790
  %1323 = vmatprep.subr.mxu0 0.0
  %1324 = vmatpush1.msra.mxu0 0.0
  %1325 = vmatprep.subr.mxu0 0.0
  %1326 = vmatpush1.msra.mxu0 0.0
  %1327 = vmatprep.subr.mxu0 0.0
  %1328 = vmatpush1.msra.mxu0 0.0
  %1329 = vmatprep.subr.mxu0 0.0
  %1330 = vmatpush1.msra.mxu0 0.0
  %1331 = vmatprep.subr.mxu0 0.0
  %1332 = vmatpush1.msra.mxu0 0.0
  %1333 = vmatprep.subr.mxu0 0.0
  %1334 = vmatpush1.msra.mxu0 0.0
  %1335 = vmatprep.subr.mxu0 0.0
  %1336 = vmatpush1.msra.mxu0 0.0
  %1337 = vmatprep.subr.mxu0 0.0
  %1338 = vmatpush1.msra.mxu0 0.0
  %1339 = vmatprep.subr.mxu0 0.0
  %1340 = vmatpush1.msra.mxu0 0.0
  %1341 = vmatprep.subr.mxu0 0.0
  %1342 = vmatpush1.msra.mxu0 0.0
  %1343 = vmatprep.subr.mxu0 0.0
  %1344 = vmatpush1.msra.mxu0 0.0
  %1345 = vmatprep.subr.mxu0 0.0
  %1346 = vmatpush1.msra.mxu0 0.0
  %1347 = vmatprep.subr.mxu0 0.0
  %1348 = vmatpush1.msra.mxu0 0.0
  %1349 = vmatprep.subr.mxu0 0.0
  %1350 = vmatpush1.msra.mxu0 0.0
  %1351 = vmatprep.subr.mxu0 0.0
  %1352 = vmatpush1.msra.mxu0 0.0
  %1353 = vmatprep.subr.mxu0 0.0
  %1354 = vmatpush1.msra.mxu0 0.0
  %1355 = vmatprep.subr.mxu0 0.0
  %1356 = vmatpush1.msra.mxu0 0.0
  %1357 = vmatprep.subr.mxu0 0.0
  %1358 = vmatpush1.msra.mxu0 0.0
  %1359 = vmatprep.subr.mxu0 0.0
  %1360 = vmatpush1.msra.mxu0 0.0
  %1361 = vmatprep.subr.mxu0 0.0
  %1362 = vmatpush1.msra.mxu0 0.0
  %1363 = vmatprep.subr.mxu0 0.0
  %1364 = vmatpush1.msra.mxu0 0.0
  %1365 = vmatprep.subr.mxu0 0.0
  %1366 = vmatpush1.msra.mxu0 0.0
  %1367 = vmatprep.subr.mxu0 0.0
  %1368 = vmatpush1.msra.mxu0 0.0
  %1369 = vmatprep.subr.mxu0 0.0
  %1370 = vmatpush1.msra.mxu0 0.0
  %1371 = vmatprep.subr.mxu0 0.0
  %1372 = vmatpush1.msra.mxu0 0.0
  %1373 = vmatprep.subr.mxu0 0.0
  %1374 = vmatpush1.msra.mxu0 0.0
  %1375 = vmatprep.subr.mxu0 0.0
  %1376 = vmatpush1.msra.mxu0 0.0
  %1377 = vmatprep.subr.mxu0 0.0
  %1378 = vmatpush1.msra.mxu0 0.0
  %1379 = vmatprep.subr.mxu0 0.0
  %1380 = vmatpush1.msra.mxu0 0.0
  %1381 = vmatprep.subr.mxu0 0.0
  %1382 = vmatpush1.msra.mxu0 0.0
  %1383 = vmatprep.subr.mxu0 0.0
  %1384 = vmatpush1.msra.mxu0 0.0
  %1385 = vmatprep.mubr.f32.mxu0 0.0
  %1386 = vmatmul.mubr.f32.gmra.mrb[0].mxu0 %v1319
  %v1387 = vpop.f32.mrb[0].mxu0
  %v1388 = vadd.f32 0.0, %v1387
  %v1389 = vpop.f32.mrb[0].mxu0
  %1390 = vdwg.mxu0
  %v1391 = vlaneseq
  %v1392 = vshrl.u32 %v1391, 7
  %v1393 = vsub.s32 2, %v1392
  %v1394 = vrot.slane %v25, %v1393
  %vm1395 = vcmp.eq.s32.totalorder %v27, %v1394
  %v1396 = vsel %vm1395, 0.0, -1e+30
  %v1399 = vunpack.c.l.s4 1966171168
  %v1400 = vunpack.c.0.s8 %v1399
  %v1401 = vlaneseq
  %v1402 = vshrl.u32 %v1401, 7
  %v1403 = vsub.s32 %v1400, %v1402
  %v1404 = vrot.slane %v1396, %v1403
  %v1405 = vcombine.high %v1404, %v1404
  %v1407 = vunpack.c.l.s4 1966171168
  %v1408 = vunpack.c.0.s8 %v1407
  %v1409 = vlaneseq
  %v1410 = vshrl.u32 %v1409, 7
  %v1411 = vsub.s32 %v1408, %v1410
  %v1412 = vrot.slane %v1404, %v1411
  %v1414 = vunpack.c.l.s4 1966171168
  %v1415 = vunpack.c.0.s8 %v1414
  %v1416 = vlaneseq
  %v1417 = vshrl.u32 %v1416, 7
  %v1418 = vsub.s32 %v1415, %v1417
  %v1419 = vrot.slane %v1405, %v1418
  %v1420 = vlaneseq
  %v1421 = vshrl.u32 %v1420, 7
  %v1422 = vsub.s32 0, %v1421
  %v1423 = vrot.slane %v1412, %v1422
  %v1424 = vlaneseq
  %v1425 = vshrl.u32 %v1424, 7
  %v1426 = vsub.s32 0, %v1425
  %v1427 = vrot.slane %v1419, %v1426
  %v1430 = vadd.f32 %v877, %v1423
  %v1431 = vadd.f32 %v877, %v1427
  %v1432 = vadd.f32 %v950, %v1423
  %v1433 = vadd.f32 %v950, %v1427
  %v1434 = vadd.f32 %v1023, %v1423
  %v1435 = vadd.f32 %v1023, %v1427
  %v1436 = vadd.f32 %v1096, %v1423
  %v1437 = vadd.f32 %v1096, %v1427
  %v1438 = vadd.f32 %v1169, %v1423
  %v1439 = vadd.f32 %v1169, %v1427
  %v1440 = vadd.f32 %v1242, %v1423
  %v1441 = vadd.f32 %v1242, %v1427
  %v1442 = vadd.f32 %v1315, %v1423
  %v1443 = vadd.f32 %v1315, %v1427
  %v1444 = vadd.f32 %v1388, %v1423
  %v1445 = vadd.f32 %v1388, %v1427
  %v1446 = vsel %vm285, %v1430, -inf
  %1447 = vmax.xlane.f32.xlu0 %v1446
  %v1448 = vpop.xlane.xlu0 %1447
  %v1449 = vsel %vm285, %v1431, -inf
  %1450 = vmax.xlane.f32.xlu0 %v1449
  %v1451 = vpop.xlane.xlu0 %1450
  %v1452 = vsel %vm285, %v1432, -inf
  %1453 = vmax.xlane.f32.xlu0 %v1452
  %v1454 = vpop.xlane.xlu0 %1453
  %v1455 = vsel %vm285, %v1433, -inf
  %1456 = vmax.xlane.f32.xlu0 %v1455
  %v1457 = vpop.xlane.xlu0 %1456
  %v1458 = vsel %vm285, %v1434, -inf
  %1459 = vmax.xlane.f32.xlu0 %v1458
  %v1460 = vpop.xlane.xlu0 %1459
  %v1461 = vsel %vm285, %v1435, -inf
  %1462 = vmax.xlane.f32.xlu0 %v1461
  %v1463 = vpop.xlane.xlu0 %1462
  %v1464 = vsel %vm285, %v1436, -inf
  %1465 = vmax.xlane.f32.xlu0 %v1464
  %v1466 = vpop.xlane.xlu0 %1465
  %v1467 = vsel %vm285, %v1437, -inf
  %1468 = vmax.xlane.f32.xlu0 %v1467
  %v1469 = vpop.xlane.xlu0 %1468
  %v1470 = vsel %vm285, %v1438, -inf
  %1471 = vmax.xlane.f32.xlu0 %v1470
  %v1472 = vpop.xlane.xlu0 %1471
  %v1473 = vsel %vm285, %v1439, -inf
  %1474 = vmax.xlane.f32.xlu0 %v1473
  %v1475 = vpop.xlane.xlu0 %1474
  %v1476 = vsel %vm285, %v1440, -inf
  %1477 = vmax.xlane.f32.xlu0 %v1476
  %v1478 = vpop.xlane.xlu0 %1477
  %v1479 = vsel %vm285, %v1441, -inf
  %1480 = vmax.xlane.f32.xlu0 %v1479
  %v1481 = vpop.xlane.xlu0 %1480
  %v1482 = vsel %vm285, %v1442, -inf
  %1483 = vmax.xlane.f32.xlu0 %v1482
  %v1484 = vpop.xlane.xlu0 %1483
  %v1485 = vsel %vm285, %v1443, -inf
  %1486 = vmax.xlane.f32.xlu0 %v1485
  %v1487 = vpop.xlane.xlu0 %1486
  %v1488 = vsel %vm285, %v1444, -inf
  %1489 = vmax.xlane.f32.xlu0 %v1488
  %v1490 = vpop.xlane.xlu0 %1489
  %v1491 = vsel %vm285, %v1445, -inf
  %1492 = vmax.xlane.f32.xlu0 %v1491
  %v1493 = vpop.xlane.xlu0 %1492
  %v1494 = vsub.f32 %v1430, %v1448
  %v1495 = vsub.f32 %v1431, %v1451
  %v1496 = vsub.f32 %v1432, %v1454
  %v1497 = vsub.f32 %v1433, %v1457
  %v1498 = vsub.f32 %v1434, %v1460
  %v1499 = vsub.f32 %v1435, %v1463
  %v1500 = vsub.f32 %v1436, %v1466
  %v1501 = vsub.f32 %v1437, %v1469
  %v1502 = vsub.f32 %v1438, %v1472
  %v1503 = vsub.f32 %v1439, %v1475
  %v1504 = vsub.f32 %v1440, %v1478
  %v1505 = vsub.f32 %v1441, %v1481
  %v1506 = vsub.f32 %v1442, %v1484
  %v1507 = vsub.f32 %v1443, %v1487
  %v1508 = vsub.f32 %v1444, %v1490
  %v1509 = vsub.f32 %v1445, %v1493
  %v1510 = vmul.f32 %v1494, 1.442695
  %v1511 = vpow.pop %v1510
  %v1512 = vmul.f32 %v1495, 1.442695
  %v1513 = vpow.pop %v1512
  %v1514 = vmul.f32 %v1496, 1.442695
  %v1515 = vpow.pop %v1514
  %v1516 = vmul.f32 %v1497, 1.442695
  %v1517 = vpow.pop %v1516
  %v1518 = vmul.f32 %v1498, 1.442695
  %v1519 = vpow.pop %v1518
  %v1520 = vmul.f32 %v1499, 1.442695
  %v1521 = vpow.pop %v1520
  %v1522 = vmul.f32 %v1500, 1.442695
  %v1523 = vpow.pop %v1522
  %v1524 = vmul.f32 %v1501, 1.442695
  %v1525 = vpow.pop %v1524
  %v1526 = vmul.f32 %v1502, 1.442695
  %v1527 = vpow.pop %v1526
  %v1528 = vmul.f32 %v1503, 1.442695
  %v1529 = vpow.pop %v1528
  %v1530 = vmul.f32 %v1504, 1.442695
  %v1531 = vpow.pop %v1530
  %v1532 = vmul.f32 %v1505, 1.442695
  %v1533 = vpow.pop %v1532
  %v1534 = vmul.f32 %v1506, 1.442695
  %v1535 = vpow.pop %v1534
  %v1536 = vmul.f32 %v1507, 1.442695
  %v1537 = vpow.pop %v1536
  %v1538 = vmul.f32 %v1508, 1.442695
  %v1539 = vpow.pop %v1538
  %v1540 = vmul.f32 %v1509, 1.442695
  %v1541 = vpow.pop %v1540
  %v1542 = vsel %vm285, %v1511, 0.0
  %1543 = vadd.xlane.f32.xlu0 %v1542
  %v1544 = vpop.xlane.xlu0 %1543
  %v1545 = vsel %vm285, %v1513, 0.0
  %1546 = vadd.xlane.f32.xlu0 %v1545
  %v1547 = vpop.xlane.xlu0 %1546
  %v1548 = vsel %vm285, %v1515, 0.0
  %1549 = vadd.xlane.f32.xlu0 %v1548
  %v1550 = vpop.xlane.xlu0 %1549
  %v1551 = vsel %vm285, %v1517, 0.0
  %1552 = vadd.xlane.f32.xlu0 %v1551
  %v1553 = vpop.xlane.xlu0 %1552
  %v1554 = vsel %vm285, %v1519, 0.0
  %1555 = vadd.xlane.f32.xlu0 %v1554
  %v1556 = vpop.xlane.xlu0 %1555
  %v1557 = vsel %vm285, %v1521, 0.0
  %1558 = vadd.xlane.f32.xlu0 %v1557
  %v1559 = vpop.xlane.xlu0 %1558
  %v1560 = vsel %vm285, %v1523, 0.0
  %1561 = vadd.xlane.f32.xlu0 %v1560
  %v1562 = vpop.xlane.xlu0 %1561
  %v1563 = vsel %vm285, %v1525, 0.0
  %1564 = vadd.xlane.f32.xlu0 %v1563
  %v1565 = vpop.xlane.xlu0 %1564
  %v1566 = vsel %vm285, %v1527, 0.0
  %1567 = vadd.xlane.f32.xlu0 %v1566
  %v1568 = vpop.xlane.xlu0 %1567
  %v1569 = vsel %vm285, %v1529, 0.0
  %1570 = vadd.xlane.f32.xlu0 %v1569
  %v1571 = vpop.xlane.xlu0 %1570
  %v1572 = vsel %vm285, %v1531, 0.0
  %1573 = vadd.xlane.f32.xlu0 %v1572
  %v1574 = vpop.xlane.xlu0 %1573
  %v1575 = vsel %vm285, %v1533, 0.0
  %1576 = vadd.xlane.f32.xlu0 %v1575
  %v1577 = vpop.xlane.xlu0 %1576
  %v1578 = vsel %vm285, %v1535, 0.0
  %1579 = vadd.xlane.f32.xlu0 %v1578
  %v1580 = vpop.xlane.xlu0 %1579
  %v1581 = vsel %vm285, %v1537, 0.0
  %1582 = vadd.xlane.f32.xlu0 %v1581
  %v1583 = vpop.xlane.xlu0 %1582
  %v1584 = vsel %vm285, %v1539, 0.0
  %1585 = vadd.xlane.f32.xlu0 %v1584
  %v1586 = vpop.xlane.xlu0 %1585
  %v1587 = vsel %vm285, %v1541, 0.0
  %1588 = vadd.xlane.f32.xlu0 %v1587
  %v1589 = vpop.xlane.xlu0 %1588
  %v1590 = vrcp.pop %v1544
  %v1591 = vrcp.pop %v1547
  %v1592 = vrcp.pop %v1550
  %v1593 = vrcp.pop %v1553
  %v1594 = vrcp.pop %v1556
  %v1595 = vrcp.pop %v1559
  %v1596 = vrcp.pop %v1562
  %v1597 = vrcp.pop %v1565
  %v1598 = vrcp.pop %v1568
  %v1599 = vrcp.pop %v1571
  %v1600 = vrcp.pop %v1574
  %v1601 = vrcp.pop %v1577
  %v1602 = vrcp.pop %v1580
  %v1603 = vrcp.pop %v1583
  %v1604 = vrcp.pop %v1586
  %v1605 = vrcp.pop %v1589
  %v1606 = vmul.f32 %v1511, %v1590
  %v1607 = vmul.f32 %v1513, %v1591
  %v1608 = vmul.f32 %v1515, %v1592
  %v1609 = vmul.f32 %v1517, %v1593
  %v1610 = vmul.f32 %v1519, %v1594
  %v1611 = vmul.f32 %v1521, %v1595
  %v1612 = vmul.f32 %v1523, %v1596
  %v1613 = vmul.f32 %v1525, %v1597
  %v1614 = vmul.f32 %v1527, %v1598
  %v1615 = vmul.f32 %v1529, %v1599
  %v1616 = vmul.f32 %v1531, %v1600
  %v1617 = vmul.f32 %v1533, %v1601
  %v1618 = vmul.f32 %v1535, %v1602
  %v1619 = vmul.f32 %v1537, %v1603
  %v1620 = vmul.f32 %v1539, %v1604
  %v1621 = vmul.f32 %v1541, %v1605
  %v1623 = vsel %vm285, %v1606, 0
  %v1626 = vsel %vm285, %v1607, 0
  %v1629 = vsel %vm285, %v791, 0
  %1631 = vmatprep.subr.mxu0 0.0
  %1632 = vmatpush1.xpose.msra.mxu0 %v1629
  %1633 = vmatprep.subr.mxu0 0.0
  %1634 = vmatpush1.xpose.msra.mxu0 0.0
  %1635 = vmatprep.subr.mxu0 0.0
  %1636 = vmatpush1.xpose.msra.mxu0 0.0
  %1637 = vmatprep.subr.mxu0 0.0
  %1638 = vmatpush1.xpose.msra.mxu0 0.0
  %1639 = vmatprep.subr.mxu0 0.0
  %1640 = vmatpush1.xpose.msra.mxu0 0.0
  %1641 = vmatprep.subr.mxu0 0.0
  %1642 = vmatpush1.xpose.msra.mxu0 0.0
  %1643 = vmatprep.subr.mxu0 0.0
  %1644 = vmatpush1.xpose.msra.mxu0 0.0
  %1645 = vmatprep.subr.mxu0 0.0
  %1646 = vmatpush1.xpose.msra.mxu0 0.0
  %1647 = vmatprep.subr.mxu0 0.0
  %1648 = vmatpush1.xpose.msra.mxu0 0.0
  %1649 = vmatprep.subr.mxu0 0.0
  %1650 = vmatpush1.xpose.msra.mxu0 0.0
  %1651 = vmatprep.subr.mxu0 0.0
  %1652 = vmatpush1.xpose.msra.mxu0 0.0
  %1653 = vmatprep.subr.mxu0 0.0
  %1654 = vmatpush1.xpose.msra.mxu0 0.0
  %1655 = vmatprep.subr.mxu0 0.0
  %1656 = vmatpush1.xpose.msra.mxu0 0.0
  %1657 = vmatprep.subr.mxu0 0.0
  %1658 = vmatpush1.xpose.msra.mxu0 0.0
  %1659 = vmatprep.subr.mxu0 0.0
  %1660 = vmatpush1.xpose.msra.mxu0 0.0
  %1661 = vmatprep.subr.mxu0 0.0
  %1662 = vmatpush1.xpose.msra.mxu0 0.0
  %1663 = vmatprep.subr.mxu0 0.0
  %1664 = vmatpush1.xpose.msra.mxu0 0.0
  %1665 = vmatprep.subr.mxu0 0.0
  %1666 = vmatpush1.xpose.msra.mxu0 0.0
  %1667 = vmatprep.subr.mxu0 0.0
  %1668 = vmatpush1.xpose.msra.mxu0 0.0
  %1669 = vmatprep.subr.mxu0 0.0
  %1670 = vmatpush1.xpose.msra.mxu0 0.0
  %1671 = vmatprep.subr.mxu0 0.0
  %1672 = vmatpush1.xpose.msra.mxu0 0.0
  %1673 = vmatprep.subr.mxu0 0.0
  %1674 = vmatpush1.xpose.msra.mxu0 0.0
  %1675 = vmatprep.subr.mxu0 0.0
  %1676 = vmatpush1.xpose.msra.mxu0 0.0
  %1677 = vmatprep.subr.mxu0 0.0
  %1678 = vmatpush1.xpose.msra.mxu0 0.0
  %1679 = vmatprep.subr.mxu0 0.0
  %1680 = vmatpush1.xpose.msra.mxu0 0.0
  %1681 = vmatprep.subr.mxu0 0.0
  %1682 = vmatpush1.xpose.msra.mxu0 0.0
  %1683 = vmatprep.subr.mxu0 0.0
  %1684 = vmatpush1.xpose.msra.mxu0 0.0
  %1685 = vmatprep.subr.mxu0 0.0
  %1686 = vmatpush1.xpose.msra.mxu0 0.0
  %1687 = vmatprep.subr.mxu0 0.0
  %1688 = vmatpush1.xpose.msra.mxu0 0.0
  %1689 = vmatprep.subr.mxu0 0.0
  %1690 = vmatpush1.xpose.msra.mxu0 0.0
  %1691 = vmatprep.subr.mxu0 0.0
  %1692 = vmatpush1.xpose.msra.mxu0 0.0
  %1693 = vmatprep.subr.mxu0 0.0
  %1694 = vmatpush1.xpose.msra.mxu0 0.0
  %1695 = vmatprep.mubr.f32.mxu0 0.0
  %1696 = vmatmul.mubr.f32.gmra.mrb[0].mxu0 %v1623
  %v1697 = vpop.f32.mrb[0].mxu0
  %v1698 = vadd.f32 0.0, %v1697
  %v1699 = vpop.f32.mrb[0].mxu0
  %1700 = vmatprep.mubr.f32.mxu0 0.0
  %1701 = vmatmul.mubr.f32.gmra.mrb[0].mxu0 %v1626
  %v1702 = vpop.f32.mrb[0].mxu0
  %v1703 = vadd.f32 0.0, %v1702
  %v1704 = vpop.f32.mrb[0].mxu0
  %1705 = vdwg.mxu0
  %v1707 = vsel %vm285, %v1608, 0
  %v1710 = vsel %vm285, %v1609, 0
  %v1713 = vsel %vm285, %v792, 0
  %1715 = vmatprep.subr.mxu0 0.0
  %1716 = vmatpush1.xpose.msra.mxu0 %v1713
  %1717 = vmatprep.subr.mxu0 0.0
  %1718 = vmatpush1.xpose.msra.mxu0 0.0
  %1719 = vmatprep.subr.mxu0 0.0
  %1720 = vmatpush1.xpose.msra.mxu0 0.0
  %1721 = vmatprep.subr.mxu0 0.0
  %1722 = vmatpush1.xpose.msra.mxu0 0.0
  %1723 = vmatprep.subr.mxu0 0.0
  %1724 = vmatpush1.xpose.msra.mxu0 0.0
  %1725 = vmatprep.subr.mxu0 0.0
  %1726 = vmatpush1.xpose.msra.mxu0 0.0
  %1727 = vmatprep.subr.mxu0 0.0
  %1728 = vmatpush1.xpose.msra.mxu0 0.0
  %1729 = vmatprep.subr.mxu0 0.0
  %1730 = vmatpush1.xpose.msra.mxu0 0.0
  %1731 = vmatprep.subr.mxu0 0.0
  %1732 = vmatpush1.xpose.msra.mxu0 0.0
  %1733 = vmatprep.subr.mxu0 0.0
  %1734 = vmatpush1.xpose.msra.mxu0 0.0
  %1735 = vmatprep.subr.mxu0 0.0
  %1736 = vmatpush1.xpose.msra.mxu0 0.0
  %1737 = vmatprep.subr.mxu0 0.0
  %1738 = vmatpush1.xpose.msra.mxu0 0.0
  %1739 = vmatprep.subr.mxu0 0.0
  %1740 = vmatpush1.xpose.msra.mxu0 0.0
  %1741 = vmatprep.subr.mxu0 0.0
  %1742 = vmatpush1.xpose.msra.mxu0 0.0
  %1743 = vmatprep.subr.mxu0 0.0
  %1744 = vmatpush1.xpose.msra.mxu0 0.0
  %1745 = vmatprep.subr.mxu0 0.0
  %1746 = vmatpush1.xpose.msra.mxu0 0.0
  %1747 = vmatprep.subr.mxu0 0.0
  %1748 = vmatpush1.xpose.msra.mxu0 0.0
  %1749 = vmatprep.subr.mxu0 0.0
  %1750 = vmatpush1.xpose.msra.mxu0 0.0
  %1751 = vmatprep.subr.mxu0 0.0
  %1752 = vmatpush1.xpose.msra.mxu0 0.0
  %1753 = vmatprep.subr.mxu0 0.0
  %1754 = vmatpush1.xpose.msra.mxu0 0.0
  %1755 = vmatprep.subr.mxu0 0.0
  %1756 = vmatpush1.xpose.msra.mxu0 0.0
  %1757 = vmatprep.subr.mxu0 0.0
  %1758 = vmatpush1.xpose.msra.mxu0 0.0
  %1759 = vmatprep.subr.mxu0 0.0
  %1760 = vmatpush1.xpose.msra.mxu0 0.0
  %1761 = vmatprep.subr.mxu0 0.0
  %1762 = vmatpush1.xpose.msra.mxu0 0.0
  %1763 = vmatprep.subr.mxu0 0.0
  %1764 = vmatpush1.xpose.msra.mxu0 0.0
  %1765 = vmatprep.subr.mxu0 0.0
  %1766 = vmatpush1.xpose.msra.mxu0 0.0
  %1767 = vmatprep.subr.mxu0 0.0
  %1768 = vmatpush1.xpose.msra.mxu0 0.0
  %1769 = vmatprep.subr.mxu0 0.0
  %1770 = vmatpush1.xpose.msra.mxu0 0.0
  %1771 = vmatprep.subr.mxu0 0.0
  %1772 = vmatpush1.xpose.msra.mxu0 0.0
  %1773 = vmatprep.subr.mxu0 0.0
  %1774 = vmatpush1.xpose.msra.mxu0 0.0
  %1775 = vmatprep.subr.mxu0 0.0
  %1776 = vmatpush1.xpose.msra.mxu0 0.0
  %1777 = vmatprep.subr.mxu0 0.0
  %1778 = vmatpush1.xpose.msra.mxu0 0.0
  %1779 = vmatprep.mubr.f32.mxu0 0.0
  %1780 = vmatmul.mubr.f32.gmra.mrb[0].mxu0 %v1707
  %v1781 = vpop.f32.mrb[0].mxu0
  %v1782 = vadd.f32 0.0, %v1781
  %v1783 = vpop.f32.mrb[0].mxu0
  %1784 = vmatprep.mubr.f32.mxu0 0.0
  %1785 = vmatmul.mubr.f32.gmra.mrb[0].mxu0 %v1710
  %v1786 = vpop.f32.mrb[0].mxu0
  %v1787 = vadd.f32 0.0, %v1786
  %v1788 = vpop.f32.mrb[0].mxu0
  %1789 = vdwg.mxu0
  %v1791 = vsel %vm285, %v1610, 0
  %v1794 = vsel %vm285, %v1611, 0
  %v1797 = vsel %vm285, %v793, 0
  %1799 = vmatprep.subr.mxu0 0.0
  %1800 = vmatpush1.xpose.msra.mxu0 %v1797
  %1801 = vmatprep.subr.mxu0 0.0
  %1802 = vmatpush1.xpose.msra.mxu0 0.0
  %1803 = vmatprep.subr.mxu0 0.0
  %1804 = vmatpush1.xpose.msra.mxu0 0.0
  %1805 = vmatprep.subr.mxu0 0.0
  %1806 = vmatpush1.xpose.msra.mxu0 0.0
  %1807 = vmatprep.subr.mxu0 0.0
  %1808 = vmatpush1.xpose.msra.mxu0 0.0
  %1809 = vmatprep.subr.mxu0 0.0
  %1810 = vmatpush1.xpose.msra.mxu0 0.0
  %1811 = vmatprep.subr.mxu0 0.0
  %1812 = vmatpush1.xpose.msra.mxu0 0.0
  %1813 = vmatprep.subr.mxu0 0.0
  %1814 = vmatpush1.xpose.msra.mxu0 0.0
  %1815 = vmatprep.subr.mxu0 0.0
  %1816 = vmatpush1.xpose.msra.mxu0 0.0
  %1817 = vmatprep.subr.mxu0 0.0
  %1818 = vmatpush1.xpose.msra.mxu0 0.0
  %1819 = vmatprep.subr.mxu0 0.0
  %1820 = vmatpush1.xpose.msra.mxu0 0.0
  %1821 = vmatprep.subr.mxu0 0.0
  %1822 = vmatpush1.xpose.msra.mxu0 0.0
  %1823 = vmatprep.subr.mxu0 0.0
  %1824 = vmatpush1.xpose.msra.mxu0 0.0
  %1825 = vmatprep.subr.mxu0 0.0
  %1826 = vmatpush1.xpose.msra.mxu0 0.0
  %1827 = vmatprep.subr.mxu0 0.0
  %1828 = vmatpush1.xpose.msra.mxu0 0.0
  %1829 = vmatprep.subr.mxu0 0.0
  %1830 = vmatpush1.xpose.msra.mxu0 0.0
  %1831 = vmatprep.subr.mxu0 0.0
  %1832 = vmatpush1.xpose.msra.mxu0 0.0
  %1833 = vmatprep.subr.mxu0 0.0
  %1834 = vmatpush1.xpose.msra.mxu0 0.0
  %1835 = vmatprep.subr.mxu0 0.0
  %1836 = vmatpush1.xpose.msra.mxu0 0.0
  %1837 = vmatprep.subr.mxu0 0.0
  %1838 = vmatpush1.xpose.msra.mxu0 0.0
  %1839 = vmatprep.subr.mxu0 0.0
  %1840 = vmatpush1.xpose.msra.mxu0 0.0
  %1841 = vmatprep.subr.mxu0 0.0
  %1842 = vmatpush1.xpose.msra.mxu0 0.0
  %1843 = vmatprep.subr.mxu0 0.0
  %1844 = vmatpush1.xpose.msra.mxu0 0.0
  %1845 = vmatprep.subr.mxu0 0.0
  %1846 = vmatpush1.xpose.msra.mxu0 0.0
  %1847 = vmatprep.subr.mxu0 0.0
  %1848 = vmatpush1.xpose.msra.mxu0 0.0
  %1849 = vmatprep.subr.mxu0 0.0
  %1850 = vmatpush1.xpose.msra.mxu0 0.0
  %1851 = vmatprep.subr.mxu0 0.0
  %1852 = vmatpush1.xpose.msra.mxu0 0.0
  %1853 = vmatprep.subr.mxu0 0.0
  %1854 = vmatpush1.xpose.msra.mxu0 0.0
  %1855 = vmatprep.subr.mxu0 0.0
  %1856 = vmatpush1.xpose.msra.mxu0 0.0
  %1857 = vmatprep.subr.mxu0 0.0
  %1858 = vmatpush1.xpose.msra.mxu0 0.0
  %1859 = vmatprep.subr.mxu0 0.0
  %1860 = vmatpush1.xpose.msra.mxu0 0.0
  %1861 = vmatprep.subr.mxu0 0.0
  %1862 = vmatpush1.xpose.msra.mxu0 0.0
  %1863 = vmatprep.mubr.f32.mxu0 0.0
  %1864 = vmatmul.mubr.f32.gmra.mrb[0].mxu0 %v1791
  %v1865 = vpop.f32.mrb[0].mxu0
  %v1866 = vadd.f32 0.0, %v1865
  %v1867 = vpop.f32.mrb[0].mxu0
  %1868 = vmatprep.mubr.f32.mxu0 0.0
  %1869 = vmatmul.mubr.f32.gmra.mrb[0].mxu0 %v1794
  %v1870 = vpop.f32.mrb[0].mxu0
  %v1871 = vadd.f32 0.0, %v1870
  %v1872 = vpop.f32.mrb[0].mxu0
  %1873 = vdwg.mxu0
  %v1875 = vsel %vm285, %v1612, 0
  %v1878 = vsel %vm285, %v1613, 0
  %v1881 = vsel %vm285, %v794, 0
  %1883 = vmatprep.subr.mxu0 0.0
  %1884 = vmatpush1.xpose.msra.mxu0 %v1881
  %1885 = vmatprep.subr.mxu0 0.0
  %1886 = vmatpush1.xpose.msra.mxu0 0.0
  %1887 = vmatprep.subr.mxu0 0.0
  %1888 = vmatpush1.xpose.msra.mxu0 0.0
  %1889 = vmatprep.subr.mxu0 0.0
  %1890 = vmatpush1.xpose.msra.mxu0 0.0
  %1891 = vmatprep.subr.mxu0 0.0
  %1892 = vmatpush1.xpose.msra.mxu0 0.0
  %1893 = vmatprep.subr.mxu0 0.0
  %1894 = vmatpush1.xpose.msra.mxu0 0.0
  %1895 = vmatprep.subr.mxu0 0.0
  %1896 = vmatpush1.xpose.msra.mxu0 0.0
  %1897 = vmatprep.subr.mxu0 0.0
  %1898 = vmatpush1.xpose.msra.mxu0 0.0
  %1899 = vmatprep.subr.mxu0 0.0
  %1900 = vmatpush1.xpose.msra.mxu0 0.0
  %1901 = vmatprep.subr.mxu0 0.0
  %1902 = vmatpush1.xpose.msra.mxu0 0.0
  %1903 = vmatprep.subr.mxu0 0.0
  %1904 = vmatpush1.xpose.msra.mxu0 0.0
  %1905 = vmatprep.subr.mxu0 0.0
  %1906 = vmatpush1.xpose.msra.mxu0 0.0
  %1907 = vmatprep.subr.mxu0 0.0
  %1908 = vmatpush1.xpose.msra.mxu0 0.0
  %1909 = vmatprep.subr.mxu0 0.0
  %1910 = vmatpush1.xpose.msra.mxu0 0.0
  %1911 = vmatprep.subr.mxu0 0.0
  %1912 = vmatpush1.xpose.msra.mxu0 0.0
  %1913 = vmatprep.subr.mxu0 0.0
  %1914 = vmatpush1.xpose.msra.mxu0 0.0
  %1915 = vmatprep.subr.mxu0 0.0
  %1916 = vmatpush1.xpose.msra.mxu0 0.0
  %1917 = vmatprep.subr.mxu0 0.0
  %1918 = vmatpush1.xpose.msra.mxu0 0.0
  %1919 = vmatprep.subr.mxu0 0.0
  %1920 = vmatpush1.xpose.msra.mxu0 0.0
  %1921 = vmatprep.subr.mxu0 0.0
  %1922 = vmatpush1.xpose.msra.mxu0 0.0
  %1923 = vmatprep.subr.mxu0 0.0
  %1924 = vmatpush1.xpose.msra.mxu0 0.0
  %1925 = vmatprep.subr.mxu0 0.0
  %1926 = vmatpush1.xpose.msra.mxu0 0.0
  %1927 = vmatprep.subr.mxu0 0.0
  %1928 = vmatpush1.xpose.msra.mxu0 0.0
  %1929 = vmatprep.subr.mxu0 0.0
  %1930 = vmatpush1.xpose.msra.mxu0 0.0
  %1931 = vmatprep.subr.mxu0 0.0
  %1932 = vmatpush1.xpose.msra.mxu0 0.0
  %1933 = vmatprep.subr.mxu0 0.0
  %1934 = vmatpush1.xpose.msra.mxu0 0.0
  %1935 = vmatprep.subr.mxu0 0.0
  %1936 = vmatpush1.xpose.msra.mxu0 0.0
  %1937 = vmatprep.subr.mxu0 0.0
  %1938 = vmatpush1.xpose.msra.mxu0 0.0
  %1939 = vmatprep.subr.mxu0 0.0
  %1940 = vmatpush1.xpose.msra.mxu0 0.0
  %1941 = vmatprep.subr.mxu0 0.0
  %1942 = vmatpush1.xpose.msra.mxu0 0.0
  %1943 = vmatprep.subr.mxu0 0.0
  %1944 = vmatpush1.xpose.msra.mxu0 0.0
  %1945 = vmatprep.subr.mxu0 0.0
  %1946 = vmatpush1.xpose.msra.mxu0 0.0
  %1947 = vmatprep.mubr.f32.mxu0 0.0
  %1948 = vmatmul.mubr.f32.gmra.mrb[0].mxu0 %v1875
  %v1949 = vpop.f32.mrb[0].mxu0
  %v1950 = vadd.f32 0.0, %v1949
  %v1951 = vpop.f32.mrb[0].mxu0
  %1952 = vmatprep.mubr.f32.mxu0 0.0
  %1953 = vmatmul.mubr.f32.gmra.mrb[0].mxu0 %v1878
  %v1954 = vpop.f32.mrb[0].mxu0
  %v1955 = vadd.f32 0.0, %v1954
  %v1956 = vpop.f32.mrb[0].mxu0
  %1957 = vdwg.mxu0
  %v1959 = vsel %vm285, %v1614, 0
  %v1962 = vsel %vm285, %v1615, 0
  %v1965 = vsel %vm285, %v795, 0
  %1967 = vmatprep.subr.mxu0 0.0
  %1968 = vmatpush1.xpose.msra.mxu0 %v1965
  %1969 = vmatprep.subr.mxu0 0.0
  %1970 = vmatpush1.xpose.msra.mxu0 0.0
  %1971 = vmatprep.subr.mxu0 0.0
  %1972 = vmatpush1.xpose.msra.mxu0 0.0
  %1973 = vmatprep.subr.mxu0 0.0
  %1974 = vmatpush1.xpose.msra.mxu0 0.0
  %1975 = vmatprep.subr.mxu0 0.0
  %1976 = vmatpush1.xpose.msra.mxu0 0.0
  %1977 = vmatprep.subr.mxu0 0.0
  %1978 = vmatpush1.xpose.msra.mxu0 0.0
  %1979 = vmatprep.subr.mxu0 0.0
  %1980 = vmatpush1.xpose.msra.mxu0 0.0
  %1981 = vmatprep.subr.mxu0 0.0
  %1982 = vmatpush1.xpose.msra.mxu0 0.0
  %1983 = vmatprep.subr.mxu0 0.0
  %1984 = vmatpush1.xpose.msra.mxu0 0.0
  %1985 = vmatprep.subr.mxu0 0.0
  %1986 = vmatpush1.xpose.msra.mxu0 0.0
  %1987 = vmatprep.subr.mxu0 0.0
  %1988 = vmatpush1.xpose.msra.mxu0 0.0
  %1989 = vmatprep.subr.mxu0 0.0
  %1990 = vmatpush1.xpose.msra.mxu0 0.0
  %1991 = vmatprep.subr.mxu0 0.0
  %1992 = vmatpush1.xpose.msra.mxu0 0.0
  %1993 = vmatprep.subr.mxu0 0.0
  %1994 = vmatpush1.xpose.msra.mxu0 0.0
  %1995 = vmatprep.subr.mxu0 0.0
  %1996 = vmatpush1.xpose.msra.mxu0 0.0
  %1997 = vmatprep.subr.mxu0 0.0
  %1998 = vmatpush1.xpose.msra.mxu0 0.0
  %1999 = vmatprep.subr.mxu0 0.0
  %2000 = vmatpush1.xpose.msra.mxu0 0.0
  %2001 = vmatprep.subr.mxu0 0.0
  %2002 = vmatpush1.xpose.msra.mxu0 0.0
  %2003 = vmatprep.subr.mxu0 0.0
  %2004 = vmatpush1.xpose.msra.mxu0 0.0
  %2005 = vmatprep.subr.mxu0 0.0
  %2006 = vmatpush1.xpose.msra.mxu0 0.0
  %2007 = vmatprep.subr.mxu0 0.0
  %2008 = vmatpush1.xpose.msra.mxu0 0.0
  %2009 = vmatprep.subr.mxu0 0.0
  %2010 = vmatpush1.xpose.msra.mxu0 0.0
  %2011 = vmatprep.subr.mxu0 0.0
  %2012 = vmatpush1.xpose.msra.mxu0 0.0
  %2013 = vmatprep.subr.mxu0 0.0
  %2014 = vmatpush1.xpose.msra.mxu0 0.0
  %2015 = vmatprep.subr.mxu0 0.0
  %2016 = vmatpush1.xpose.msra.mxu0 0.0
  %2017 = vmatprep.subr.mxu0 0.0
  %2018 = vmatpush1.xpose.msra.mxu0 0.0
  %2019 = vmatprep.subr.mxu0 0.0
  %2020 = vmatpush1.xpose.msra.mxu0 0.0
  %2021 = vmatprep.subr.mxu0 0.0
  %2022 = vmatpush1.xpose.msra.mxu0 0.0
  %2023 = vmatprep.subr.mxu0 0.0
  %2024 = vmatpush1.xpose.msra.mxu0 0.0
  %2025 = vmatprep.subr.mxu0 0.0
  %2026 = vmatpush1.xpose.msra.mxu0 0.0
  %2027 = vmatprep.subr.mxu0 0.0
  %2028 = vmatpush1.xpose.msra.mxu0 0.0
  %2029 = vmatprep.subr.mxu0 0.0
  %2030 = vmatpush1.xpose.msra.mxu0 0.0
  %2031 = vmatprep.mubr.f32.mxu0 0.0
  %2032 = vmatmul.mubr.f32.gmra.mrb[0].mxu0 %v1959
  %v2033 = vpop.f32.mrb[0].mxu0
  %v2034 = vadd.f32 0.0, %v2033
  %v2035 = vpop.f32.mrb[0].mxu0
  %2036 = vmatprep.mubr.f32.mxu0 0.0
  %2037 = vmatmul.mubr.f32.gmra.mrb[0].mxu0 %v1962
  %v2038 = vpop.f32.mrb[0].mxu0
  %v2039 = vadd.f32 0.0, %v2038
  %v2040 = vpop.f32.mrb[0].mxu0
  %2041 = vdwg.mxu0
  %v2043 = vsel %vm285, %v1616, 0
  %v2046 = vsel %vm285, %v1617, 0
  %v2049 = vsel %vm285, %v796, 0
  %2051 = vmatprep.subr.mxu0 0.0
  %2052 = vmatpush1.xpose.msra.mxu0 %v2049
  %2053 = vmatprep.subr.mxu0 0.0
  %2054 = vmatpush1.xpose.msra.mxu0 0.0
  %2055 = vmatprep.subr.mxu0 0.0
  %2056 = vmatpush1.xpose.msra.mxu0 0.0
  %2057 = vmatprep.subr.mxu0 0.0
  %2058 = vmatpush1.xpose.msra.mxu0 0.0
  %2059 = vmatprep.subr.mxu0 0.0
  %2060 = vmatpush1.xpose.msra.mxu0 0.0
  %2061 = vmatprep.subr.mxu0 0.0
  %2062 = vmatpush1.xpose.msra.mxu0 0.0
  %2063 = vmatprep.subr.mxu0 0.0
  %2064 = vmatpush1.xpose.msra.mxu0 0.0
  %2065 = vmatprep.subr.mxu0 0.0
  %2066 = vmatpush1.xpose.msra.mxu0 0.0
  %2067 = vmatprep.subr.mxu0 0.0
  %2068 = vmatpush1.xpose.msra.mxu0 0.0
  %2069 = vmatprep.subr.mxu0 0.0
  %2070 = vmatpush1.xpose.msra.mxu0 0.0
  %2071 = vmatprep.subr.mxu0 0.0
  %2072 = vmatpush1.xpose.msra.mxu0 0.0
  %2073 = vmatprep.subr.mxu0 0.0
  %2074 = vmatpush1.xpose.msra.mxu0 0.0
  %2075 = vmatprep.subr.mxu0 0.0
  %2076 = vmatpush1.xpose.msra.mxu0 0.0
  %2077 = vmatprep.subr.mxu0 0.0
  %2078 = vmatpush1.xpose.msra.mxu0 0.0
  %2079 = vmatprep.subr.mxu0 0.0
  %2080 = vmatpush1.xpose.msra.mxu0 0.0
  %2081 = vmatprep.subr.mxu0 0.0
  %2082 = vmatpush1.xpose.msra.mxu0 0.0
  %2083 = vmatprep.subr.mxu0 0.0
  %2084 = vmatpush1.xpose.msra.mxu0 0.0
  %2085 = vmatprep.subr.mxu0 0.0
  %2086 = vmatpush1.xpose.msra.mxu0 0.0
  %2087 = vmatprep.subr.mxu0 0.0
  %2088 = vmatpush1.xpose.msra.mxu0 0.0
  %2089 = vmatprep.subr.mxu0 0.0
  %2090 = vmatpush1.xpose.msra.mxu0 0.0
  %2091 = vmatprep.subr.mxu0 0.0
  %2092 = vmatpush1.xpose.msra.mxu0 0.0
  %2093 = vmatprep.subr.mxu0 0.0
  %2094 = vmatpush1.xpose.msra.mxu0 0.0
  %2095 = vmatprep.subr.mxu0 0.0
  %2096 = vmatpush1.xpose.msra.mxu0 0.0
  %2097 = vmatprep.subr.mxu0 0.0
  %2098 = vmatpush1.xpose.msra.mxu0 0.0
  %2099 = vmatprep.subr.mxu0 0.0
  %2100 = vmatpush1.xpose.msra.mxu0 0.0
  %2101 = vmatprep.subr.mxu0 0.0
  %2102 = vmatpush1.xpose.msra.mxu0 0.0
  %2103 = vmatprep.subr.mxu0 0.0
  %2104 = vmatpush1.xpose.msra.mxu0 0.0
  %2105 = vmatprep.subr.mxu0 0.0
  %2106 = vmatpush1.xpose.msra.mxu0 0.0
  %2107 = vmatprep.subr.mxu0 0.0
  %2108 = vmatpush1.xpose.msra.mxu0 0.0
  %2109 = vmatprep.subr.mxu0 0.0
  %2110 = vmatpush1.xpose.msra.mxu0 0.0
  %2111 = vmatprep.subr.mxu0 0.0
  %2112 = vmatpush1.xpose.msra.mxu0 0.0
  %2113 = vmatprep.subr.mxu0 0.0
  %2114 = vmatpush1.xpose.msra.mxu0 0.0
  %2115 = vmatprep.mubr.f32.mxu0 0.0
  %2116 = vmatmul.mubr.f32.gmra.mrb[0].mxu0 %v2043
  %v2117 = vpop.f32.mrb[0].mxu0
  %v2118 = vadd.f32 0.0, %v2117
  %v2119 = vpop.f32.mrb[0].mxu0
  %2120 = vmatprep.mubr.f32.mxu0 0.0
  %2121 = vmatmul.mubr.f32.gmra.mrb[0].mxu0 %v2046
  %v2122 = vpop.f32.mrb[0].mxu0
  %v2123 = vadd.f32 0.0, %v2122
  %v2124 = vpop.f32.mrb[0].mxu0
  %2125 = vdwg.mxu0
  %v2127 = vsel %vm285, %v1618, 0
  %v2130 = vsel %vm285, %v1619, 0
  %v2133 = vsel %vm285, %v797, 0
  %2135 = vmatprep.subr.mxu0 0.0
  %2136 = vmatpush1.xpose.msra.mxu0 %v2133
  %2137 = vmatprep.subr.mxu0 0.0
  %2138 = vmatpush1.xpose.msra.mxu0 0.0
  %2139 = vmatprep.subr.mxu0 0.0
  %2140 = vmatpush1.xpose.msra.mxu0 0.0
  %2141 = vmatprep.subr.mxu0 0.0
  %2142 = vmatpush1.xpose.msra.mxu0 0.0
  %2143 = vmatprep.subr.mxu0 0.0
  %2144 = vmatpush1.xpose.msra.mxu0 0.0
  %2145 = vmatprep.subr.mxu0 0.0
  %2146 = vmatpush1.xpose.msra.mxu0 0.0
  %2147 = vmatprep.subr.mxu0 0.0
  %2148 = vmatpush1.xpose.msra.mxu0 0.0
  %2149 = vmatprep.subr.mxu0 0.0
  %2150 = vmatpush1.xpose.msra.mxu0 0.0
  %2151 = vmatprep.subr.mxu0 0.0
  %2152 = vmatpush1.xpose.msra.mxu0 0.0
  %2153 = vmatprep.subr.mxu0 0.0
  %2154 = vmatpush1.xpose.msra.mxu0 0.0
  %2155 = vmatprep.subr.mxu0 0.0
  %2156 = vmatpush1.xpose.msra.mxu0 0.0
  %2157 = vmatprep.subr.mxu0 0.0
  %2158 = vmatpush1.xpose.msra.mxu0 0.0
  %2159 = vmatprep.subr.mxu0 0.0
  %2160 = vmatpush1.xpose.msra.mxu0 0.0
  %2161 = vmatprep.subr.mxu0 0.0
  %2162 = vmatpush1.xpose.msra.mxu0 0.0
  %2163 = vmatprep.subr.mxu0 0.0
  %2164 = vmatpush1.xpose.msra.mxu0 0.0
  %2165 = vmatprep.subr.mxu0 0.0
  %2166 = vmatpush1.xpose.msra.mxu0 0.0
  %2167 = vmatprep.subr.mxu0 0.0
  %2168 = vmatpush1.xpose.msra.mxu0 0.0
  %2169 = vmatprep.subr.mxu0 0.0
  %2170 = vmatpush1.xpose.msra.mxu0 0.0
  %2171 = vmatprep.subr.mxu0 0.0
  %2172 = vmatpush1.xpose.msra.mxu0 0.0
  %2173 = vmatprep.subr.mxu0 0.0
  %2174 = vmatpush1.xpose.msra.mxu0 0.0
  %2175 = vmatprep.subr.mxu0 0.0
  %2176 = vmatpush1.xpose.msra.mxu0 0.0
  %2177 = vmatprep.subr.mxu0 0.0
  %2178 = vmatpush1.xpose.msra.mxu0 0.0
  %2179 = vmatprep.subr.mxu0 0.0
  %2180 = vmatpush1.xpose.msra.mxu0 0.0
  %2181 = vmatprep.subr.mxu0 0.0
  %2182 = vmatpush1.xpose.msra.mxu0 0.0
  %2183 = vmatprep.subr.mxu0 0.0
  %2184 = vmatpush1.xpose.msra.mxu0 0.0
  %2185 = vmatprep.subr.mxu0 0.0
  %2186 = vmatpush1.xpose.msra.mxu0 0.0
  %2187 = vmatprep.subr.mxu0 0.0
  %2188 = vmatpush1.xpose.msra.mxu0 0.0
  %2189 = vmatprep.subr.mxu0 0.0
  %2190 = vmatpush1.xpose.msra.mxu0 0.0
  %2191 = vmatprep.subr.mxu0 0.0
  %2192 = vmatpush1.xpose.msra.mxu0 0.0
  %2193 = vmatprep.subr.mxu0 0.0
  %2194 = vmatpush1.xpose.msra.mxu0 0.0
  %2195 = vmatprep.subr.mxu0 0.0
  %2196 = vmatpush1.xpose.msra.mxu0 0.0
  %2197 = vmatprep.subr.mxu0 0.0
  %2198 = vmatpush1.xpose.msra.mxu0 0.0
  %2199 = vmatprep.mubr.f32.mxu0 0.0
  %2200 = vmatmul.mubr.f32.gmra.mrb[0].mxu0 %v2127
  %v2201 = vpop.f32.mrb[0].mxu0
  %v2202 = vadd.f32 0.0, %v2201
  %v2203 = vpop.f32.mrb[0].mxu0
  %2204 = vmatprep.mubr.f32.mxu0 0.0
  %2205 = vmatmul.mubr.f32.gmra.mrb[0].mxu0 %v2130
  %v2206 = vpop.f32.mrb[0].mxu0
  %v2207 = vadd.f32 0.0, %v2206
  %v2208 = vpop.f32.mrb[0].mxu0
  %2209 = vdwg.mxu0
  %v2211 = vsel %vm285, %v1620, 0
  %v2214 = vsel %vm285, %v1621, 0
  %v2217 = vsel %vm285, %v798, 0
  %2219 = vmatprep.subr.mxu0 0.0
  %2220 = vmatpush1.xpose.msra.mxu0 %v2217
  %2221 = vmatprep.subr.mxu0 0.0
  %2222 = vmatpush1.xpose.msra.mxu0 0.0
  %2223 = vmatprep.subr.mxu0 0.0
  %2224 = vmatpush1.xpose.msra.mxu0 0.0
  %2225 = vmatprep.subr.mxu0 0.0
  %2226 = vmatpush1.xpose.msra.mxu0 0.0
  %2227 = vmatprep.subr.mxu0 0.0
  %2228 = vmatpush1.xpose.msra.mxu0 0.0
  %2229 = vmatprep.subr.mxu0 0.0
  %2230 = vmatpush1.xpose.msra.mxu0 0.0
  %2231 = vmatprep.subr.mxu0 0.0
  %2232 = vmatpush1.xpose.msra.mxu0 0.0
  %2233 = vmatprep.subr.mxu0 0.0
  %2234 = vmatpush1.xpose.msra.mxu0 0.0
  %2235 = vmatprep.subr.mxu0 0.0
  %2236 = vmatpush1.xpose.msra.mxu0 0.0
  %2237 = vmatprep.subr.mxu0 0.0
  %2238 = vmatpush1.xpose.msra.mxu0 0.0
  %2239 = vmatprep.subr.mxu0 0.0
  %2240 = vmatpush1.xpose.msra.mxu0 0.0
  %2241 = vmatprep.subr.mxu0 0.0
  %2242 = vmatpush1.xpose.msra.mxu0 0.0
  %2243 = vmatprep.subr.mxu0 0.0
  %2244 = vmatpush1.xpose.msra.mxu0 0.0
  %2245 = vmatprep.subr.mxu0 0.0
  %2246 = vmatpush1.xpose.msra.mxu0 0.0
  %2247 = vmatprep.subr.mxu0 0.0
  %2248 = vmatpush1.xpose.msra.mxu0 0.0
  %2249 = vmatprep.subr.mxu0 0.0
  %2250 = vmatpush1.xpose.msra.mxu0 0.0
  %2251 = vmatprep.subr.mxu0 0.0
  %2252 = vmatpush1.xpose.msra.mxu0 0.0
  %2253 = vmatprep.subr.mxu0 0.0
  %2254 = vmatpush1.xpose.msra.mxu0 0.0
  %2255 = vmatprep.subr.mxu0 0.0
  %2256 = vmatpush1.xpose.msra.mxu0 0.0
  %2257 = vmatprep.subr.mxu0 0.0
  %2258 = vmatpush1.xpose.msra.mxu0 0.0
  %2259 = vmatprep.subr.mxu0 0.0
  %2260 = vmatpush1.xpose.msra.mxu0 0.0
  %2261 = vmatprep.subr.mxu0 0.0
  %2262 = vmatpush1.xpose.msra.mxu0 0.0
  %2263 = vmatprep.subr.mxu0 0.0
  %2264 = vmatpush1.xpose.msra.mxu0 0.0
  %2265 = vmatprep.subr.mxu0 0.0
  %2266 = vmatpush1.xpose.msra.mxu0 0.0
  %2267 = vmatprep.subr.mxu0 0.0
  %2268 = vmatpush1.xpose.msra.mxu0 0.0
  %2269 = vmatprep.subr.mxu0 0.0
  %2270 = vmatpush1.xpose.msra.mxu0 0.0
  %2271 = vmatprep.subr.mxu0 0.0
  %2272 = vmatpush1.xpose.msra.mxu0 0.0
  %2273 = vmatprep.subr.mxu0 0.0
  %2274 = vmatpush1.xpose.msra.mxu0 0.0
  %2275 = vmatprep.subr.mxu0 0.0
  %2276 = vmatpush1.xpose.msra.mxu0 0.0
  %2277 = vmatprep.subr.mxu0 0.0
  %2278 = vmatpush1.xpose.msra.mxu0 0.0
  %2279 = vmatprep.subr.mxu0 0.0
  %2280 = vmatpush1.xpose.msra.mxu0 0.0
  %2281 = vmatprep.subr.mxu0 0.0
  %2282 = vmatpush1.xpose.msra.mxu0 0.0
  %2283 = vmatprep.mubr.f32.mxu0 0.0
  %2284 = vmatmul.mubr.f32.gmra.mrb[0].mxu0 %v2211
  %v2285 = vpop.f32.mrb[0].mxu0
  %v2286 = vadd.f32 0.0, %v2285
  %v2287 = vpop.f32.mrb[0].mxu0
  %2288 = vmatprep.mubr.f32.mxu0 0.0
  %2289 = vmatmul.mubr.f32.gmra.mrb[0].mxu0 %v2214
  %v2290 = vpop.f32.mrb[0].mxu0
  %v2291 = vadd.f32 0.0, %v2290
  %v2292 = vpop.f32.mrb[0].mxu0
  %2293 = vdwg.mxu0
  %v2294 = vld [vmem:[%s4 + $0xc0] sm:$0xff]
  %v2295 = vld [vmem:[%s4 + $0xc8] sm:$0xff]
  %v2296 = vld [vmem:[%s4 + $0xd0] sm:$0xff]
  %v2297 = vld [vmem:[%s4 + $0xd8] sm:$0xff]
  %v2298 = vld [vmem:[%s4 + $0xe0] sm:$0xff]
  %v2299 = vld [vmem:[%s4 + $0xe8] sm:$0xff]
  %v2300 = vld [vmem:[%s4 + $0xf0] sm:$0xff]
  %v2301 = vld [vmem:[%s4 + $0xf8] sm:$0xff]
  %v2303 = vsel %vm187, %v1698, 0
  %v2306 = vsel %vm187, %v1703, 0
  %2308 = vmatprep.subr.mxu0 0.0
  %2309 = vmatpush1.msra.mxu0 %v2294
  %2310 = vmatprep.subr.mxu0 0.0
  %2311 = vmatpush1.msra.mxu0 0.0
  %2312 = vmatprep.subr.mxu0 0.0
  %2313 = vmatpush1.msra.mxu0 0.0
  %2314 = vmatprep.subr.mxu0 0.0
  %2315 = vmatpush1.msra.mxu0 0.0
  %2316 = vmatprep.subr.mxu0 0.0
  %2317 = vmatpush1.msra.mxu0 0.0
  %2318 = vmatprep.subr.mxu0 0.0
  %2319 = vmatpush1.msra.mxu0 0.0
  %2320 = vmatprep.subr.mxu0 0.0
  %2321 = vmatpush1.msra.mxu0 0.0
  %2322 = vmatprep.subr.mxu0 0.0
  %2323 = vmatpush1.msra.mxu0 0.0
  %2324 = vmatprep.subr.mxu0 0.0
  %2325 = vmatpush1.msra.mxu0 0.0
  %2326 = vmatprep.subr.mxu0 0.0
  %2327 = vmatpush1.msra.mxu0 0.0
  %2328 = vmatprep.subr.mxu0 0.0
  %2329 = vmatpush1.msra.mxu0 0.0
  %2330 = vmatprep.subr.mxu0 0.0
  %2331 = vmatpush1.msra.mxu0 0.0
  %2332 = vmatprep.subr.mxu0 0.0
  %2333 = vmatpush1.msra.mxu0 0.0
  %2334 = vmatprep.subr.mxu0 0.0
  %2335 = vmatpush1.msra.mxu0 0.0
  %2336 = vmatprep.subr.mxu0 0.0
  %2337 = vmatpush1.msra.mxu0 0.0
  %2338 = vmatprep.subr.mxu0 0.0
  %2339 = vmatpush1.msra.mxu0 0.0
  %2340 = vmatprep.subr.mxu0 0.0
  %2341 = vmatpush1.msra.mxu0 0.0
  %2342 = vmatprep.subr.mxu0 0.0
  %2343 = vmatpush1.msra.mxu0 0.0
  %2344 = vmatprep.subr.mxu0 0.0
  %2345 = vmatpush1.msra.mxu0 0.0
  %2346 = vmatprep.subr.mxu0 0.0
  %2347 = vmatpush1.msra.mxu0 0.0
  %2348 = vmatprep.subr.mxu0 0.0
  %2349 = vmatpush1.msra.mxu0 0.0
  %2350 = vmatprep.subr.mxu0 0.0
  %2351 = vmatpush1.msra.mxu0 0.0
  %2352 = vmatprep.subr.mxu0 0.0
  %2353 = vmatpush1.msra.mxu0 0.0
  %2354 = vmatprep.subr.mxu0 0.0
  %2355 = vmatpush1.msra.mxu0 0.0
  %2356 = vmatprep.subr.mxu0 0.0
  %2357 = vmatpush1.msra.mxu0 0.0
  %2358 = vmatprep.subr.mxu0 0.0
  %2359 = vmatpush1.msra.mxu0 0.0
  %2360 = vmatprep.subr.mxu0 0.0
  %2361 = vmatpush1.msra.mxu0 0.0
  %2362 = vmatprep.subr.mxu0 0.0
  %2363 = vmatpush1.msra.mxu0 0.0
  %2364 = vmatprep.subr.mxu0 0.0
  %2365 = vmatpush1.msra.mxu0 0.0
  %2366 = vmatprep.subr.mxu0 0.0
  %2367 = vmatpush1.msra.mxu0 0.0
  %2368 = vmatprep.subr.mxu0 0.0
  %2369 = vmatpush1.msra.mxu0 0.0
  %2370 = vmatprep.subr.mxu0 0.0
  %2371 = vmatpush1.msra.mxu0 0.0
  %2372 = vmatprep.mubr.f32.mxu0 0.0
  %2373 = vmatmul.mubr.f32.gmra.mrb[0].mxu0 %v2303
  %v2374 = vpop.f32.mrb[0].mxu0
  %v2375 = vadd.f32 0.0, %v2374
  %v2376 = vpop.f32.mrb[0].mxu0
  %2377 = vmatprep.mubr.f32.mxu0 0.0
  %2378 = vmatmul.mubr.f32.gmra.mrb[0].mxu0 %v2306
  %v2379 = vpop.f32.mrb[0].mxu0
  %v2380 = vadd.f32 0.0, %v2379
  %v2381 = vpop.f32.mrb[0].mxu0
  %2382 = vdwg.mxu0
  %v2384 = vsel %vm187, %v1782, 0
  %v2387 = vsel %vm187, %v1787, 0
  %2389 = vmatprep.subr.mxu0 0.0
  %2390 = vmatpush1.msra.mxu0 %v2295
  %2391 = vmatprep.subr.mxu0 0.0
  %2392 = vmatpush1.msra.mxu0 0.0
  %2393 = vmatprep.subr.mxu0 0.0
  %2394 = vmatpush1.msra.mxu0 0.0
  %2395 = vmatprep.subr.mxu0 0.0
  %2396 = vmatpush1.msra.mxu0 0.0
  %2397 = vmatprep.subr.mxu0 0.0
  %2398 = vmatpush1.msra.mxu0 0.0
  %2399 = vmatprep.subr.mxu0 0.0
  %2400 = vmatpush1.msra.mxu0 0.0
  %2401 = vmatprep.subr.mxu0 0.0
  %2402 = vmatpush1.msra.mxu0 0.0
  %2403 = vmatprep.subr.mxu0 0.0
  %2404 = vmatpush1.msra.mxu0 0.0
  %2405 = vmatprep.subr.mxu0 0.0
  %2406 = vmatpush1.msra.mxu0 0.0
  %2407 = vmatprep.subr.mxu0 0.0
  %2408 = vmatpush1.msra.mxu0 0.0
  %2409 = vmatprep.subr.mxu0 0.0
  %2410 = vmatpush1.msra.mxu0 0.0
  %2411 = vmatprep.subr.mxu0 0.0
  %2412 = vmatpush1.msra.mxu0 0.0
  %2413 = vmatprep.subr.mxu0 0.0
  %2414 = vmatpush1.msra.mxu0 0.0
  %2415 = vmatprep.subr.mxu0 0.0
  %2416 = vmatpush1.msra.mxu0 0.0
  %2417 = vmatprep.subr.mxu0 0.0
  %2418 = vmatpush1.msra.mxu0 0.0
  %2419 = vmatprep.subr.mxu0 0.0
  %2420 = vmatpush1.msra.mxu0 0.0
  %2421 = vmatprep.subr.mxu0 0.0
  %2422 = vmatpush1.msra.mxu0 0.0
  %2423 = vmatprep.subr.mxu0 0.0
  %2424 = vmatpush1.msra.mxu0 0.0
  %2425 = vmatprep.subr.mxu0 0.0
  %2426 = vmatpush1.msra.mxu0 0.0
  %2427 = vmatprep.subr.mxu0 0.0
  %2428 = vmatpush1.msra.mxu0 0.0
  %2429 = vmatprep.subr.mxu0 0.0
  %2430 = vmatpush1.msra.mxu0 0.0
  %2431 = vmatprep.subr.mxu0 0.0
  %2432 = vmatpush1.msra.mxu0 0.0
  %2433 = vmatprep.subr.mxu0 0.0
  %2434 = vmatpush1.msra.mxu0 0.0
  %2435 = vmatprep.subr.mxu0 0.0
  %2436 = vmatpush1.msra.mxu0 0.0
  %2437 = vmatprep.subr.mxu0 0.0
  %2438 = vmatpush1.msra.mxu0 0.0
  %2439 = vmatprep.subr.mxu0 0.0
  %2440 = vmatpush1.msra.mxu0 0.0
  %2441 = vmatprep.subr.mxu0 0.0
  %2442 = vmatpush1.msra.mxu0 0.0
  %2443 = vmatprep.subr.mxu0 0.0
  %2444 = vmatpush1.msra.mxu0 0.0
  %2445 = vmatprep.subr.mxu0 0.0
  %2446 = vmatpush1.msra.mxu0 0.0
  %2447 = vmatprep.subr.mxu0 0.0
  %2448 = vmatpush1.msra.mxu0 0.0
  %2449 = vmatprep.subr.mxu0 0.0
  %2450 = vmatpush1.msra.mxu0 0.0
  %2451 = vmatprep.subr.mxu0 0.0
  %2452 = vmatpush1.msra.mxu0 0.0
  %2453 = vmatprep.mubr.f32.mxu0 0.0
  %2454 = vmatmul.mubr.f32.gmra.mrb[0].mxu0 %v2384
  %v2455 = vpop.f32.mrb[0].mxu0
  %v2456 = vadd.f32 0.0, %v2455
  %v2457 = vpop.f32.mrb[0].mxu0
  %2458 = vmatprep.mubr.f32.mxu0 0.0
  %2459 = vmatmul.mubr.f32.gmra.mrb[0].mxu0 %v2387
  %v2460 = vpop.f32.mrb[0].mxu0
  %v2461 = vadd.f32 0.0, %v2460
  %v2462 = vpop.f32.mrb[0].mxu0
  %2463 = vdwg.mxu0
  %v2465 = vsel %vm187, %v1866, 0
  %v2468 = vsel %vm187, %v1871, 0
  %2470 = vmatprep.subr.mxu0 0.0
  %2471 = vmatpush1.msra.mxu0 %v2296
  %2472 = vmatprep.subr.mxu0 0.0
  %2473 = vmatpush1.msra.mxu0 0.0
  %2474 = vmatprep.subr.mxu0 0.0
  %2475 = vmatpush1.msra.mxu0 0.0
  %2476 = vmatprep.subr.mxu0 0.0
  %2477 = vmatpush1.msra.mxu0 0.0
  %2478 = vmatprep.subr.mxu0 0.0
  %2479 = vmatpush1.msra.mxu0 0.0
  %2480 = vmatprep.subr.mxu0 0.0
  %2481 = vmatpush1.msra.mxu0 0.0
  %2482 = vmatprep.subr.mxu0 0.0
  %2483 = vmatpush1.msra.mxu0 0.0
  %2484 = vmatprep.subr.mxu0 0.0
  %2485 = vmatpush1.msra.mxu0 0.0
  %2486 = vmatprep.subr.mxu0 0.0
  %2487 = vmatpush1.msra.mxu0 0.0
  %2488 = vmatprep.subr.mxu0 0.0
  %2489 = vmatpush1.msra.mxu0 0.0
  %2490 = vmatprep.subr.mxu0 0.0
  %2491 = vmatpush1.msra.mxu0 0.0
  %2492 = vmatprep.subr.mxu0 0.0
  %2493 = vmatpush1.msra.mxu0 0.0
  %2494 = vmatprep.subr.mxu0 0.0
  %2495 = vmatpush1.msra.mxu0 0.0
  %2496 = vmatprep.subr.mxu0 0.0
  %2497 = vmatpush1.msra.mxu0 0.0
  %2498 = vmatprep.subr.mxu0 0.0
  %2499 = vmatpush1.msra.mxu0 0.0
  %2500 = vmatprep.subr.mxu0 0.0
  %2501 = vmatpush1.msra.mxu0 0.0
  %2502 = vmatprep.subr.mxu0 0.0
  %2503 = vmatpush1.msra.mxu0 0.0
  %2504 = vmatprep.subr.mxu0 0.0
  %2505 = vmatpush1.msra.mxu0 0.0
  %2506 = vmatprep.subr.mxu0 0.0
  %2507 = vmatpush1.msra.mxu0 0.0
  %2508 = vmatprep.subr.mxu0 0.0
  %2509 = vmatpush1.msra.mxu0 0.0
  %2510 = vmatprep.subr.mxu0 0.0
  %2511 = vmatpush1.msra.mxu0 0.0
  %2512 = vmatprep.subr.mxu0 0.0
  %2513 = vmatpush1.msra.mxu0 0.0
  %2514 = vmatprep.subr.mxu0 0.0
  %2515 = vmatpush1.msra.mxu0 0.0
  %2516 = vmatprep.subr.mxu0 0.0
  %2517 = vmatpush1.msra.mxu0 0.0
  %2518 = vmatprep.subr.mxu0 0.0
  %2519 = vmatpush1.msra.mxu0 0.0
  %2520 = vmatprep.subr.mxu0 0.0
  %2521 = vmatpush1.msra.mxu0 0.0
  %2522 = vmatprep.subr.mxu0 0.0
  %2523 = vmatpush1.msra.mxu0 0.0
  %2524 = vmatprep.subr.mxu0 0.0
  %2525 = vmatpush1.msra.mxu0 0.0
  %2526 = vmatprep.subr.mxu0 0.0
  %2527 = vmatpush1.msra.mxu0 0.0
  %2528 = vmatprep.subr.mxu0 0.0
  %2529 = vmatpush1.msra.mxu0 0.0
  %2530 = vmatprep.subr.mxu0 0.0
  %2531 = vmatpush1.msra.mxu0 0.0
  %2532 = vmatprep.subr.mxu0 0.0
  %2533 = vmatpush1.msra.mxu0 0.0
  %2534 = vmatprep.mubr.f32.mxu0 0.0
  %2535 = vmatmul.mubr.f32.gmra.mrb[0].mxu0 %v2465
  %v2536 = vpop.f32.mrb[0].mxu0
  %v2537 = vadd.f32 0.0, %v2536
  %v2538 = vpop.f32.mrb[0].mxu0
  %2539 = vmatprep.mubr.f32.mxu0 0.0
  %2540 = vmatmul.mubr.f32.gmra.mrb[0].mxu0 %v2468
  %v2541 = vpop.f32.mrb[0].mxu0
  %v2542 = vadd.f32 0.0, %v2541
  %v2543 = vpop.f32.mrb[0].mxu0
  %2544 = vdwg.mxu0
  %v2546 = vsel %vm187, %v1950, 0
  %v2549 = vsel %vm187, %v1955, 0
  %2551 = vmatprep.subr.mxu0 0.0
  %2552 = vmatpush1.msra.mxu0 %v2297
  %2553 = vmatprep.subr.mxu0 0.0
  %2554 = vmatpush1.msra.mxu0 0.0
  %2555 = vmatprep.subr.mxu0 0.0
  %2556 = vmatpush1.msra.mxu0 0.0
  %2557 = vmatprep.subr.mxu0 0.0
  %2558 = vmatpush1.msra.mxu0 0.0
  %2559 = vmatprep.subr.mxu0 0.0
  %2560 = vmatpush1.msra.mxu0 0.0
  %2561 = vmatprep.subr.mxu0 0.0
  %2562 = vmatpush1.msra.mxu0 0.0
  %2563 = vmatprep.subr.mxu0 0.0
  %2564 = vmatpush1.msra.mxu0 0.0
  %2565 = vmatprep.subr.mxu0 0.0
  %2566 = vmatpush1.msra.mxu0 0.0
  %2567 = vmatprep.subr.mxu0 0.0
  %2568 = vmatpush1.msra.mxu0 0.0
  %2569 = vmatprep.subr.mxu0 0.0
  %2570 = vmatpush1.msra.mxu0 0.0
  %2571 = vmatprep.subr.mxu0 0.0
  %2572 = vmatpush1.msra.mxu0 0.0
  %2573 = vmatprep.subr.mxu0 0.0
  %2574 = vmatpush1.msra.mxu0 0.0
  %2575 = vmatprep.subr.mxu0 0.0
  %2576 = vmatpush1.msra.mxu0 0.0
  %2577 = vmatprep.subr.mxu0 0.0
  %2578 = vmatpush1.msra.mxu0 0.0
  %2579 = vmatprep.subr.mxu0 0.0
  %2580 = vmatpush1.msra.mxu0 0.0
  %2581 = vmatprep.subr.mxu0 0.0
  %2582 = vmatpush1.msra.mxu0 0.0
  %2583 = vmatprep.subr.mxu0 0.0
  %2584 = vmatpush1.msra.mxu0 0.0
  %2585 = vmatprep.subr.mxu0 0.0
  %2586 = vmatpush1.msra.mxu0 0.0
  %2587 = vmatprep.subr.mxu0 0.0
  %2588 = vmatpush1.msra.mxu0 0.0
  %2589 = vmatprep.subr.mxu0 0.0
  %2590 = vmatpush1.msra.mxu0 0.0
  %2591 = vmatprep.subr.mxu0 0.0
  %2592 = vmatpush1.msra.mxu0 0.0
  %2593 = vmatprep.subr.mxu0 0.0
  %2594 = vmatpush1.msra.mxu0 0.0
  %2595 = vmatprep.subr.mxu0 0.0
  %2596 = vmatpush1.msra.mxu0 0.0
  %2597 = vmatprep.subr.mxu0 0.0
  %2598 = vmatpush1.msra.mxu0 0.0
  %2599 = vmatprep.subr.mxu0 0.0
  %2600 = vmatpush1.msra.mxu0 0.0
  %2601 = vmatprep.subr.mxu0 0.0
  %2602 = vmatpush1.msra.mxu0 0.0
  %2603 = vmatprep.subr.mxu0 0.0
  %2604 = vmatpush1.msra.mxu0 0.0
  %2605 = vmatprep.subr.mxu0 0.0
  %2606 = vmatpush1.msra.mxu0 0.0
  %2607 = vmatprep.subr.mxu0 0.0
  %2608 = vmatpush1.msra.mxu0 0.0
  %2609 = vmatprep.subr.mxu0 0.0
  %2610 = vmatpush1.msra.mxu0 0.0
  %2611 = vmatprep.subr.mxu0 0.0
  %2612 = vmatpush1.msra.mxu0 0.0
  %2613 = vmatprep.subr.mxu0 0.0
  %2614 = vmatpush1.msra.mxu0 0.0
  %2615 = vmatprep.mubr.f32.mxu0 0.0
  %2616 = vmatmul.mubr.f32.gmra.mrb[0].mxu0 %v2546
  %v2617 = vpop.f32.mrb[0].mxu0
  %v2618 = vadd.f32 0.0, %v2617
  %v2619 = vpop.f32.mrb[0].mxu0
  %2620 = vmatprep.mubr.f32.mxu0 0.0
  %2621 = vmatmul.mubr.f32.gmra.mrb[0].mxu0 %v2549
  %v2622 = vpop.f32.mrb[0].mxu0
  %v2623 = vadd.f32 0.0, %v2622
  %v2624 = vpop.f32.mrb[0].mxu0
  %2625 = vdwg.mxu0
  %v2627 = vsel %vm187, %v2034, 0
  %v2630 = vsel %vm187, %v2039, 0
  %2632 = vmatprep.subr.mxu0 0.0
  %2633 = vmatpush1.msra.mxu0 %v2298
  %2634 = vmatprep.subr.mxu0 0.0
  %2635 = vmatpush1.msra.mxu0 0.0
  %2636 = vmatprep.subr.mxu0 0.0
  %2637 = vmatpush1.msra.mxu0 0.0
  %2638 = vmatprep.subr.mxu0 0.0
  %2639 = vmatpush1.msra.mxu0 0.0
  %2640 = vmatprep.subr.mxu0 0.0
  %2641 = vmatpush1.msra.mxu0 0.0
  %2642 = vmatprep.subr.mxu0 0.0
  %2643 = vmatpush1.msra.mxu0 0.0
  %2644 = vmatprep.subr.mxu0 0.0
  %2645 = vmatpush1.msra.mxu0 0.0
  %2646 = vmatprep.subr.mxu0 0.0
  %2647 = vmatpush1.msra.mxu0 0.0
  %2648 = vmatprep.subr.mxu0 0.0
  %2649 = vmatpush1.msra.mxu0 0.0
  %2650 = vmatprep.subr.mxu0 0.0
  %2651 = vmatpush1.msra.mxu0 0.0
  %2652 = vmatprep.subr.mxu0 0.0
  %2653 = vmatpush1.msra.mxu0 0.0
  %2654 = vmatprep.subr.mxu0 0.0
  %2655 = vmatpush1.msra.mxu0 0.0
  %2656 = vmatprep.subr.mxu0 0.0
  %2657 = vmatpush1.msra.mxu0 0.0
  %2658 = vmatprep.subr.mxu0 0.0
  %2659 = vmatpush1.msra.mxu0 0.0
  %2660 = vmatprep.subr.mxu0 0.0
  %2661 = vmatpush1.msra.mxu0 0.0
  %2662 = vmatprep.subr.mxu0 0.0
  %2663 = vmatpush1.msra.mxu0 0.0
  %2664 = vmatprep.subr.mxu0 0.0
  %2665 = vmatpush1.msra.mxu0 0.0
  %2666 = vmatprep.subr.mxu0 0.0
  %2667 = vmatpush1.msra.mxu0 0.0
  %2668 = vmatprep.subr.mxu0 0.0
  %2669 = vmatpush1.msra.mxu0 0.0
  %2670 = vmatprep.subr.mxu0 0.0
  %2671 = vmatpush1.msra.mxu0 0.0
  %2672 = vmatprep.subr.mxu0 0.0
  %2673 = vmatpush1.msra.mxu0 0.0
  %2674 = vmatprep.subr.mxu0 0.0
  %2675 = vmatpush1.msra.mxu0 0.0
  %2676 = vmatprep.subr.mxu0 0.0
  %2677 = vmatpush1.msra.mxu0 0.0
  %2678 = vmatprep.subr.mxu0 0.0
  %2679 = vmatpush1.msra.mxu0 0.0
  %2680 = vmatprep.subr.mxu0 0.0
  %2681 = vmatpush1.msra.mxu0 0.0
  %2682 = vmatprep.subr.mxu0 0.0
  %2683 = vmatpush1.msra.mxu0 0.0
  %2684 = vmatprep.subr.mxu0 0.0
  %2685 = vmatpush1.msra.mxu0 0.0
  %2686 = vmatprep.subr.mxu0 0.0
  %2687 = vmatpush1.msra.mxu0 0.0
  %2688 = vmatprep.subr.mxu0 0.0
  %2689 = vmatpush1.msra.mxu0 0.0
  %2690 = vmatprep.subr.mxu0 0.0
  %2691 = vmatpush1.msra.mxu0 0.0
  %2692 = vmatprep.subr.mxu0 0.0
  %2693 = vmatpush1.msra.mxu0 0.0
  %2694 = vmatprep.subr.mxu0 0.0
  %2695 = vmatpush1.msra.mxu0 0.0
  %2696 = vmatprep.mubr.f32.mxu0 0.0
  %2697 = vmatmul.mubr.f32.gmra.mrb[0].mxu0 %v2627
  %v2698 = vpop.f32.mrb[0].mxu0
  %v2699 = vadd.f32 0.0, %v2698
  %v2700 = vpop.f32.mrb[0].mxu0
  %2701 = vmatprep.mubr.f32.mxu0 0.0
  %2702 = vmatmul.mubr.f32.gmra.mrb[0].mxu0 %v2630
  %v2703 = vpop.f32.mrb[0].mxu0
  %v2704 = vadd.f32 0.0, %v2703
  %v2705 = vpop.f32.mrb[0].mxu0
  %2706 = vdwg.mxu0
  %v2708 = vsel %vm187, %v2118, 0
  %v2711 = vsel %vm187, %v2123, 0
  %2713 = vmatprep.subr.mxu0 0.0
  %2714 = vmatpush1.msra.mxu0 %v2299
  %2715 = vmatprep.subr.mxu0 0.0
  %2716 = vmatpush1.msra.mxu0 0.0
  %2717 = vmatprep.subr.mxu0 0.0
  %2718 = vmatpush1.msra.mxu0 0.0
  %2719 = vmatprep.subr.mxu0 0.0
  %2720 = vmatpush1.msra.mxu0 0.0
  %2721 = vmatprep.subr.mxu0 0.0
  %2722 = vmatpush1.msra.mxu0 0.0
  %2723 = vmatprep.subr.mxu0 0.0
  %2724 = vmatpush1.msra.mxu0 0.0
  %2725 = vmatprep.subr.mxu0 0.0
  %2726 = vmatpush1.msra.mxu0 0.0
  %2727 = vmatprep.subr.mxu0 0.0
  %2728 = vmatpush1.msra.mxu0 0.0
  %2729 = vmatprep.subr.mxu0 0.0
  %2730 = vmatpush1.msra.mxu0 0.0
  %2731 = vmatprep.subr.mxu0 0.0
  %2732 = vmatpush1.msra.mxu0 0.0
  %2733 = vmatprep.subr.mxu0 0.0
  %2734 = vmatpush1.msra.mxu0 0.0
  %2735 = vmatprep.subr.mxu0 0.0
  %2736 = vmatpush1.msra.mxu0 0.0
  %2737 = vmatprep.subr.mxu0 0.0
  %2738 = vmatpush1.msra.mxu0 0.0
  %2739 = vmatprep.subr.mxu0 0.0
  %2740 = vmatpush1.msra.mxu0 0.0
  %2741 = vmatprep.subr.mxu0 0.0
  %2742 = vmatpush1.msra.mxu0 0.0
  %2743 = vmatprep.subr.mxu0 0.0
  %2744 = vmatpush1.msra.mxu0 0.0
  %2745 = vmatprep.subr.mxu0 0.0
  %2746 = vmatpush1.msra.mxu0 0.0
  %2747 = vmatprep.subr.mxu0 0.0
  %2748 = vmatpush1.msra.mxu0 0.0
  %2749 = vmatprep.subr.mxu0 0.0
  %2750 = vmatpush1.msra.mxu0 0.0
  %2751 = vmatprep.subr.mxu0 0.0
  %2752 = vmatpush1.msra.mxu0 0.0
  %2753 = vmatprep.subr.mxu0 0.0
  %2754 = vmatpush1.msra.mxu0 0.0
  %2755 = vmatprep.subr.mxu0 0.0
  %2756 = vmatpush1.msra.mxu0 0.0
  %2757 = vmatprep.subr.mxu0 0.0
  %2758 = vmatpush1.msra.mxu0 0.0
  %2759 = vmatprep.subr.mxu0 0.0
  %2760 = vmatpush1.msra.mxu0 0.0
  %2761 = vmatprep.subr.mxu0 0.0
  %2762 = vmatpush1.msra.mxu0 0.0
  %2763 = vmatprep.subr.mxu0 0.0
  %2764 = vmatpush1.msra.mxu0 0.0
  %2765 = vmatprep.subr.mxu0 0.0
  %2766 = vmatpush1.msra.mxu0 0.0
  %2767 = vmatprep.subr.mxu0 0.0
  %2768 = vmatpush1.msra.mxu0 0.0
  %2769 = vmatprep.subr.mxu0 0.0
  %2770 = vmatpush1.msra.mxu0 0.0
  %2771 = vmatprep.subr.mxu0 0.0
  %2772 = vmatpush1.msra.mxu0 0.0
  %2773 = vmatprep.subr.mxu0 0.0
  %2774 = vmatpush1.msra.mxu0 0.0
  %2775 = vmatprep.subr.mxu0 0.0
  %2776 = vmatpush1.msra.mxu0 0.0
  %2777 = vmatprep.mubr.f32.mxu0 0.0
  %2778 = vmatmul.mubr.f32.gmra.mrb[0].mxu0 %v2708
  %v2779 = vpop.f32.mrb[0].mxu0
  %v2780 = vadd.f32 0.0, %v2779
  %v2781 = vpop.f32.mrb[0].mxu0
  %2782 = vmatprep.mubr.f32.mxu0 0.0
  %2783 = vmatmul.mubr.f32.gmra.mrb[0].mxu0 %v2711
  %v2784 = vpop.f32.mrb[0].mxu0
  %v2785 = vadd.f32 0.0, %v2784
  %v2786 = vpop.f32.mrb[0].mxu0
  %2787 = vdwg.mxu0
  %v2789 = vsel %vm187, %v2202, 0
  %v2792 = vsel %vm187, %v2207, 0
  %2794 = vmatprep.subr.mxu0 0.0
  %2795 = vmatpush1.msra.mxu0 %v2300
  %2796 = vmatprep.subr.mxu0 0.0
  %2797 = vmatpush1.msra.mxu0 0.0
  %2798 = vmatprep.subr.mxu0 0.0
  %2799 = vmatpush1.msra.mxu0 0.0
  %2800 = vmatprep.subr.mxu0 0.0
  %2801 = vmatpush1.msra.mxu0 0.0
  %2802 = vmatprep.subr.mxu0 0.0
  %2803 = vmatpush1.msra.mxu0 0.0
  %2804 = vmatprep.subr.mxu0 0.0
  %2805 = vmatpush1.msra.mxu0 0.0
  %2806 = vmatprep.subr.mxu0 0.0
  %2807 = vmatpush1.msra.mxu0 0.0
  %2808 = vmatprep.subr.mxu0 0.0
  %2809 = vmatpush1.msra.mxu0 0.0
  %2810 = vmatprep.subr.mxu0 0.0
  %2811 = vmatpush1.msra.mxu0 0.0
  %2812 = vmatprep.subr.mxu0 0.0
  %2813 = vmatpush1.msra.mxu0 0.0
  %2814 = vmatprep.subr.mxu0 0.0
  %2815 = vmatpush1.msra.mxu0 0.0
  %2816 = vmatprep.subr.mxu0 0.0
  %2817 = vmatpush1.msra.mxu0 0.0
  %2818 = vmatprep.subr.mxu0 0.0
  %2819 = vmatpush1.msra.mxu0 0.0
  %2820 = vmatprep.subr.mxu0 0.0
  %2821 = vmatpush1.msra.mxu0 0.0
  %2822 = vmatprep.subr.mxu0 0.0
  %2823 = vmatpush1.msra.mxu0 0.0
  %2824 = vmatprep.subr.mxu0 0.0
  %2825 = vmatpush1.msra.mxu0 0.0
  %2826 = vmatprep.subr.mxu0 0.0
  %2827 = vmatpush1.msra.mxu0 0.0
  %2828 = vmatprep.subr.mxu0 0.0
  %2829 = vmatpush1.msra.mxu0 0.0
  %2830 = vmatprep.subr.mxu0 0.0
  %2831 = vmatpush1.msra.mxu0 0.0
  %2832 = vmatprep.subr.mxu0 0.0
  %2833 = vmatpush1.msra.mxu0 0.0
  %2834 = vmatprep.subr.mxu0 0.0
  %2835 = vmatpush1.msra.mxu0 0.0
  %2836 = vmatprep.subr.mxu0 0.0
  %2837 = vmatpush1.msra.mxu0 0.0
  %2838 = vmatprep.subr.mxu0 0.0
  %2839 = vmatpush1.msra.mxu0 0.0
  %2840 = vmatprep.subr.mxu0 0.0
  %2841 = vmatpush1.msra.mxu0 0.0
  %2842 = vmatprep.subr.mxu0 0.0
  %2843 = vmatpush1.msra.mxu0 0.0
  %2844 = vmatprep.subr.mxu0 0.0
  %2845 = vmatpush1.msra.mxu0 0.0
  %2846 = vmatprep.subr.mxu0 0.0
  %2847 = vmatpush1.msra.mxu0 0.0
  %2848 = vmatprep.subr.mxu0 0.0
  %2849 = vmatpush1.msra.mxu0 0.0
  %2850 = vmatprep.subr.mxu0 0.0
  %2851 = vmatpush1.msra.mxu0 0.0
  %2852 = vmatprep.subr.mxu0 0.0
  %2853 = vmatpush1.msra.mxu0 0.0
  %2854 = vmatprep.subr.mxu0 0.0
  %2855 = vmatpush1.msra.mxu0 0.0
  %2856 = vmatprep.subr.mxu0 0.0
  %2857 = vmatpush1.msra.mxu0 0.0
  %2858 = vmatprep.mubr.f32.mxu0 0.0
  %2859 = vmatmul.mubr.f32.gmra.mrb[0].mxu0 %v2789
  %v2860 = vpop.f32.mrb[0].mxu0
  %v2861 = vadd.f32 0.0, %v2860
  %v2862 = vpop.f32.mrb[0].mxu0
  %2863 = vmatprep.mubr.f32.mxu0 0.0
  %2864 = vmatmul.mubr.f32.gmra.mrb[0].mxu0 %v2792
  %v2865 = vpop.f32.mrb[0].mxu0
  %v2866 = vadd.f32 0.0, %v2865
  %v2867 = vpop.f32.mrb[0].mxu0
  %2868 = vdwg.mxu0
  %v2870 = vsel %vm187, %v2286, 0
  %v2873 = vsel %vm187, %v2291, 0
  %2875 = vmatprep.subr.mxu0 0.0
  %2876 = vmatpush1.msra.mxu0 %v2301
  %2877 = vmatprep.subr.mxu0 0.0
  %2878 = vmatpush1.msra.mxu0 0.0
  %2879 = vmatprep.subr.mxu0 0.0
  %2880 = vmatpush1.msra.mxu0 0.0
  %2881 = vmatprep.subr.mxu0 0.0
  %2882 = vmatpush1.msra.mxu0 0.0
  %2883 = vmatprep.subr.mxu0 0.0
  %2884 = vmatpush1.msra.mxu0 0.0
  %2885 = vmatprep.subr.mxu0 0.0
  %2886 = vmatpush1.msra.mxu0 0.0
  %2887 = vmatprep.subr.mxu0 0.0
  %2888 = vmatpush1.msra.mxu0 0.0
  %2889 = vmatprep.subr.mxu0 0.0
  %2890 = vmatpush1.msra.mxu0 0.0
  %2891 = vmatprep.subr.mxu0 0.0
  %2892 = vmatpush1.msra.mxu0 0.0
  %2893 = vmatprep.subr.mxu0 0.0
  %2894 = vmatpush1.msra.mxu0 0.0
  %2895 = vmatprep.subr.mxu0 0.0
  %2896 = vmatpush1.msra.mxu0 0.0
  %2897 = vmatprep.subr.mxu0 0.0
  %2898 = vmatpush1.msra.mxu0 0.0
  %2899 = vmatprep.subr.mxu0 0.0
  %2900 = vmatpush1.msra.mxu0 0.0
  %2901 = vmatprep.subr.mxu0 0.0
  %2902 = vmatpush1.msra.mxu0 0.0
  %2903 = vmatprep.subr.mxu0 0.0
  %2904 = vmatpush1.msra.mxu0 0.0
  %2905 = vmatprep.subr.mxu0 0.0
  %2906 = vmatpush1.msra.mxu0 0.0
  %2907 = vmatprep.subr.mxu0 0.0
  %2908 = vmatpush1.msra.mxu0 0.0
  %2909 = vmatprep.subr.mxu0 0.0
  %2910 = vmatpush1.msra.mxu0 0.0
  %2911 = vmatprep.subr.mxu0 0.0
  %2912 = vmatpush1.msra.mxu0 0.0
  %2913 = vmatprep.subr.mxu0 0.0
  %2914 = vmatpush1.msra.mxu0 0.0
  %2915 = vmatprep.subr.mxu0 0.0
  %2916 = vmatpush1.msra.mxu0 0.0
  %2917 = vmatprep.subr.mxu0 0.0
  %2918 = vmatpush1.msra.mxu0 0.0
  %2919 = vmatprep.subr.mxu0 0.0
  %2920 = vmatpush1.msra.mxu0 0.0
  %2921 = vmatprep.subr.mxu0 0.0
  %2922 = vmatpush1.msra.mxu0 0.0
  %2923 = vmatprep.subr.mxu0 0.0
  %2924 = vmatpush1.msra.mxu0 0.0
  %2925 = vmatprep.subr.mxu0 0.0
  %2926 = vmatpush1.msra.mxu0 0.0
  %2927 = vmatprep.subr.mxu0 0.0
  %2928 = vmatpush1.msra.mxu0 0.0
  %2929 = vmatprep.subr.mxu0 0.0
  %2930 = vmatpush1.msra.mxu0 0.0
  %2931 = vmatprep.subr.mxu0 0.0
  %2932 = vmatpush1.msra.mxu0 0.0
  %2933 = vmatprep.subr.mxu0 0.0
  %2934 = vmatpush1.msra.mxu0 0.0
  %2935 = vmatprep.subr.mxu0 0.0
  %2936 = vmatpush1.msra.mxu0 0.0
  %2937 = vmatprep.subr.mxu0 0.0
  %2938 = vmatpush1.msra.mxu0 0.0
  %2939 = vmatprep.mubr.f32.mxu0 0.0
  %2940 = vmatmul.mubr.f32.gmra.mrb[0].mxu0 %v2870
  %v2941 = vpop.f32.mrb[0].mxu0
  %v2942 = vadd.f32 0.0, %v2941
  %v2943 = vpop.f32.mrb[0].mxu0
  %2944 = vmatprep.mubr.f32.mxu0 0.0
  %2945 = vmatmul.mubr.f32.gmra.mrb[0].mxu0 %v2873
  %v2946 = vpop.f32.mrb[0].mxu0
  %v2947 = vadd.f32 0.0, %v2946
  %v2948 = vpop.f32.mrb[0].mxu0
  %2949 = vdwg.mxu0
  %v2950 = vsel %vm564, %v2375, 0.0
  %v2951 = vsel %vm564, %v2456, 0.0
  %v2952 = vadd.f32 %v2950, %v2951
  %v2953 = vsel %vm564, %v2537, 0.0
  %v2954 = vadd.f32 %v2952, %v2953
  %v2955 = vsel %vm564, %v2618, 0.0
  %v2956 = vadd.f32 %v2954, %v2955
  %v2957 = vsel %vm564, %v2699, 0.0
  %v2958 = vadd.f32 %v2956, %v2957
  %v2959 = vsel %vm564, %v2780, 0.0
  %v2960 = vadd.f32 %v2958, %v2959
  %v2961 = vsel %vm564, %v2861, 0.0
  %v2962 = vadd.f32 %v2960, %v2961
  %v2963 = vsel %vm564, %v2942, 0.0
  %v2964 = vadd.f32 %v2962, %v2963
  %v2965 = vsel %vm564, %v2380, 0.0
  %v2966 = vsel %vm564, %v2461, 0.0
  %v2967 = vadd.f32 %v2965, %v2966
  %v2968 = vsel %vm564, %v2542, 0.0
  %v2969 = vadd.f32 %v2967, %v2968
  %v2970 = vsel %vm564, %v2623, 0.0
  %v2971 = vadd.f32 %v2969, %v2970
  %v2972 = vsel %vm564, %v2704, 0.0
  %v2973 = vadd.f32 %v2971, %v2972
  %v2974 = vsel %vm564, %v2785, 0.0
  %v2975 = vadd.f32 %v2973, %v2974
  %v2976 = vsel %vm564, %v2866, 0.0
  %v2977 = vadd.f32 %v2975, %v2976
  %v2978 = vsel %vm564, %v2947, 0.0
  %v2979 = vadd.f32 %v2977, %v2978
  %v2980 = vlaneseq
  %v2981 = vshrl.u32 %v2980, 7
  %v2982 = vsub.s32 3, %v2981
  %v2983 = vrot.slane %v23, %v2982
  %v2984 = vadd.f32 %v2964, %v2983
  %v2985 = vadd.f32 %v2979, %v2983
  %v2986 = vld [vmem:[%s4 + $0x100] sm:$0xff]
  %v2987 = vld [vmem:[%s4 + $0x108] sm:$0xff]
  %v2988 = vld [vmem:[%s4 + $0x110] sm:$0xff]
  %v2989 = vld [vmem:[%s4 + $0x118] sm:$0xff]
  %v2990 = vld [vmem:[%s4 + $0x120] sm:$0xff]
  %v2991 = vld [vmem:[%s4 + $0x128] sm:$0xff]
  %v2992 = vld [vmem:[%s4 + $0x130] sm:$0xff]
  %v2993 = vld [vmem:[%s4 + $0x138] sm:$0xff]
  %v2996 = vrot.slane %v2985, 7
  %vm2997 = vcmask 1041409
  %v2998 = vsel %vm2997, %v2996, %v2984
  %v2999 = vsel %vm564, %v2998, 0
  %3001 = vmatprep.subr.mxu0 0.0
  %3002 = vmatpush1.msra.mxu0 %v2986
  %3003 = vmatprep.subr.mxu0 0.0
  %3004 = vmatpush1.msra.mxu0 %v2987
  %3005 = vmatprep.subr.mxu0 0.0
  %3006 = vmatpush1.msra.mxu0 %v2988
  %3007 = vmatprep.subr.mxu0 0.0
  %3008 = vmatpush1.msra.mxu0 %v2989
  %3009 = vmatprep.subr.mxu0 0.0
  %3010 = vmatpush1.msra.mxu0 %v2990
  %3011 = vmatprep.subr.mxu0 0.0
  %3012 = vmatpush1.msra.mxu0 %v2991
  %3013 = vmatprep.subr.mxu0 0.0
  %3014 = vmatpush1.msra.mxu0 %v2992
  %3015 = vmatprep.subr.mxu0 0.0
  %3016 = vmatpush1.msra.mxu0 %v2993
  %3017 = vmatprep.subr.mxu0 0.0
  %3018 = vmatpush1.msra.mxu0 0.0
  %3019 = vmatprep.subr.mxu0 0.0
  %3020 = vmatpush1.msra.mxu0 0.0
  %3021 = vmatprep.subr.mxu0 0.0
  %3022 = vmatpush1.msra.mxu0 0.0
  %3023 = vmatprep.subr.mxu0 0.0
  %3024 = vmatpush1.msra.mxu0 0.0
  %3025 = vmatprep.subr.mxu0 0.0
  %3026 = vmatpush1.msra.mxu0 0.0
  %3027 = vmatprep.subr.mxu0 0.0
  %3028 = vmatpush1.msra.mxu0 0.0
  %3029 = vmatprep.subr.mxu0 0.0
  %3030 = vmatpush1.msra.mxu0 0.0
  %3031 = vmatprep.subr.mxu0 0.0
  %3032 = vmatpush1.msra.mxu0 0.0
  %3033 = vmatprep.subr.mxu0 0.0
  %3034 = vmatpush1.msra.mxu0 0.0
  %3035 = vmatprep.subr.mxu0 0.0
  %3036 = vmatpush1.msra.mxu0 0.0
  %3037 = vmatprep.subr.mxu0 0.0
  %3038 = vmatpush1.msra.mxu0 0.0
  %3039 = vmatprep.subr.mxu0 0.0
  %3040 = vmatpush1.msra.mxu0 0.0
  %3041 = vmatprep.subr.mxu0 0.0
  %3042 = vmatpush1.msra.mxu0 0.0
  %3043 = vmatprep.subr.mxu0 0.0
  %3044 = vmatpush1.msra.mxu0 0.0
  %3045 = vmatprep.subr.mxu0 0.0
  %3046 = vmatpush1.msra.mxu0 0.0
  %3047 = vmatprep.subr.mxu0 0.0
  %3048 = vmatpush1.msra.mxu0 0.0
  %3049 = vmatprep.subr.mxu0 0.0
  %3050 = vmatpush1.msra.mxu0 0.0
  %3051 = vmatprep.subr.mxu0 0.0
  %3052 = vmatpush1.msra.mxu0 0.0
  %3053 = vmatprep.subr.mxu0 0.0
  %3054 = vmatpush1.msra.mxu0 0.0
  %3055 = vmatprep.subr.mxu0 0.0
  %3056 = vmatpush1.msra.mxu0 0.0
  %3057 = vmatprep.subr.mxu0 0.0
  %3058 = vmatpush1.msra.mxu0 0.0
  %3059 = vmatprep.subr.mxu0 0.0
  %3060 = vmatpush1.msra.mxu0 0.0
  %3061 = vmatprep.subr.mxu0 0.0
  %3062 = vmatpush1.msra.mxu0 0.0
  %3063 = vmatprep.subr.mxu0 0.0
  %3064 = vmatpush1.msra.mxu0 0.0
  %3065 = vmatprep.mubr.f32.mxu0 0.0
  %3066 = vmatmul.mubr.f32.gmra.mrb[0].mxu0 %v2999
  %v3067 = vpop.f32.mrb[0].mxu0
  %v3068 = vadd.f32 0.0, %v3067
  %v3069 = vpop.f32.mrb[0].mxu0
  %3070 = vdwg.mxu0
  %v3071 = vlaneseq
  %v3072 = vshrl.u32 %v3071, 7
  %v3073 = vsub.s32 4, %v3072
  %v3074 = vrot.slane %v23, %v3073
  %v3075 = vadd.f32 %v3074, %v3068
  %v3076 = vld [vmem:[%s4 + $0x140] sm:$0xff]
  %v3077 = vld [vmem:[%s4 + $0x148] sm:$0xff]
  %v3078 = vld [vmem:[%s4 + $0x150] sm:$0xff]
  %v3079 = vld [vmem:[%s4 + $0x158] sm:$0xff]
  %v3080 = vld [vmem:[%s4 + $0x160] sm:$0xff]
  %v3081 = vld [vmem:[%s4 + $0x168] sm:$0xff]
  %v3082 = vld [vmem:[%s4 + $0x170] sm:$0xff]
  %v3083 = vld [vmem:[%s4 + $0x178] sm:$0xff]
  %v3084 = vrot.slane %v2984, 1
  %v3085 = vsel %vm2997, %v2985, %v3084
  %v3086 = vsel %vm564, %v3085, 0
  %3088 = vmatprep.subr.mxu0 0.0
  %3089 = vmatpush1.msra.mxu0 %v3076
  %3090 = vmatprep.subr.mxu0 0.0
  %3091 = vmatpush1.msra.mxu0 %v3077
  %3092 = vmatprep.subr.mxu0 0.0
  %3093 = vmatpush1.msra.mxu0 %v3078
  %3094 = vmatprep.subr.mxu0 0.0
  %3095 = vmatpush1.msra.mxu0 %v3079
  %3096 = vmatprep.subr.mxu0 0.0
  %3097 = vmatpush1.msra.mxu0 %v3080
  %3098 = vmatprep.subr.mxu0 0.0
  %3099 = vmatpush1.msra.mxu0 %v3081
  %3100 = vmatprep.subr.mxu0 0.0
  %3101 = vmatpush1.msra.mxu0 %v3082
  %3102 = vmatprep.subr.mxu0 0.0
  %3103 = vmatpush1.msra.mxu0 %v3083
  %3104 = vmatprep.subr.mxu0 0.0
  %3105 = vmatpush1.msra.mxu0 0.0
  %3106 = vmatprep.subr.mxu0 0.0
  %3107 = vmatpush1.msra.mxu0 0.0
  %3108 = vmatprep.subr.mxu0 0.0
  %3109 = vmatpush1.msra.mxu0 0.0
  %3110 = vmatprep.subr.mxu0 0.0
  %3111 = vmatpush1.msra.mxu0 0.0
  %3112 = vmatprep.subr.mxu0 0.0
  %3113 = vmatpush1.msra.mxu0 0.0
  %3114 = vmatprep.subr.mxu0 0.0
  %3115 = vmatpush1.msra.mxu0 0.0
  %3116 = vmatprep.subr.mxu0 0.0
  %3117 = vmatpush1.msra.mxu0 0.0
  %3118 = vmatprep.subr.mxu0 0.0
  %3119 = vmatpush1.msra.mxu0 0.0
  %3120 = vmatprep.subr.mxu0 0.0
  %3121 = vmatpush1.msra.mxu0 0.0
  %3122 = vmatprep.subr.mxu0 0.0
  %3123 = vmatpush1.msra.mxu0 0.0
  %3124 = vmatprep.subr.mxu0 0.0
  %3125 = vmatpush1.msra.mxu0 0.0
  %3126 = vmatprep.subr.mxu0 0.0
  %3127 = vmatpush1.msra.mxu0 0.0
  %3128 = vmatprep.subr.mxu0 0.0
  %3129 = vmatpush1.msra.mxu0 0.0
  %3130 = vmatprep.subr.mxu0 0.0
  %3131 = vmatpush1.msra.mxu0 0.0
  %3132 = vmatprep.subr.mxu0 0.0
  %3133 = vmatpush1.msra.mxu0 0.0
  %3134 = vmatprep.subr.mxu0 0.0
  %3135 = vmatpush1.msra.mxu0 0.0
  %3136 = vmatprep.subr.mxu0 0.0
  %3137 = vmatpush1.msra.mxu0 0.0
  %3138 = vmatprep.subr.mxu0 0.0
  %3139 = vmatpush1.msra.mxu0 0.0
  %3140 = vmatprep.subr.mxu0 0.0
  %3141 = vmatpush1.msra.mxu0 0.0
  %3142 = vmatprep.subr.mxu0 0.0
  %3143 = vmatpush1.msra.mxu0 0.0
  %3144 = vmatprep.subr.mxu0 0.0
  %3145 = vmatpush1.msra.mxu0 0.0
  %3146 = vmatprep.subr.mxu0 0.0
  %3147 = vmatpush1.msra.mxu0 0.0
  %3148 = vmatprep.subr.mxu0 0.0
  %3149 = vmatpush1.msra.mxu0 0.0
  %3150 = vmatprep.subr.mxu0 0.0
  %3151 = vmatpush1.msra.mxu0 0.0
  %3152 = vmatprep.mubr.f32.mxu0 0.0
  %3153 = vmatmul.mubr.f32.gmra.mrb[0].mxu0 %v3086
  %v3154 = vpop.f32.mrb[0].mxu0
  %v3155 = vadd.f32 0.0, %v3154
  %v3156 = vpop.f32.mrb[0].mxu0
  %3157 = vdwg.mxu0
  %v3158 = vadd.f32 %v3075, %v3155
  %v3159 = vld [vmem:[%s4 + $0x180] sm:$0xff]
  %v3160 = vld [vmem:[%s4 + $0x188] sm:$0xff]
  %v3161 = vld [vmem:[%s4 + $0x190] sm:$0xff]
  %v3162 = vld [vmem:[%s4 + $0x198] sm:$0xff]
  %v3163 = vld [vmem:[%s4 + $0x1a0] sm:$0xff]
  %v3164 = vld [vmem:[%s4 + $0x1a8] sm:$0xff]
  %v3165 = vld [vmem:[%s4 + $0x1b0] sm:$0xff]
  %v3166 = vld [vmem:[%s4 + $0x1b8] sm:$0xff]
  %v3167 = vrot.slane %v2984, 2
  %v3168 = vrot.slane %v2985, 1
  %v3169 = vsel %vm2997, %v3168, %v3167
  %v3170 = vsel %vm564, %v3169, 0
  %3172 = vmatprep.subr.mxu0 0.0
  %3173 = vmatpush1.msra.mxu0 %v3159
  %3174 = vmatprep.subr.mxu0 0.0
  %3175 = vmatpush1.msra.mxu0 %v3160
  %3176 = vmatprep.subr.mxu0 0.0
  %3177 = vmatpush1.msra.mxu0 %v3161
  %3178 = vmatprep.subr.mxu0 0.0
  %3179 = vmatpush1.msra.mxu0 %v3162
  %3180 = vmatprep.subr.mxu0 0.0
  %3181 = vmatpush1.msra.mxu0 %v3163
  %3182 = vmatprep.subr.mxu0 0.0
  %3183 = vmatpush1.msra.mxu0 %v3164
  %3184 = vmatprep.subr.mxu0 0.0
  %3185 = vmatpush1.msra.mxu0 %v3165
  %3186 = vmatprep.subr.mxu0 0.0
  %3187 = vmatpush1.msra.mxu0 %v3166
  %3188 = vmatprep.subr.mxu0 0.0
  %3189 = vmatpush1.msra.mxu0 0.0
  %3190 = vmatprep.subr.mxu0 0.0
  %3191 = vmatpush1.msra.mxu0 0.0
  %3192 = vmatprep.subr.mxu0 0.0
  %3193 = vmatpush1.msra.mxu0 0.0
  %3194 = vmatprep.subr.mxu0 0.0
  %3195 = vmatpush1.msra.mxu0 0.0
  %3196 = vmatprep.subr.mxu0 0.0
  %3197 = vmatpush1.msra.mxu0 0.0
  %3198 = vmatprep.subr.mxu0 0.0
  %3199 = vmatpush1.msra.mxu0 0.0
  %3200 = vmatprep.subr.mxu0 0.0
  %3201 = vmatpush1.msra.mxu0 0.0
  %3202 = vmatprep.subr.mxu0 0.0
  %3203 = vmatpush1.msra.mxu0 0.0
  %3204 = vmatprep.subr.mxu0 0.0
  %3205 = vmatpush1.msra.mxu0 0.0
  %3206 = vmatprep.subr.mxu0 0.0
  %3207 = vmatpush1.msra.mxu0 0.0
  %3208 = vmatprep.subr.mxu0 0.0
  %3209 = vmatpush1.msra.mxu0 0.0
  %3210 = vmatprep.subr.mxu0 0.0
  %3211 = vmatpush1.msra.mxu0 0.0
  %3212 = vmatprep.subr.mxu0 0.0
  %3213 = vmatpush1.msra.mxu0 0.0
  %3214 = vmatprep.subr.mxu0 0.0
  %3215 = vmatpush1.msra.mxu0 0.0
  %3216 = vmatprep.subr.mxu0 0.0
  %3217 = vmatpush1.msra.mxu0 0.0
  %3218 = vmatprep.subr.mxu0 0.0
  %3219 = vmatpush1.msra.mxu0 0.0
  %3220 = vmatprep.subr.mxu0 0.0
  %3221 = vmatpush1.msra.mxu0 0.0
  %3222 = vmatprep.subr.mxu0 0.0
  %3223 = vmatpush1.msra.mxu0 0.0
  %3224 = vmatprep.subr.mxu0 0.0
  %3225 = vmatpush1.msra.mxu0 0.0
  %3226 = vmatprep.subr.mxu0 0.0
  %3227 = vmatpush1.msra.mxu0 0.0
  %3228 = vmatprep.subr.mxu0 0.0
  %3229 = vmatpush1.msra.mxu0 0.0
  %3230 = vmatprep.subr.mxu0 0.0
  %3231 = vmatpush1.msra.mxu0 0.0
  %3232 = vmatprep.subr.mxu0 0.0
  %3233 = vmatpush1.msra.mxu0 0.0
  %3234 = vmatprep.subr.mxu0 0.0
  %3235 = vmatpush1.msra.mxu0 0.0
  %3236 = vmatprep.mubr.f32.mxu0 0.0
  %3237 = vmatmul.mubr.f32.gmra.mrb[0].mxu0 %v3170
  %v3238 = vpop.f32.mrb[0].mxu0
  %v3239 = vadd.f32 0.0, %v3238
  %v3240 = vpop.f32.mrb[0].mxu0
  %3241 = vdwg.mxu0
  %v3242 = vadd.f32 %v3158, %v3239
  %v3243 = vld [vmem:[%s4 + $0x1c0] sm:$0xff]
  %v3244 = vld [vmem:[%s4 + $0x1c8] sm:$0xff]
  %v3245 = vld [vmem:[%s4 + $0x1d0] sm:$0xff]
  %v3246 = vld [vmem:[%s4 + $0x1d8] sm:$0xff]
  %v3247 = vld [vmem:[%s4 + $0x1e0] sm:$0xff]
  %v3248 = vld [vmem:[%s4 + $0x1e8] sm:$0xff]
  %v3249 = vld [vmem:[%s4 + $0x1f0] sm:$0xff]
  %v3250 = vld [vmem:[%s4 + $0x1f8] sm:$0xff]
  %v3251 = vrot.slane %v2984, 3
  %v3252 = vrot.slane %v2985, 2
  %v3253 = vsel %vm2997, %v3252, %v3251
  %v3254 = vsel %vm564, %v3253, 0
  %3256 = vmatprep.subr.mxu0 0.0
  %3257 = vmatpush1.msra.mxu0 %v3243
  %3258 = vmatprep.subr.mxu0 0.0
  %3259 = vmatpush1.msra.mxu0 %v3244
  %3260 = vmatprep.subr.mxu0 0.0
  %3261 = vmatpush1.msra.mxu0 %v3245
  %3262 = vmatprep.subr.mxu0 0.0
  %3263 = vmatpush1.msra.mxu0 %v3246
  %3264 = vmatprep.subr.mxu0 0.0
  %3265 = vmatpush1.msra.mxu0 %v3247
  %3266 = vmatprep.subr.mxu0 0.0
  %3267 = vmatpush1.msra.mxu0 %v3248
  %3268 = vmatprep.subr.mxu0 0.0
  %3269 = vmatpush1.msra.mxu0 %v3249
  %3270 = vmatprep.subr.mxu0 0.0
  %3271 = vmatpush1.msra.mxu0 %v3250
  %3272 = vmatprep.subr.mxu0 0.0
  %3273 = vmatpush1.msra.mxu0 0.0
  %3274 = vmatprep.subr.mxu0 0.0
  %3275 = vmatpush1.msra.mxu0 0.0
  %3276 = vmatprep.subr.mxu0 0.0
  %3277 = vmatpush1.msra.mxu0 0.0
  %3278 = vmatprep.subr.mxu0 0.0
  %3279 = vmatpush1.msra.mxu0 0.0
  %3280 = vmatprep.subr.mxu0 0.0
  %3281 = vmatpush1.msra.mxu0 0.0
  %3282 = vmatprep.subr.mxu0 0.0
  %3283 = vmatpush1.msra.mxu0 0.0
  %3284 = vmatprep.subr.mxu0 0.0
  %3285 = vmatpush1.msra.mxu0 0.0
  %3286 = vmatprep.subr.mxu0 0.0
  %3287 = vmatpush1.msra.mxu0 0.0
  %3288 = vmatprep.subr.mxu0 0.0
  %3289 = vmatpush1.msra.mxu0 0.0
  %3290 = vmatprep.subr.mxu0 0.0
  %3291 = vmatpush1.msra.mxu0 0.0
  %3292 = vmatprep.subr.mxu0 0.0
  %3293 = vmatpush1.msra.mxu0 0.0
  %3294 = vmatprep.subr.mxu0 0.0
  %3295 = vmatpush1.msra.mxu0 0.0
  %3296 = vmatprep.subr.mxu0 0.0
  %3297 = vmatpush1.msra.mxu0 0.0
  %3298 = vmatprep.subr.mxu0 0.0
  %3299 = vmatpush1.msra.mxu0 0.0
  %3300 = vmatprep.subr.mxu0 0.0
  %3301 = vmatpush1.msra.mxu0 0.0
  %3302 = vmatprep.subr.mxu0 0.0
  %3303 = vmatpush1.msra.mxu0 0.0
  %3304 = vmatprep.subr.mxu0 0.0
  %3305 = vmatpush1.msra.mxu0 0.0
  %3306 = vmatprep.subr.mxu0 0.0
  %3307 = vmatpush1.msra.mxu0 0.0
  %3308 = vmatprep.subr.mxu0 0.0
  %3309 = vmatpush1.msra.mxu0 0.0
  %3310 = vmatprep.subr.mxu0 0.0
  %3311 = vmatpush1.msra.mxu0 0.0
  %3312 = vmatprep.subr.mxu0 0.0
  %3313 = vmatpush1.msra.mxu0 0.0
  %3314 = vmatprep.subr.mxu0 0.0
  %3315 = vmatpush1.msra.mxu0 0.0
  %3316 = vmatprep.subr.mxu0 0.0
  %3317 = vmatpush1.msra.mxu0 0.0
  %3318 = vmatprep.subr.mxu0 0.0
  %3319 = vmatpush1.msra.mxu0 0.0
  %3320 = vmatprep.mubr.f32.mxu0 0.0
  %3321 = vmatmul.mubr.f32.gmra.mrb[0].mxu0 %v3254
  %v3322 = vpop.f32.mrb[0].mxu0
  %v3323 = vadd.f32 0.0, %v3322
  %v3324 = vpop.f32.mrb[0].mxu0
  %3325 = vdwg.mxu0
  %v3326 = vadd.f32 %v3242, %v3323
  %v3327 = vld [vmem:[%s4 + $0x200] sm:$0xff]
  %v3328 = vld [vmem:[%s4 + $0x208] sm:$0xff]
  %v3329 = vld [vmem:[%s4 + $0x210] sm:$0xff]
  %v3330 = vld [vmem:[%s4 + $0x218] sm:$0xff]
  %v3331 = vld [vmem:[%s4 + $0x220] sm:$0xff]
  %v3332 = vld [vmem:[%s4 + $0x228] sm:$0xff]
  %v3333 = vld [vmem:[%s4 + $0x230] sm:$0xff]
  %v3334 = vld [vmem:[%s4 + $0x238] sm:$0xff]
  %v3335 = vrot.slane %v2984, 4
  %v3336 = vrot.slane %v2985, 3
  %v3337 = vsel %vm2997, %v3336, %v3335
  %v3338 = vsel %vm564, %v3337, 0
  %3340 = vmatprep.subr.mxu0 0.0
  %3341 = vmatpush1.msra.mxu0 %v3327
  %3342 = vmatprep.subr.mxu0 0.0
  %3343 = vmatpush1.msra.mxu0 %v3328
  %3344 = vmatprep.subr.mxu0 0.0
  %3345 = vmatpush1.msra.mxu0 %v3329
  %3346 = vmatprep.subr.mxu0 0.0
  %3347 = vmatpush1.msra.mxu0 %v3330
  %3348 = vmatprep.subr.mxu0 0.0
  %3349 = vmatpush1.msra.mxu0 %v3331
  %3350 = vmatprep.subr.mxu0 0.0
  %3351 = vmatpush1.msra.mxu0 %v3332
  %3352 = vmatprep.subr.mxu0 0.0
  %3353 = vmatpush1.msra.mxu0 %v3333
  %3354 = vmatprep.subr.mxu0 0.0
  %3355 = vmatpush1.msra.mxu0 %v3334
  %3356 = vmatprep.subr.mxu0 0.0
  %3357 = vmatpush1.msra.mxu0 0.0
  %3358 = vmatprep.subr.mxu0 0.0
  %3359 = vmatpush1.msra.mxu0 0.0
  %3360 = vmatprep.subr.mxu0 0.0
  %3361 = vmatpush1.msra.mxu0 0.0
  %3362 = vmatprep.subr.mxu0 0.0
  %3363 = vmatpush1.msra.mxu0 0.0
  %3364 = vmatprep.subr.mxu0 0.0
  %3365 = vmatpush1.msra.mxu0 0.0
  %3366 = vmatprep.subr.mxu0 0.0
  %3367 = vmatpush1.msra.mxu0 0.0
  %3368 = vmatprep.subr.mxu0 0.0
  %3369 = vmatpush1.msra.mxu0 0.0
  %3370 = vmatprep.subr.mxu0 0.0
  %3371 = vmatpush1.msra.mxu0 0.0
  %3372 = vmatprep.subr.mxu0 0.0
  %3373 = vmatpush1.msra.mxu0 0.0
  %3374 = vmatprep.subr.mxu0 0.0
  %3375 = vmatpush1.msra.mxu0 0.0
  %3376 = vmatprep.subr.mxu0 0.0
  %3377 = vmatpush1.msra.mxu0 0.0
  %3378 = vmatprep.subr.mxu0 0.0
  %3379 = vmatpush1.msra.mxu0 0.0
  %3380 = vmatprep.subr.mxu0 0.0
  %3381 = vmatpush1.msra.mxu0 0.0
  %3382 = vmatprep.subr.mxu0 0.0
  %3383 = vmatpush1.msra.mxu0 0.0
  %3384 = vmatprep.subr.mxu0 0.0
  %3385 = vmatpush1.msra.mxu0 0.0
  %3386 = vmatprep.subr.mxu0 0.0
  %3387 = vmatpush1.msra.mxu0 0.0
  %3388 = vmatprep.subr.mxu0 0.0
  %3389 = vmatpush1.msra.mxu0 0.0
  %3390 = vmatprep.subr.mxu0 0.0
  %3391 = vmatpush1.msra.mxu0 0.0
  %3392 = vmatprep.subr.mxu0 0.0
  %3393 = vmatpush1.msra.mxu0 0.0
  %3394 = vmatprep.subr.mxu0 0.0
  %3395 = vmatpush1.msra.mxu0 0.0
  %3396 = vmatprep.subr.mxu0 0.0
  %3397 = vmatpush1.msra.mxu0 0.0
  %3398 = vmatprep.subr.mxu0 0.0
  %3399 = vmatpush1.msra.mxu0 0.0
  %3400 = vmatprep.subr.mxu0 0.0
  %3401 = vmatpush1.msra.mxu0 0.0
  %3402 = vmatprep.subr.mxu0 0.0
  %3403 = vmatpush1.msra.mxu0 0.0
  %3404 = vmatprep.mubr.f32.mxu0 0.0
  %3405 = vmatmul.mubr.f32.gmra.mrb[0].mxu0 %v3338
  %v3406 = vpop.f32.mrb[0].mxu0
  %v3407 = vadd.f32 0.0, %v3406
  %v3408 = vpop.f32.mrb[0].mxu0
  %3409 = vdwg.mxu0
  %v3410 = vadd.f32 %v3326, %v3407
  %v3411 = vld [vmem:[%s4 + $0x240] sm:$0xff]
  %v3412 = vld [vmem:[%s4 + $0x248] sm:$0xff]
  %v3413 = vld [vmem:[%s4 + $0x250] sm:$0xff]
  %v3414 = vld [vmem:[%s4 + $0x258] sm:$0xff]
  %v3415 = vld [vmem:[%s4 + $0x260] sm:$0xff]
  %v3416 = vld [vmem:[%s4 + $0x268] sm:$0xff]
  %v3417 = vld [vmem:[%s4 + $0x270] sm:$0xff]
  %v3418 = vld [vmem:[%s4 + $0x278] sm:$0xff]
  %v3419 = vrot.slane %v2984, 5
  %v3420 = vrot.slane %v2985, 4
  %v3421 = vsel %vm2997, %v3420, %v3419
  %v3422 = vsel %vm564, %v3421, 0
  %3424 = vmatprep.subr.mxu0 0.0
  %3425 = vmatpush1.msra.mxu0 %v3411
  %3426 = vmatprep.subr.mxu0 0.0
  %3427 = vmatpush1.msra.mxu0 %v3412
  %3428 = vmatprep.subr.mxu0 0.0
  %3429 = vmatpush1.msra.mxu0 %v3413
  %3430 = vmatprep.subr.mxu0 0.0
  %3431 = vmatpush1.msra.mxu0 %v3414
  %3432 = vmatprep.subr.mxu0 0.0
  %3433 = vmatpush1.msra.mxu0 %v3415
  %3434 = vmatprep.subr.mxu0 0.0
  %3435 = vmatpush1.msra.mxu0 %v3416
  %3436 = vmatprep.subr.mxu0 0.0
  %3437 = vmatpush1.msra.mxu0 %v3417
  %3438 = vmatprep.subr.mxu0 0.0
  %3439 = vmatpush1.msra.mxu0 %v3418
  %3440 = vmatprep.subr.mxu0 0.0
  %3441 = vmatpush1.msra.mxu0 0.0
  %3442 = vmatprep.subr.mxu0 0.0
  %3443 = vmatpush1.msra.mxu0 0.0
  %3444 = vmatprep.subr.mxu0 0.0
  %3445 = vmatpush1.msra.mxu0 0.0
  %3446 = vmatprep.subr.mxu0 0.0
  %3447 = vmatpush1.msra.mxu0 0.0
  %3448 = vmatprep.subr.mxu0 0.0
  %3449 = vmatpush1.msra.mxu0 0.0
  %3450 = vmatprep.subr.mxu0 0.0
  %3451 = vmatpush1.msra.mxu0 0.0
  %3452 = vmatprep.subr.mxu0 0.0
  %3453 = vmatpush1.msra.mxu0 0.0
  %3454 = vmatprep.subr.mxu0 0.0
  %3455 = vmatpush1.msra.mxu0 0.0
  %3456 = vmatprep.subr.mxu0 0.0
  %3457 = vmatpush1.msra.mxu0 0.0
  %3458 = vmatprep.subr.mxu0 0.0
  %3459 = vmatpush1.msra.mxu0 0.0
  %3460 = vmatprep.subr.mxu0 0.0
  %3461 = vmatpush1.msra.mxu0 0.0
  %3462 = vmatprep.subr.mxu0 0.0
  %3463 = vmatpush1.msra.mxu0 0.0
  %3464 = vmatprep.subr.mxu0 0.0
  %3465 = vmatpush1.msra.mxu0 0.0
  %3466 = vmatprep.subr.mxu0 0.0
  %3467 = vmatpush1.msra.mxu0 0.0
  %3468 = vmatprep.subr.mxu0 0.0
  %3469 = vmatpush1.msra.mxu0 0.0
  %3470 = vmatprep.subr.mxu0 0.0
  %3471 = vmatpush1.msra.mxu0 0.0
  %3472 = vmatprep.subr.mxu0 0.0
  %3473 = vmatpush1.msra.mxu0 0.0
  %3474 = vmatprep.subr.mxu0 0.0
  %3475 = vmatpush1.msra.mxu0 0.0
  %3476 = vmatprep.subr.mxu0 0.0
  %3477 = vmatpush1.msra.mxu0 0.0
  %3478 = vmatprep.subr.mxu0 0.0
  %3479 = vmatpush1.msra.mxu0 0.0
  %3480 = vmatprep.subr.mxu0 0.0
  %3481 = vmatpush1.msra.mxu0 0.0
  %3482 = vmatprep.subr.mxu0 0.0
  %3483 = vmatpush1.msra.mxu0 0.0
  %3484 = vmatprep.subr.mxu0 0.0
  %3485 = vmatpush1.msra.mxu0 0.0
  %3486 = vmatprep.subr.mxu0 0.0
  %3487 = vmatpush1.msra.mxu0 0.0
  %3488 = vmatprep.mubr.f32.mxu0 0.0
  %3489 = vmatmul.mubr.f32.gmra.mrb[0].mxu0 %v3422
  %v3490 = vpop.f32.mrb[0].mxu0
  %v3491 = vadd.f32 0.0, %v3490
  %v3492 = vpop.f32.mrb[0].mxu0
  %3493 = vdwg.mxu0
  %v3494 = vadd.f32 %v3410, %v3491
  %v3495 = vld [vmem:[%s4 + $0x280] sm:$0xff]
  %v3496 = vld [vmem:[%s4 + $0x288] sm:$0xff]
  %v3497 = vld [vmem:[%s4 + $0x290] sm:$0xff]
  %v3498 = vld [vmem:[%s4 + $0x298] sm:$0xff]
  %v3499 = vld [vmem:[%s4 + $0x2a0] sm:$0xff]
  %v3500 = vld [vmem:[%s4 + $0x2a8] sm:$0xff]
  %v3501 = vld [vmem:[%s4 + $0x2b0] sm:$0xff]
  %v3502 = vld [vmem:[%s4 + $0x2b8] sm:$0xff]
  %v3503 = vrot.slane %v2984, 6
  %v3504 = vrot.slane %v2985, 5
  %v3505 = vsel %vm2997, %v3504, %v3503
  %v3506 = vsel %vm564, %v3505, 0
  %3508 = vmatprep.subr.mxu0 0.0
  %3509 = vmatpush1.msra.mxu0 %v3495
  %3510 = vmatprep.subr.mxu0 0.0
  %3511 = vmatpush1.msra.mxu0 %v3496
  %3512 = vmatprep.subr.mxu0 0.0
  %3513 = vmatpush1.msra.mxu0 %v3497
  %3514 = vmatprep.subr.mxu0 0.0
  %3515 = vmatpush1.msra.mxu0 %v3498
  %3516 = vmatprep.subr.mxu0 0.0
  %3517 = vmatpush1.msra.mxu0 %v3499
  %3518 = vmatprep.subr.mxu0 0.0
  %3519 = vmatpush1.msra.mxu0 %v3500
  %3520 = vmatprep.subr.mxu0 0.0
  %3521 = vmatpush1.msra.mxu0 %v3501
  %3522 = vmatprep.subr.mxu0 0.0
  %3523 = vmatpush1.msra.mxu0 %v3502
  %3524 = vmatprep.subr.mxu0 0.0
  %3525 = vmatpush1.msra.mxu0 0.0
  %3526 = vmatprep.subr.mxu0 0.0
  %3527 = vmatpush1.msra.mxu0 0.0
  %3528 = vmatprep.subr.mxu0 0.0
  %3529 = vmatpush1.msra.mxu0 0.0
  %3530 = vmatprep.subr.mxu0 0.0
  %3531 = vmatpush1.msra.mxu0 0.0
  %3532 = vmatprep.subr.mxu0 0.0
  %3533 = vmatpush1.msra.mxu0 0.0
  %3534 = vmatprep.subr.mxu0 0.0
  %3535 = vmatpush1.msra.mxu0 0.0
  %3536 = vmatprep.subr.mxu0 0.0
  %3537 = vmatpush1.msra.mxu0 0.0
  %3538 = vmatprep.subr.mxu0 0.0
  %3539 = vmatpush1.msra.mxu0 0.0
  %3540 = vmatprep.subr.mxu0 0.0
  %3541 = vmatpush1.msra.mxu0 0.0
  %3542 = vmatprep.subr.mxu0 0.0
  %3543 = vmatpush1.msra.mxu0 0.0
  %3544 = vmatprep.subr.mxu0 0.0
  %3545 = vmatpush1.msra.mxu0 0.0
  %3546 = vmatprep.subr.mxu0 0.0
  %3547 = vmatpush1.msra.mxu0 0.0
  %3548 = vmatprep.subr.mxu0 0.0
  %3549 = vmatpush1.msra.mxu0 0.0
  %3550 = vmatprep.subr.mxu0 0.0
  %3551 = vmatpush1.msra.mxu0 0.0
  %3552 = vmatprep.subr.mxu0 0.0
  %3553 = vmatpush1.msra.mxu0 0.0
  %3554 = vmatprep.subr.mxu0 0.0
  %3555 = vmatpush1.msra.mxu0 0.0
  %3556 = vmatprep.subr.mxu0 0.0
  %3557 = vmatpush1.msra.mxu0 0.0
  %3558 = vmatprep.subr.mxu0 0.0
  %3559 = vmatpush1.msra.mxu0 0.0
  %3560 = vmatprep.subr.mxu0 0.0
  %3561 = vmatpush1.msra.mxu0 0.0
  %3562 = vmatprep.subr.mxu0 0.0
  %3563 = vmatpush1.msra.mxu0 0.0
  %3564 = vmatprep.subr.mxu0 0.0
  %3565 = vmatpush1.msra.mxu0 0.0
  %3566 = vmatprep.subr.mxu0 0.0
  %3567 = vmatpush1.msra.mxu0 0.0
  %3568 = vmatprep.subr.mxu0 0.0
  %3569 = vmatpush1.msra.mxu0 0.0
  %3570 = vmatprep.subr.mxu0 0.0
  %3571 = vmatpush1.msra.mxu0 0.0
  %3572 = vmatprep.mubr.f32.mxu0 0.0
  %3573 = vmatmul.mubr.f32.gmra.mrb[0].mxu0 %v3506
  %v3574 = vpop.f32.mrb[0].mxu0
  %v3575 = vadd.f32 0.0, %v3574
  %v3576 = vpop.f32.mrb[0].mxu0
  %3577 = vdwg.mxu0
  %v3578 = vadd.f32 %v3494, %v3575
  %v3579 = vld [vmem:[%s4 + $0x2c0] sm:$0xff]
  %v3580 = vld [vmem:[%s4 + $0x2c8] sm:$0xff]
  %v3581 = vld [vmem:[%s4 + $0x2d0] sm:$0xff]
  %v3582 = vld [vmem:[%s4 + $0x2d8] sm:$0xff]
  %v3583 = vld [vmem:[%s4 + $0x2e0] sm:$0xff]
  %v3584 = vld [vmem:[%s4 + $0x2e8] sm:$0xff]
  %v3585 = vld [vmem:[%s4 + $0x2f0] sm:$0xff]
  %v3586 = vld [vmem:[%s4 + $0x2f8] sm:$0xff]
  %v3587 = vrot.slane %v2984, 7
  %v3588 = vrot.slane %v2985, 6
  %v3589 = vsel %vm2997, %v3588, %v3587
  %v3590 = vsel %vm564, %v3589, 0
  %3592 = vmatprep.subr.mxu0 0.0
  %3593 = vmatpush1.msra.mxu0 %v3579
  %3594 = vmatprep.subr.mxu0 0.0
  %3595 = vmatpush1.msra.mxu0 %v3580
  %3596 = vmatprep.subr.mxu0 0.0
  %3597 = vmatpush1.msra.mxu0 %v3581
  %3598 = vmatprep.subr.mxu0 0.0
  %3599 = vmatpush1.msra.mxu0 %v3582
  %3600 = vmatprep.subr.mxu0 0.0
  %3601 = vmatpush1.msra.mxu0 %v3583
  %3602 = vmatprep.subr.mxu0 0.0
  %3603 = vmatpush1.msra.mxu0 %v3584
  %3604 = vmatprep.subr.mxu0 0.0
  %3605 = vmatpush1.msra.mxu0 %v3585
  %3606 = vmatprep.subr.mxu0 0.0
  %3607 = vmatpush1.msra.mxu0 %v3586
  %3608 = vmatprep.subr.mxu0 0.0
  %3609 = vmatpush1.msra.mxu0 0.0
  %3610 = vmatprep.subr.mxu0 0.0
  %3611 = vmatpush1.msra.mxu0 0.0
  %3612 = vmatprep.subr.mxu0 0.0
  %3613 = vmatpush1.msra.mxu0 0.0
  %3614 = vmatprep.subr.mxu0 0.0
  %3615 = vmatpush1.msra.mxu0 0.0
  %3616 = vmatprep.subr.mxu0 0.0
  %3617 = vmatpush1.msra.mxu0 0.0
  %3618 = vmatprep.subr.mxu0 0.0
  %3619 = vmatpush1.msra.mxu0 0.0
  %3620 = vmatprep.subr.mxu0 0.0
  %3621 = vmatpush1.msra.mxu0 0.0
  %3622 = vmatprep.subr.mxu0 0.0
  %3623 = vmatpush1.msra.mxu0 0.0
  %3624 = vmatprep.subr.mxu0 0.0
  %3625 = vmatpush1.msra.mxu0 0.0
  %3626 = vmatprep.subr.mxu0 0.0
  %3627 = vmatpush1.msra.mxu0 0.0
  %3628 = vmatprep.subr.mxu0 0.0
  %3629 = vmatpush1.msra.mxu0 0.0
  %3630 = vmatprep.subr.mxu0 0.0
  %3631 = vmatpush1.msra.mxu0 0.0
  %3632 = vmatprep.subr.mxu0 0.0
  %3633 = vmatpush1.msra.mxu0 0.0
  %3634 = vmatprep.subr.mxu0 0.0
  %3635 = vmatpush1.msra.mxu0 0.0
  %3636 = vmatprep.subr.mxu0 0.0
  %3637 = vmatpush1.msra.mxu0 0.0
  %3638 = vmatprep.subr.mxu0 0.0
  %3639 = vmatpush1.msra.mxu0 0.0
  %3640 = vmatprep.subr.mxu0 0.0
  %3641 = vmatpush1.msra.mxu0 0.0
  %3642 = vmatprep.subr.mxu0 0.0
  %3643 = vmatpush1.msra.mxu0 0.0
  %3644 = vmatprep.subr.mxu0 0.0
  %3645 = vmatpush1.msra.mxu0 0.0
  %3646 = vmatprep.subr.mxu0 0.0
  %3647 = vmatpush1.msra.mxu0 0.0
  %3648 = vmatprep.subr.mxu0 0.0
  %3649 = vmatpush1.msra.mxu0 0.0
  %3650 = vmatprep.subr.mxu0 0.0
  %3651 = vmatpush1.msra.mxu0 0.0
  %3652 = vmatprep.subr.mxu0 0.0
  %3653 = vmatpush1.msra.mxu0 0.0
  %3654 = vmatprep.subr.mxu0 0.0
  %3655 = vmatpush1.msra.mxu0 0.0
  %3656 = vmatprep.mubr.f32.mxu0 0.0
  %3657 = vmatmul.mubr.f32.gmra.mrb[0].mxu0 %v3590
  %v3658 = vpop.f32.mrb[0].mxu0
  %v3659 = vadd.f32 0.0, %v3658
  %v3660 = vpop.f32.mrb[0].mxu0
  %3661 = vdwg.mxu0
  %v3662 = vadd.f32 %v3578, %v3659
  %v3663 = vxor.u32 %v3662, 2147483648
  %v3664 = vmul.f32 %v3663, 1.442695
  %v3665 = vpow.pop %v3664
  %v3666 = vadd.f32 %v3665, 1.0
  %v3667 = vrcp.pop %v3666
  %v3668 = vmul.f32 1.0, %v3667
  %v3669 = vmul.f32 %v3662, %v3668
  %v3670 = vld [vmem:[%s4 + $0x300] sm:$0xff]
  %v3671 = vld [vmem:[%s4 + $0x308] sm:$0xff]
  %v3672 = vld [vmem:[%s4 + $0x310] sm:$0xff]
  %v3673 = vld [vmem:[%s4 + $0x318] sm:$0xff]
  %v3674 = vld [vmem:[%s4 + $0x320] sm:$0xff]
  %v3675 = vld [vmem:[%s4 + $0x328] sm:$0xff]
  %v3676 = vld [vmem:[%s4 + $0x330] sm:$0xff]
  %v3677 = vld [vmem:[%s4 + $0x338] sm:$0xff]
  %v3678 = vlaneseq
  %v3679 = vshrl.u32 %v3678, 7
  %v3680 = vsub.s32 5, %v3679
  %v3681 = vrot.slane %v23, %v3680
  %v3683 = vsel %vm564, %v3669, 0
  %3685 = vmatprep.subr.mxu0 0.0
  %3686 = vmatpush1.msra.mxu0 %v3670
  %3687 = vmatprep.subr.mxu0 0.0
  %3688 = vmatpush1.msra.mxu0 %v3671
  %3689 = vmatprep.subr.mxu0 0.0
  %3690 = vmatpush1.msra.mxu0 %v3672
  %3691 = vmatprep.subr.mxu0 0.0
  %3692 = vmatpush1.msra.mxu0 %v3673
  %3693 = vmatprep.subr.mxu0 0.0
  %3694 = vmatpush1.msra.mxu0 %v3674
  %3695 = vmatprep.subr.mxu0 0.0
  %3696 = vmatpush1.msra.mxu0 %v3675
  %3697 = vmatprep.subr.mxu0 0.0
  %3698 = vmatpush1.msra.mxu0 %v3676
  %3699 = vmatprep.subr.mxu0 0.0
  %3700 = vmatpush1.msra.mxu0 %v3677
  %3701 = vmatprep.subr.mxu0 0.0
  %3702 = vmatpush1.msra.mxu0 0.0
  %3703 = vmatprep.subr.mxu0 0.0
  %3704 = vmatpush1.msra.mxu0 0.0
  %3705 = vmatprep.subr.mxu0 0.0
  %3706 = vmatpush1.msra.mxu0 0.0
  %3707 = vmatprep.subr.mxu0 0.0
  %3708 = vmatpush1.msra.mxu0 0.0
  %3709 = vmatprep.subr.mxu0 0.0
  %3710 = vmatpush1.msra.mxu0 0.0
  %3711 = vmatprep.subr.mxu0 0.0
  %3712 = vmatpush1.msra.mxu0 0.0
  %3713 = vmatprep.subr.mxu0 0.0
  %3714 = vmatpush1.msra.mxu0 0.0
  %3715 = vmatprep.subr.mxu0 0.0
  %3716 = vmatpush1.msra.mxu0 0.0
  %3717 = vmatprep.subr.mxu0 0.0
  %3718 = vmatpush1.msra.mxu0 0.0
  %3719 = vmatprep.subr.mxu0 0.0
  %3720 = vmatpush1.msra.mxu0 0.0
  %3721 = vmatprep.subr.mxu0 0.0
  %3722 = vmatpush1.msra.mxu0 0.0
  %3723 = vmatprep.subr.mxu0 0.0
  %3724 = vmatpush1.msra.mxu0 0.0
  %3725 = vmatprep.subr.mxu0 0.0
  %3726 = vmatpush1.msra.mxu0 0.0
  %3727 = vmatprep.subr.mxu0 0.0
  %3728 = vmatpush1.msra.mxu0 0.0
  %3729 = vmatprep.subr.mxu0 0.0
  %3730 = vmatpush1.msra.mxu0 0.0
  %3731 = vmatprep.subr.mxu0 0.0
  %3732 = vmatpush1.msra.mxu0 0.0
  %3733 = vmatprep.subr.mxu0 0.0
  %3734 = vmatpush1.msra.mxu0 0.0
  %3735 = vmatprep.subr.mxu0 0.0
  %3736 = vmatpush1.msra.mxu0 0.0
  %3737 = vmatprep.subr.mxu0 0.0
  %3738 = vmatpush1.msra.mxu0 0.0
  %3739 = vmatprep.subr.mxu0 0.0
  %3740 = vmatpush1.msra.mxu0 0.0
  %3741 = vmatprep.subr.mxu0 0.0
  %3742 = vmatpush1.msra.mxu0 0.0
  %3743 = vmatprep.subr.mxu0 0.0
  %3744 = vmatpush1.msra.mxu0 0.0
  %3745 = vmatprep.subr.mxu0 0.0
  %3746 = vmatpush1.msra.mxu0 0.0
  %3747 = vmatprep.subr.mxu0 0.0
  %3748 = vmatpush1.msra.mxu0 0.0
  %3749 = vmatprep.mubr.f32.mxu0 0.0
  %3750 = vmatmul.mubr.f32.gmra.mrb[0].mxu0 %v3683
  %v3751 = vpop.f32.mrb[0].mxu0
  %v3752 = vadd.f32 %v3681, %v3751
  %v3753 = vpop.f32.mrb[0].mxu0
  %3754 = vdwg.mxu0
  %v3755 = vld [vmem:[%s4 + $0x340] sm:$0xff]
  %v3756 = vld [vmem:[%s4 + $0x348] sm:$0xff]
  %v3757 = vld [vmem:[%s4 + $0x350] sm:$0xff]
  %v3758 = vld [vmem:[%s4 + $0x358] sm:$0xff]
  %v3759 = vld [vmem:[%s4 + $0x360] sm:$0xff]
  %v3760 = vld [vmem:[%s4 + $0x368] sm:$0xff]
  %v3761 = vld [vmem:[%s4 + $0x370] sm:$0xff]
  %v3762 = vld [vmem:[%s4 + $0x378] sm:$0xff]
  %v3763 = vlaneseq
  %v3764 = vshrl.u32 %v3763, 7
  %v3765 = vsub.s32 6, %v3764
  %v3766 = vrot.slane %v23, %v3765
  %v3768 = vsel %vm564, %v3752, 0
  %3770 = vmatprep.subr.mxu0 0.0
  %3771 = vmatpush1.msra.mxu0 %v3755
  %3772 = vmatprep.subr.mxu0 0.0
  %3773 = vmatpush1.msra.mxu0 %v3756
  %3774 = vmatprep.subr.mxu0 0.0
  %3775 = vmatpush1.msra.mxu0 %v3757
  %3776 = vmatprep.subr.mxu0 0.0
  %3777 = vmatpush1.msra.mxu0 %v3758
  %3778 = vmatprep.subr.mxu0 0.0
  %3779 = vmatpush1.msra.mxu0 %v3759
  %3780 = vmatprep.subr.mxu0 0.0
  %3781 = vmatpush1.msra.mxu0 %v3760
  %3782 = vmatprep.subr.mxu0 0.0
  %3783 = vmatpush1.msra.mxu0 %v3761
  %3784 = vmatprep.subr.mxu0 0.0
  %3785 = vmatpush1.msra.mxu0 %v3762
  %3786 = vmatprep.subr.mxu0 0.0
  %3787 = vmatpush1.msra.mxu0 0.0
  %3788 = vmatprep.subr.mxu0 0.0
  %3789 = vmatpush1.msra.mxu0 0.0
  %3790 = vmatprep.subr.mxu0 0.0
  %3791 = vmatpush1.msra.mxu0 0.0
  %3792 = vmatprep.subr.mxu0 0.0
  %3793 = vmatpush1.msra.mxu0 0.0
  %3794 = vmatprep.subr.mxu0 0.0
  %3795 = vmatpush1.msra.mxu0 0.0
  %3796 = vmatprep.subr.mxu0 0.0
  %3797 = vmatpush1.msra.mxu0 0.0
  %3798 = vmatprep.subr.mxu0 0.0
  %3799 = vmatpush1.msra.mxu0 0.0
  %3800 = vmatprep.subr.mxu0 0.0
  %3801 = vmatpush1.msra.mxu0 0.0
  %3802 = vmatprep.subr.mxu0 0.0
  %3803 = vmatpush1.msra.mxu0 0.0
  %3804 = vmatprep.subr.mxu0 0.0
  %3805 = vmatpush1.msra.mxu0 0.0
  %3806 = vmatprep.subr.mxu0 0.0
  %3807 = vmatpush1.msra.mxu0 0.0
  %3808 = vmatprep.subr.mxu0 0.0
  %3809 = vmatpush1.msra.mxu0 0.0
  %3810 = vmatprep.subr.mxu0 0.0
  %3811 = vmatpush1.msra.mxu0 0.0
  %3812 = vmatprep.subr.mxu0 0.0
  %3813 = vmatpush1.msra.mxu0 0.0
  %3814 = vmatprep.subr.mxu0 0.0
  %3815 = vmatpush1.msra.mxu0 0.0
  %3816 = vmatprep.subr.mxu0 0.0
  %3817 = vmatpush1.msra.mxu0 0.0
  %3818 = vmatprep.subr.mxu0 0.0
  %3819 = vmatpush1.msra.mxu0 0.0
  %3820 = vmatprep.subr.mxu0 0.0
  %3821 = vmatpush1.msra.mxu0 0.0
  %3822 = vmatprep.subr.mxu0 0.0
  %3823 = vmatpush1.msra.mxu0 0.0
  %3824 = vmatprep.subr.mxu0 0.0
  %3825 = vmatpush1.msra.mxu0 0.0
  %3826 = vmatprep.subr.mxu0 0.0
  %3827 = vmatpush1.msra.mxu0 0.0
  %3828 = vmatprep.subr.mxu0 0.0
  %3829 = vmatpush1.msra.mxu0 0.0
  %3830 = vmatprep.subr.mxu0 0.0
  %3831 = vmatpush1.msra.mxu0 0.0
  %3832 = vmatprep.subr.mxu0 0.0
  %3833 = vmatpush1.msra.mxu0 0.0
  %3834 = vmatprep.mubr.f32.mxu0 0.0
  %3835 = vmatmul.mubr.f32.gmra.mrb[0].mxu0 %v3768
  %v3836 = vpop.f32.mrb[0].mxu0
  %v3837 = vadd.f32 %v3766, %v3836
  %v3838 = vpop.f32.mrb[0].mxu0
  %3839 = vdwg.mxu0
  %v3840 = vxor.u32 %v3837, 2147483648
  %v3841 = vmul.f32 %v3840, 1.442695
  %v3842 = vpow.pop %v3841
  %v3843 = vadd.f32 %v3842, 1.0
  %v3844 = vrcp.pop %v3843
  %v3845 = vmul.f32 1.0, %v3844
  %v3846 = vmul.f32 %v3837, %v3845
  %v3847 = vld [vmem:[%s4 + $0x380] sm:$0xff]
  %v3848 = vld [vmem:[%s4 + $0x388] sm:$0xff]
  %v3849 = vld [vmem:[%s4 + $0x390] sm:$0xff]
  %v3850 = vld [vmem:[%s4 + $0x398] sm:$0xff]
  %v3851 = vld [vmem:[%s4 + $0x3a0] sm:$0xff]
  %v3852 = vld [vmem:[%s4 + $0x3a8] sm:$0xff]
  %v3853 = vld [vmem:[%s4 + $0x3b0] sm:$0xff]
  %v3854 = vld [vmem:[%s4 + $0x3b8] sm:$0xff]
  %v3855 = vlaneseq
  %v3856 = vshrl.u32 %v3855, 7
  %v3857 = vsub.s32 7, %v3856
  %v3858 = vrot.slane %v23, %v3857
  %v3860 = vsel %vm564, %v3846, 0
  %3862 = vmatprep.subr.mxu0 0.0
  %3863 = vmatpush1.msra.mxu0 %v3847
  %3864 = vmatprep.subr.mxu0 0.0
  %3865 = vmatpush1.msra.mxu0 %v3848
  %3866 = vmatprep.subr.mxu0 0.0
  %3867 = vmatpush1.msra.mxu0 %v3849
  %3868 = vmatprep.subr.mxu0 0.0
  %3869 = vmatpush1.msra.mxu0 %v3850
  %3870 = vmatprep.subr.mxu0 0.0
  %3871 = vmatpush1.msra.mxu0 %v3851
  %3872 = vmatprep.subr.mxu0 0.0
  %3873 = vmatpush1.msra.mxu0 %v3852
  %3874 = vmatprep.subr.mxu0 0.0
  %3875 = vmatpush1.msra.mxu0 %v3853
  %3876 = vmatprep.subr.mxu0 0.0
  %3877 = vmatpush1.msra.mxu0 %v3854
  %3878 = vmatprep.subr.mxu0 0.0
  %3879 = vmatpush1.msra.mxu0 0.0
  %3880 = vmatprep.subr.mxu0 0.0
  %3881 = vmatpush1.msra.mxu0 0.0
  %3882 = vmatprep.subr.mxu0 0.0
  %3883 = vmatpush1.msra.mxu0 0.0
  %3884 = vmatprep.subr.mxu0 0.0
  %3885 = vmatpush1.msra.mxu0 0.0
  %3886 = vmatprep.subr.mxu0 0.0
  %3887 = vmatpush1.msra.mxu0 0.0
  %3888 = vmatprep.subr.mxu0 0.0
  %3889 = vmatpush1.msra.mxu0 0.0
  %3890 = vmatprep.subr.mxu0 0.0
  %3891 = vmatpush1.msra.mxu0 0.0
  %3892 = vmatprep.subr.mxu0 0.0
  %3893 = vmatpush1.msra.mxu0 0.0
  %3894 = vmatprep.subr.mxu0 0.0
  %3895 = vmatpush1.msra.mxu0 0.0
  %3896 = vmatprep.subr.mxu0 0.0
  %3897 = vmatpush1.msra.mxu0 0.0
  %3898 = vmatprep.subr.mxu0 0.0
  %3899 = vmatpush1.msra.mxu0 0.0
  %3900 = vmatprep.subr.mxu0 0.0
  %3901 = vmatpush1.msra.mxu0 0.0
  %3902 = vmatprep.subr.mxu0 0.0
  %3903 = vmatpush1.msra.mxu0 0.0
  %3904 = vmatprep.subr.mxu0 0.0
  %3905 = vmatpush1.msra.mxu0 0.0
  %3906 = vmatprep.subr.mxu0 0.0
  %3907 = vmatpush1.msra.mxu0 0.0
  %3908 = vmatprep.subr.mxu0 0.0
  %3909 = vmatpush1.msra.mxu0 0.0
  %3910 = vmatprep.subr.mxu0 0.0
  %3911 = vmatpush1.msra.mxu0 0.0
  %3912 = vmatprep.subr.mxu0 0.0
  %3913 = vmatpush1.msra.mxu0 0.0
  %3914 = vmatprep.subr.mxu0 0.0
  %3915 = vmatpush1.msra.mxu0 0.0
  %3916 = vmatprep.subr.mxu0 0.0
  %3917 = vmatpush1.msra.mxu0 0.0
  %3918 = vmatprep.subr.mxu0 0.0
  %3919 = vmatpush1.msra.mxu0 0.0
  %3920 = vmatprep.subr.mxu0 0.0
  %3921 = vmatpush1.msra.mxu0 0.0
  %3922 = vmatprep.subr.mxu0 0.0
  %3923 = vmatpush1.msra.mxu0 0.0
  %3924 = vmatprep.subr.mxu0 0.0
  %3925 = vmatpush1.msra.mxu0 0.0
  %3926 = vmatprep.mubr.f32.mxu0 0.0
  %3927 = vmatmul.mubr.f32.gmra.mrb[0].mxu0 %v3860
  %v3928 = vpop.f32.mrb[0].mxu0
  %v3929 = vadd.f32 %v3858, %v3928
  %v3930 = vpop.f32.mrb[0].mxu0
  %3931 = vdwg.mxu0
  %v3932 = vxor.u32 %v3929, 2147483648
  %v3933 = vmul.f32 %v3932, 1.442695
  %v3934 = vpow.pop %v3933
  %v3935 = vadd.f32 %v3934, 1.0
  %v3936 = vrcp.pop %v3935
  %v3937 = vmul.f32 1.0, %v3936
  %v3938 = vmul.f32 %v3929, %v3937
  %v3939 = vld [vmem:[%s4 + $0x3c0] sm:$0xff]
  %v3940 = vld [vmem:[%s4 + $0x3c8] sm:$0xff]
  %v3941 = vld [vmem:[%s4 + $0x3d0] sm:$0xff]
  %v3942 = vld [vmem:[%s4 + $0x3d8] sm:$0xff]
  %v3943 = vlaneseq
  %v3944 = vshrl.u32 %v3943, 7
  %v3945 = vsub.s32 0, %v3944
  %v3946 = vrot.slane %v24, %v3945
  %v3948 = vsel %vm285, %v3938, 0
  %3950 = vmatprep.subr.mxu0 0.0
  %3951 = vmatpush1.msra.mxu0 %v3939
  %3952 = vmatprep.subr.mxu0 0.0
  %3953 = vmatpush1.msra.mxu0 %v3940
  %3954 = vmatprep.subr.mxu0 0.0
  %3955 = vmatpush1.msra.mxu0 %v3941
  %3956 = vmatprep.subr.mxu0 0.0
  %3957 = vmatpush1.msra.mxu0 %v3942
  %3958 = vmatprep.subr.mxu0 0.0
  %3959 = vmatpush1.msra.mxu0 0.0
  %3960 = vmatprep.subr.mxu0 0.0
  %3961 = vmatpush1.msra.mxu0 0.0
  %3962 = vmatprep.subr.mxu0 0.0
  %3963 = vmatpush1.msra.mxu0 0.0
  %3964 = vmatprep.subr.mxu0 0.0
  %3965 = vmatpush1.msra.mxu0 0.0
  %3966 = vmatprep.subr.mxu0 0.0
  %3967 = vmatpush1.msra.mxu0 0.0
  %3968 = vmatprep.subr.mxu0 0.0
  %3969 = vmatpush1.msra.mxu0 0.0
  %3970 = vmatprep.subr.mxu0 0.0
  %3971 = vmatpush1.msra.mxu0 0.0
  %3972 = vmatprep.subr.mxu0 0.0
  %3973 = vmatpush1.msra.mxu0 0.0
  %3974 = vmatprep.subr.mxu0 0.0
  %3975 = vmatpush1.msra.mxu0 0.0
  %3976 = vmatprep.subr.mxu0 0.0
  %3977 = vmatpush1.msra.mxu0 0.0
  %3978 = vmatprep.subr.mxu0 0.0
  %3979 = vmatpush1.msra.mxu0 0.0
  %3980 = vmatprep.subr.mxu0 0.0
  %3981 = vmatpush1.msra.mxu0 0.0
  %3982 = vmatprep.subr.mxu0 0.0
  %3983 = vmatpush1.msra.mxu0 0.0
  %3984 = vmatprep.subr.mxu0 0.0
  %3985 = vmatpush1.msra.mxu0 0.0
  %3986 = vmatprep.subr.mxu0 0.0
  %3987 = vmatpush1.msra.mxu0 0.0
  %3988 = vmatprep.subr.mxu0 0.0
  %3989 = vmatpush1.msra.mxu0 0.0
  %3990 = vmatprep.subr.mxu0 0.0
  %3991 = vmatpush1.msra.mxu0 0.0
  %3992 = vmatprep.subr.mxu0 0.0
  %3993 = vmatpush1.msra.mxu0 0.0
  %3994 = vmatprep.subr.mxu0 0.0
  %3995 = vmatpush1.msra.mxu0 0.0
  %3996 = vmatprep.subr.mxu0 0.0
  %3997 = vmatpush1.msra.mxu0 0.0
  %3998 = vmatprep.subr.mxu0 0.0
  %3999 = vmatpush1.msra.mxu0 0.0
  %4000 = vmatprep.subr.mxu0 0.0
  %4001 = vmatpush1.msra.mxu0 0.0
  %4002 = vmatprep.subr.mxu0 0.0
  %4003 = vmatpush1.msra.mxu0 0.0
  %4004 = vmatprep.subr.mxu0 0.0
  %4005 = vmatpush1.msra.mxu0 0.0
  %4006 = vmatprep.subr.mxu0 0.0
  %4007 = vmatpush1.msra.mxu0 0.0
  %4008 = vmatprep.subr.mxu0 0.0
  %4009 = vmatpush1.msra.mxu0 0.0
  %4010 = vmatprep.subr.mxu0 0.0
  %4011 = vmatpush1.msra.mxu0 0.0
  %4012 = vmatprep.subr.mxu0 0.0
  %4013 = vmatpush1.msra.mxu0 0.0
  %4014 = vmatprep.mubr.f32.mxu0 0.0
  %4015 = vmatmul.mubr.f32.gmra.mrb[0].mxu0 %v3948
  %v4016 = vpop.f32.mrb[0].mxu0
  %v4017 = vadd.f32 %v3946, %v4016
  %v4018 = vpop.f32.mrb[0].mxu0
  %4019 = vdwg.mxu0
  %vm4020 = vcmask 1024
  %4021 = vst.msk [vmem:[%s6] sm:$0x3] %vm4020, %v4017
  // Predicated region
  $region26: #{enhanced_esa3d_forward.1} parent=0 // pred_check
    _
  $region27: #{enhanced_esa3d_forward.1} parent=0 // pred_check_branch
    %4023 = sbr.rel (0) target = $region29
  $region28: #{enhanced_esa3d_forward.1} parent=0 // pred_region
    _
  $region29: #{enhanced_esa3d_forward.1} parent=0 // pred_fallthru
    _
  // Predicated region
  $region30: #{enhanced_esa3d_forward.1} parent=0 // pred_check
    _
  $region31: #{enhanced_esa3d_forward.1} parent=0 // pred_check_branch
    %4025 = sbr.rel (0) target = $region33
  $region32: #{enhanced_esa3d_forward.1} parent=0 // pred_region
    _
  $region33: #{enhanced_esa3d_forward.1} parent=0 // pred_fallthru
    _

</llo_original>
